<compile_context>
chip_gen: v7x
topology: tpu7x:2x2x1
jax: 0.10.0
libtpu: 0.0.40
codegen_flags: <defaults>
</compile_context>

<pallas_src>
import functools

import numpy as np
import jax
import jax.numpy as jnp
from jax.experimental import pallas as pl
from jax.experimental.pallas import tpu as pltpu


# ----------------------------------------------------------------------------- kernel

def _conv_block_kernel(
    xin_ref,    # (1, CIN_P, PLEN1)  row-padded, zero-margined input slab (channel-major)
    w36_ref,    # (Cout, 9*CIN_P)    folded dwconv weights, tap-major along K
    wg1p_ref,   # (G1, Cout)         ghost1 primary 1x1 (+BN folded)
    wg1c_ref,   # (G1, 9)            ghost1 cheap depthwise 3x3
    wg2p_ref,   # (G2, 2*G1)         ghost2 primary 1x1
    wg2c_ref,   # (G2, 9)            ghost2 cheap depthwise 3x3
    wca1_ref,   # (Cr, Cout)         channel-attention fc1
    wca2_ref,   # (Cout, Cr)         channel-attention fc2
    wsa_ref,    # (2, 49)            spatial-attention 7x7 conv
    wmask_ref,  # (1, S)             1.0 on the W real columns of each ROW-wide row
    sel_ref,    # (SU, Hp*Wp)        0/1 matrix selecting the 2x2 max-pool anchors
    out_ref,    # (1, Cout, Hp*Wp)
    pad1_ref,   # VMEM (G1, PLEN1)   padded slab for ghost1 cheap 3x3
    pad2_ref,   # VMEM (G2, PLEN1)   padded slab for ghost2 cheap 3x3
    spad_ref,   # VMEM (2, PLEN3)    padded slab for spatial-attention 7x7
    *, H, W, ROW, D, Z1, Z3, G1, G2,
):
    f32 = jnp.float32
    S = H * ROW
    wm = wmask_ref[...]                                       # (1, S)

    # lane offsets of a 3x3 (pad=1) window in the row-padded flat layout
    off3x3 = [D + (dh - 1) * ROW + (dw - 1) for dh in range(3) for dw in range(3)]

    # --- dwconv: Conv(3x3, Cin->Cin, pad=1) . Conv(1x1, Cin->Cout), folded into one
    # 3x3 conv and computed as a SINGLE MXU matmul over the 9 taps stacked along K.
    xtaps = jnp.concatenate([xin_ref[0, :, o:o + S] for o in off3x3], axis=0)
    x0 = jnp.dot(w36_ref[...], xtaps, preferred_element_type=f32)        # (Cout, S)

    # --- GhostBottleneck(Cout, 128, Cout): gb(x) = ghost2(ghost1(x)) + x --------------
    # ghost1 primary: 1x1 (+BN) -> G1, ReLU.
    g1p = jnp.maximum(jnp.dot(wg1p_ref[...], x0, preferred_element_type=f32), 0.0)

    # ghost1 cheap op: depthwise 3x3 (pad=1), ReLU.  Zero only the margin strips the
    # taps read (interior + row slack are rewritten every step; megacore-safe).
    pad1_ref[:, D - Z1:D] = jnp.zeros((G1, Z1), f32)
    pad1_ref[:, D + S:D + S + Z1] = jnp.zeros((G1, Z1), f32)
    pad1_ref[:, D:D + S] = g1p * wm                            # row-slack columns -> 0
    w1c = wg1c_ref[...]
    g1c = jnp.zeros((G1, S), f32)
    for t in range(9):
        o = off3x3[t]
        g1c = g1c + pad1_ref[:, o:o + S] * w1c[:, t:t + 1]
    g1c = jnp.maximum(g1c, 0.0)

    # ghost2 primary: 1x1 over concat([g1p, g1c]); split-K matmuls, the 2*G1-wide
    # concat is never materialized.  g1p is re-read from the slab to cut vreg pressure.
    g1p_s = pad1_ref[:, D:D + S]
    g2p = (jnp.dot(wg2p_ref[:, :G1], g1p_s, preferred_element_type=f32)
           + jnp.dot(wg2p_ref[:, G1:], g1c, preferred_element_type=f32))  # (G2, S)

    # ghost2 cheap op: depthwise 3x3 (pad=1), no activation.
    pad2_ref[:, D - Z1:D] = jnp.zeros((G2, Z1), f32)
    pad2_ref[:, D + S:D + S + Z1] = jnp.zeros((G2, Z1), f32)
    pad2_ref[:, D:D + S] = g2p * wm
    w2c = wg2c_ref[...]
    g2c = jnp.zeros((G2, S), f32)
    for t in range(9):
        o = off3x3[t]
        g2c = g2c + pad2_ref[:, o:o + S] * w2c[:, t:t + 1]

    # x1 = x0 + gb(x0) = concat([g2p, g2c]) + 2*x0  (gb shortcut + outer residual),
    # built in registers -- no VMEM round trip.
    x1 = jnp.concatenate([g2p, g2c], axis=0) + 2.0 * x0        # (Cout, S)

    # --- CBAM channel attention (row-slack lanes excluded from the reductions) --------
    inv_hw = 1.0 / float(H * W)
    avg = jnp.sum(x1 * wm, axis=-1, keepdims=True) * inv_hw               # (Cout, 1)
    mxv = jnp.max(jnp.where(wm > 0.0, x1, -1e30), axis=-1, keepdims=True)  # (Cout, 1)

    def _mlp(v):                                               # (Cout,1) -> (Cout,1)
        hid = jnp.maximum(jnp.dot(wca1_ref[...], v, preferred_element_type=f32), 0.0)
        return jnp.dot(wca2_ref[...], hid, preferred_element_type=f32)

    cgate = jax.nn.sigmoid(_mlp(avg) + _mlp(mxv))              # (Cout, 1)
    x_ca = x1 * cgate                                          # (Cout, S)

    # --- CBAM spatial attention: 7x7 conv (pad=3) over [mean_c, max_c] ----------------
    spad_ref[:, D - Z3:D] = jnp.zeros((2, Z3), f32)
    spad_ref[:, D + S:D + S + Z3] = jnp.zeros((2, Z3), f32)
    spad_ref[0:1, D:D + S] = jnp.mean(x_ca, axis=0, keepdims=True) * wm
    spad_ref[1:2, D:D + S] = jnp.max(x_ca, axis=0, keepdims=True) * wm
    wsa = wsa_ref[...]                                          # (2, 49)
    sacc = jnp.zeros((2, S), f32)
    for t in range(49):
        dh, dw = t // 7, t % 7
        o = D + (dh - 3) * ROW + (dw - 3)
        sacc = sacc + spad_ref[:, o:o + S] * wsa[:, t:t + 1]
    sgate = jax.nn.sigmoid(jnp.sum(sacc, axis=0, keepdims=True))          # (1, S)

    # --- spatial gate * ReLU + MaxPool2d(2, 2), fused ----------------------------------
    # max over column pairs (1-lane shift), then over row pairs (ROW-lane shift), then a
    # constant 0/1 selection matmul gathers the stride-2 anchors straight into the
    # (Cout, Hp*Wp) output block (no strided reads, no pool scratch).
    act = jnp.maximum(x_ca * sgate, 0.0)                                  # (Cout, S)
    pmax1 = jnp.maximum(act[:, :S - 1], act[:, 1:])                       # (Cout, S-1)
    pmax2 = jnp.maximum(pmax1[:, :S - 1 - ROW], pmax1[:, ROW:])           # (Cout, SU)
    out_ref[0] = jnp.dot(pmax2, sel_ref[...], preferred_element_type=f32)  # (Cout, Hp*Wp)


# ----------------------------------------------------------------------------- wrapper

def _full_spec(arr):
    shape = arr.shape
    return pl.BlockSpec(shape, lambda n: (0,) * len(shape))


def conv_block_forward(x_nchw, params):
    """PyTorch-style NCHW in / NCHW out; the kernel runs channel-major with the flattened
    row-padded spatial axis on lanes, so no host-side transposes are needed."""
    x = x_nchw.astype(jnp.float32)                               # (N, Cin, H, W)
    N, Cin, H, W = x.shape
    assert H % 2 == 0 and W % 2 == 0

    Cout = params["w_c2"].shape[1]
    G1 = params["w_g1p"].shape[1]
    G2 = params["w_g2c"].shape[-1]
    Hp, Wp = H // 2, W // 2

    # row-padded flat spatial layout: each image row occupies ROW lanes (W data columns
    # + 6 slack columns, enough halo for the 7x7 spatial-attention conv).
    ROW = W + 6
    S = H * ROW
    Z1 = ROW + 2                       # margin actually read by a 3x3 (pad=1) window
    Z3 = 3 * ROW + 4                   # margin actually read by the 7x7 (pad=3) window
    D = ((Z3 + 127) // 128) * 128      # lane-aligned interior offset inside padded slabs
    PLEN1 = D + S + Z1
    PLEN3 = D + S + Z3
    SU = S - ROW - 1                   # length after the two shifted pooling maxes
    CIN_P = ((Cin + 7) // 8) * 8       # pad input channels to a full sublane group

    # ---- host-side weight prep: fold dwconv 3x3+1x1 into one 3x3 conv (exact), and
    # re-orient everything for the channel-major (C, spatial) kernel layout.
    w_conv = jnp.einsum("hwim,mo->hwio", params["w_c1"], params["w_c2"])   # (3,3,Cin,Cout)
    w_conv = jnp.pad(w_conv, ((0, 0), (0, 0), (0, CIN_P - Cin), (0, 0)))
    w36 = jnp.transpose(w_conv, (3, 0, 1, 2)).reshape(Cout, 9 * CIN_P)     # (Cout, 9*CIN_P)
    wg1p_t = params["w_g1p"].T                                             # (G1, Cout)
    wg1c_t = params["w_g1c"].reshape(9, G1).T                              # (G1, 9)
    wg2p_t = params["w_g2p"].T                                             # (G2, 2*G1)
    wg2c_t = params["w_g2c"].reshape(9, G2).T                              # (G2, 9)
    wca1_t = params["w_ca1"].T                                             # (Cr, Cout)
    wca2_t = params["w_ca2"].T                                             # (Cout, Cr)
    wsa_t = params["w_sa"].reshape(49, 2).T                                # (2, 49)

    # ---- input: channel-pad, row-pad to ROW, flatten, and add zero margins (tiny).
    xcf = jnp.pad(x, ((0, 0), (0, CIN_P - Cin), (0, 0), (0, ROW - W)))     # (N,CIN_P,H,ROW)
    xin = jnp.pad(xcf.reshape(N, CIN_P, S), ((0, 0), (0, 0), (D, Z1)))     # (N,CIN_P,PLEN1)

    # ---- constant helpers: row-slack lane mask and the pooling anchor selector.
    wmask = jnp.asarray((np.arange(S) % ROW < W).astype(np.float32)[None, :])   # (1, S)
    sel_np = np.zeros((SU, Hp * Wp), np.float32)
    for i in range(Hp):
        for j in range(Wp):
            sel_np[2 * i * ROW + 2 * j, i * Wp + j] = 1.0
    sel = jnp.asarray(sel_np)                                               # (SU, Hp*Wp)

    kernel = functools.partial(_conv_block_kernel, H=H, W=W, ROW=ROW, D=D,
                               Z1=Z1, Z3=Z3, G1=G1, G2=G2)

    out = pl.pallas_call(
        kernel,
        out_shape=jax.ShapeDtypeStruct((N, Cout, Hp * Wp), jnp.float32),
        grid=(N,),
        in_specs=[
            pl.BlockSpec((1, CIN_P, PLEN1), lambda n: (n, 0, 0)),
            _full_spec(w36), _full_spec(wg1p_t), _full_spec(wg1c_t),
            _full_spec(wg2p_t), _full_spec(wg2c_t),
            _full_spec(wca1_t), _full_spec(wca2_t), _full_spec(wsa_t),
            _full_spec(wmask), _full_spec(sel),
        ],
        out_specs=pl.BlockSpec((1, Cout, Hp * Wp), lambda n: (n, 0, 0)),
        scratch_shapes=[
            pltpu.VMEM((G1, PLEN1), jnp.float32),
            pltpu.VMEM((G2, PLEN1), jnp.float32),
            pltpu.VMEM((2, PLEN3), jnp.float32),
        ],
        compiler_params=pltpu.CompilerParams(dimension_semantics=("parallel",)),
    )(xin, w36, wg1p_t, wg1c_t, wg2p_t, wg2c_t, wca1_t, wca2_t, wsa_t, wmask, sel)

    return out.reshape(N, Cout, Hp, Wp)                                    # already NCHW


# ----------------------------------------------------------------------------- params

def init_params(key, in_ch, out_ch, ratio=8):
    ks = jax.random.split(key, 9)
    bn = 1.0 / np.sqrt(1.0 + 1e-5)   # eval-mode BatchNorm (default stats) folded in

    def w(k, shape, fan_in, scale=1.0):
        return jax.random.normal(k, shape, jnp.float32) * (scale / np.sqrt(fan_in))

    g1_init = 64              # GhostModule(out_ch, 128): init = ceil(128/2)
    g2_init = out_ch // 2     # GhostModule(128, out_ch): init = ceil(out_ch/2)
    return {
        # dwconv: Conv2d(in_ch,in_ch,3) then Conv2d(in_ch,out_ch,1)   (HWIO weight layout)
        "w_c1": w(ks[0], (3, 3, in_ch, in_ch), 9 * in_ch),
        "w_c2": w(ks[1], (in_ch, out_ch), in_ch),
        # GhostBottleneck(out_ch, 128, out_ch, 3)
        "w_g1p": w(ks[2], (out_ch, g1_init), out_ch, bn),
        "w_g1c": w(ks[3], (3, 3, g1_init), 9, bn),
        "w_g2p": w(ks[4], (128, g2_init), 128, bn),
        "w_g2c": w(ks[5], (3, 3, g2_init), 9, bn),
        # CBAM channel attention 1x1 convs (acting as FCs over (N,C,1,1))
        "w_ca1": w(ks[6], (out_ch, out_ch // ratio), out_ch),
        "w_ca2": w(ks[7], (out_ch // ratio, out_ch), out_ch // ratio),
        # CBAM spatial attention 7x7 conv (2 -> 1), input channel order [avg, max]
        "w_sa": w(ks[8], (7, 7, 2, 1), 7 * 7 * 2),
    }


if __name__ == "__main__":
    key = jax.random.PRNGKey(0)
    kx, kp = jax.random.split(key)
    in_ch, out_ch = 4, 16
    x = jax.random.normal(kx, (2, in_ch, 16, 16), jnp.float32)        # NCHW, like PyTorch
    params = init_params(kp, in_ch, out_ch)

    out = jax.jit(conv_block_forward)(x, params)
    jax.block_until_ready(out)
    assert out.shape == (2, out_ch, 8, 8), out.shape
    assert bool(jnp.all(jnp.isfinite(out)))
    print("KERNEL_OK")
</pallas_src>

<mosaic_0001>
module attributes {stable_mosaic.version = 11 : i64} {
  func.func @_conv_block_kernel(%arg0: i32, %arg1: memref<1x8x504xf32, #tpu.memory_space<vmem>>, %arg2: memref<16x72xf32, #tpu.memory_space<vmem>>, %arg3: memref<64x16xf32, #tpu.memory_space<vmem>>, %arg4: memref<64x9xf32, #tpu.memory_space<vmem>>, %arg5: memref<8x128xf32, #tpu.memory_space<vmem>>, %arg6: memref<8x9xf32, #tpu.memory_space<vmem>>, %arg7: memref<2x16xf32, #tpu.memory_space<vmem>>, %arg8: memref<16x2xf32, #tpu.memory_space<vmem>>, %arg9: memref<2x49xf32, #tpu.memory_space<vmem>>, %arg10: memref<1x352xf32, #tpu.memory_space<vmem>>, %arg11: memref<329x64xf32, #tpu.memory_space<vmem>>, %arg12: memref<1x16x64xf32, #tpu.memory_space<vmem>>, %arg13: memref<64x504xf32, #tpu.memory_space<vmem>>, %arg14: memref<8x504xf32, #tpu.memory_space<vmem>>, %arg15: memref<2x550xf32, #tpu.memory_space<vmem>>) attributes {dimension_semantics = [#tpu.dimension_semantics<parallel>], iteration_bounds = array<i64: 2>, scalar_prefetch = 0 : i64, scratch_operands = 3 : i64, tpu.core_type = #tpu.core_type<tc>, window_params = [{transform_indices = @transform_0, window_bounds = array<i64: 1, 8, 504>}, {pipeline_mode = #tpu.pipeline_mode<synchronous>, transform_indices = @transform_1, window_bounds = array<i64: 16, 72>}, {pipeline_mode = #tpu.pipeline_mode<synchronous>, transform_indices = @transform_2, window_bounds = array<i64: 64, 16>}, {pipeline_mode = #tpu.pipeline_mode<synchronous>, transform_indices = @transform_3, window_bounds = array<i64: 64, 9>}, {pipeline_mode = #tpu.pipeline_mode<synchronous>, transform_indices = @transform_4, window_bounds = array<i64: 8, 128>}, {pipeline_mode = #tpu.pipeline_mode<synchronous>, transform_indices = @transform_5, window_bounds = array<i64: 8, 9>}, {pipeline_mode = #tpu.pipeline_mode<synchronous>, transform_indices = @transform_6, window_bounds = array<i64: 2, 16>}, {pipeline_mode = #tpu.pipeline_mode<synchronous>, transform_indices = @transform_7, window_bounds = array<i64: 16, 2>}, {pipeline_mode = #tpu.pipeline_mode<synchronous>, transform_indices = @transform_8, window_bounds = array<i64: 2, 49>}, {pipeline_mode = #tpu.pipeline_mode<synchronous>, transform_indices = @transform_9, window_bounds = array<i64: 1, 352>}, {pipeline_mode = #tpu.pipeline_mode<synchronous>, transform_indices = @transform_10, window_bounds = array<i64: 329, 64>}, {transform_indices = @transform_11, window_bounds = array<i64: 1, 16, 64>}]} {
    %c0 = arith.constant 0 : index
    %c0_0 = arith.constant 0 : index
    %0 = vector.load %arg10[%c0, %c0_0] : memref<1x352xf32, #tpu.memory_space<vmem>>, vector<1x352xf32>
    %c0_1 = arith.constant 0 : index
    %c0_2 = arith.constant 0 : index
    %c105 = arith.constant 105 : index
    %1 = vector.load %arg1[%c0_1, %c0_2, %c105] : memref<1x8x504xf32, #tpu.memory_space<vmem>>, vector<1x8x352xf32>
    %2 = vector.shape_cast %1 : vector<1x8x352xf32> to vector<8x352xf32>
    %c0_3 = arith.constant 0 : index
    %c0_4 = arith.constant 0 : index
    %c106 = arith.constant 106 : index
    %3 = vector.load %arg1[%c0_3, %c0_4, %c106] : memref<1x8x504xf32, #tpu.memory_space<vmem>>, vector<1x8x352xf32>
    %4 = vector.shape_cast %3 : vector<1x8x352xf32> to vector<8x352xf32>
    %c0_5 = arith.constant 0 : index
    %c0_6 = arith.constant 0 : index
    %c107 = arith.constant 107 : index
    %5 = vector.load %arg1[%c0_5, %c0_6, %c107] : memref<1x8x504xf32, #tpu.memory_space<vmem>>, vector<1x8x352xf32>
    %6 = vector.shape_cast %5 : vector<1x8x352xf32> to vector<8x352xf32>
    %c0_7 = arith.constant 0 : index
    %c0_8 = arith.constant 0 : index
    %c127 = arith.constant 127 : index
    %7 = vector.load %arg1[%c0_7, %c0_8, %c127] : memref<1x8x504xf32, #tpu.memory_space<vmem>>, vector<1x8x352xf32>
    %8 = vector.shape_cast %7 : vector<1x8x352xf32> to vector<8x352xf32>
    %c0_9 = arith.constant 0 : index
    %c0_10 = arith.constant 0 : index
    %c128 = arith.constant 128 : index
    %9 = vector.load %arg1[%c0_9, %c0_10, %c128] : memref<1x8x504xf32, #tpu.memory_space<vmem>>, vector<1x8x352xf32>
    %10 = vector.shape_cast %9 : vector<1x8x352xf32> to vector<8x352xf32>
    %c0_11 = arith.constant 0 : index
    %c0_12 = arith.constant 0 : index
    %c129 = arith.constant 129 : index
    %11 = vector.load %arg1[%c0_11, %c0_12, %c129] : memref<1x8x504xf32, #tpu.memory_space<vmem>>, vector<1x8x352xf32>
    %12 = vector.shape_cast %11 : vector<1x8x352xf32> to vector<8x352xf32>
    %c0_13 = arith.constant 0 : index
    %c0_14 = arith.constant 0 : index
    %c149 = arith.constant 149 : index
    %13 = vector.load %arg1[%c0_13, %c0_14, %c149] : memref<1x8x504xf32, #tpu.memory_space<vmem>>, vector<1x8x352xf32>
    %14 = vector.shape_cast %13 : vector<1x8x352xf32> to vector<8x352xf32>
    %c0_15 = arith.constant 0 : index
    %c0_16 = arith.constant 0 : index
    %c150 = arith.constant 150 : index
    %15 = vector.load %arg1[%c0_15, %c0_16, %c150] : memref<1x8x504xf32, #tpu.memory_space<vmem>>, vector<1x8x352xf32>
    %16 = vector.shape_cast %15 : vector<1x8x352xf32> to vector<8x352xf32>
    %c0_17 = arith.constant 0 : index
    %c0_18 = arith.constant 0 : index
    %c151 = arith.constant 151 : index
    %17 = vector.load %arg1[%c0_17, %c0_18, %c151] : memref<1x8x504xf32, #tpu.memory_space<vmem>>, vector<1x8x352xf32>
    %18 = vector.shape_cast %17 : vector<1x8x352xf32> to vector<8x352xf32>
    %19 = tpu.concatenate %2, %4, %6, %8, %10, %12, %14, %16, %18 in 0 : vector<8x352xf32>, vector<8x352xf32>, vector<8x352xf32>, vector<8x352xf32>, vector<8x352xf32>, vector<8x352xf32>, vector<8x352xf32>, vector<8x352xf32>, vector<8x352xf32> -> vector<72x352xf32>
    %c0_19 = arith.constant 0 : index
    %c0_20 = arith.constant 0 : index
    %20 = vector.load %arg2[%c0_19, %c0_20] : memref<16x72xf32, #tpu.memory_space<vmem>>, vector<16x72xf32>
    %cst = arith.constant dense<0.000000e+00> : vector<16x352xf32>
    %21 = tpu.matmul %20, %19, %cst {dimension_numbers = #tpu.dot_dimension_numbers<[1], [0], [0], [1], [0, 0, 1, 1], [], []>} : vector<16x72xf32>, vector<72x352xf32>, vector<16x352xf32> -> vector<16x352xf32>
    %c0_21 = arith.constant 0 : index
    %c0_22 = arith.constant 0 : index
    %22 = vector.load %arg3[%c0_21, %c0_22] : memref<64x16xf32, #tpu.memory_space<vmem>>, vector<64x16xf32>
    %cst_23 = arith.constant dense<0.000000e+00> : vector<64x352xf32>
    %23 = tpu.matmul %22, %21, %cst_23 {dimension_numbers = #tpu.dot_dimension_numbers<[1], [0], [0], [1], [0, 0, 1, 1], [], []>} : vector<64x16xf32>, vector<16x352xf32>, vector<64x352xf32> -> vector<64x352xf32>
    %cst_24 = arith.constant 0.000000e+00 : f32
    %24 = vector.broadcast %cst_24 : f32 to vector<64x352xf32>
    %25 = arith.maximumf %23, %24 : vector<64x352xf32>
    %cst_25 = arith.constant 0.000000e+00 : f32
    %26 = vector.broadcast %cst_25 : f32 to vector<64x24xf32>
    %c0_26 = arith.constant 0 : index
    %c104 = arith.constant 104 : index
    %27 = vector.load %arg13[%c0_26, %c104] : memref<64x504xf32, #tpu.memory_space<vmem>>, vector<64x24xf32>
    tpu.vector_store %arg13[%c0_26, %c104], %26 {strides = array<i32>} : memref<64x504xf32, #tpu.memory_space<vmem>>, vector<64x24xf32>,
    %cst_27 = arith.constant 0.000000e+00 : f32
    %28 = vector.broadcast %cst_27 : f32 to vector<64x24xf32>
    %c0_28 = arith.constant 0 : index
    %c480 = arith.constant 480 : index
    %29 = vector.load %arg13[%c0_28, %c480] : memref<64x504xf32, #tpu.memory_space<vmem>>, vector<64x24xf32>
    tpu.vector_store %arg13[%c0_28, %c480], %28 {strides = array<i32>} : memref<64x504xf32, #tpu.memory_space<vmem>>, vector<64x24xf32>,
    %30 = vector.broadcast %0 : vector<1x352xf32> to vector<64x352xf32>
    %31 = arith.mulf %25, %30 : vector<64x352xf32>
    %c0_29 = arith.constant 0 : index
    %c128_30 = arith.constant 128 : index
    %32 = vector.load %arg13[%c0_29, %c128_30] : memref<64x504xf32, #tpu.memory_space<vmem>>, vector<64x352xf32>
    tpu.vector_store %arg13[%c0_29, %c128_30], %31 {strides = array<i32>} : memref<64x504xf32, #tpu.memory_space<vmem>>, vector<64x352xf32>,
    %c0_31 = arith.constant 0 : index
    %c0_32 = arith.constant 0 : index
    %33 = vector.load %arg4[%c0_31, %c0_32] : memref<64x9xf32, #tpu.memory_space<vmem>>, vector<64x9xf32>
    %cst_33 = arith.constant 0.000000e+00 : f32
    %34 = vector.broadcast %cst_33 : f32 to vector<64x352xf32>
    %c0_34 = arith.constant 0 : index
    %c105_35 = arith.constant 105 : index
    %35 = vector.load %arg13[%c0_34, %c105_35] : memref<64x504xf32, #tpu.memory_space<vmem>>, vector<64x352xf32>
    %36 = vector.extract_strided_slice %33 {offsets = [0, 0], sizes = [64, 1], strides = [1, 1]} : vector<64x9xf32> to vector<64x1xf32>
    %37 = vector.broadcast %36 : vector<64x1xf32> to vector<64x352xf32>
    %38 = arith.mulf %35, %37 : vector<64x352xf32>
    %39 = arith.addf %34, %38 : vector<64x352xf32>
    %c0_36 = arith.constant 0 : index
    %c106_37 = arith.constant 106 : index
    %40 = vector.load %arg13[%c0_36, %c106_37] : memref<64x504xf32, #tpu.memory_space<vmem>>, vector<64x352xf32>
    %41 = vector.extract_strided_slice %33 {offsets = [0, 1], sizes = [64, 1], strides = [1, 1]} : vector<64x9xf32> to vector<64x1xf32>
    %42 = vector.broadcast %41 : vector<64x1xf32> to vector<64x352xf32>
    %43 = arith.mulf %40, %42 : vector<64x352xf32>
    %44 = arith.addf %39, %43 : vector<64x352xf32>
    %c0_38 = arith.constant 0 : index
    %c107_39 = arith.constant 107 : index
    %45 = vector.load %arg13[%c0_38, %c107_39] : memref<64x504xf32, #tpu.memory_space<vmem>>, vector<64x352xf32>
    %46 = vector.extract_strided_slice %33 {offsets = [0, 2], sizes = [64, 1], strides = [1, 1]} : vector<64x9xf32> to vector<64x1xf32>
    %47 = vector.broadcast %46 : vector<64x1xf32> to vector<64x352xf32>
    %48 = arith.mulf %45, %47 : vector<64x352xf32>
    %49 = arith.addf %44, %48 : vector<64x352xf32>
    %c0_40 = arith.constant 0 : index
    %c127_41 = arith.constant 127 : index
    %50 = vector.load %arg13[%c0_40, %c127_41] : memref<64x504xf32, #tpu.memory_space<vmem>>, vector<64x352xf32>
    %51 = vector.extract_strided_slice %33 {offsets = [0, 3], sizes = [64, 1], strides = [1, 1]} : vector<64x9xf32> to vector<64x1xf32>
    %52 = vector.broadcast %51 : vector<64x1xf32> to vector<64x352xf32>
    %53 = arith.mulf %50, %52 : vector<64x352xf32>
    %54 = arith.addf %49, %53 : vector<64x352xf32>
    %c0_42 = arith.constant 0 : index
    %c128_43 = arith.constant 128 : index
    %55 = vector.load %arg13[%c0_42, %c128_43] : memref<64x504xf32, #tpu.memory_space<vmem>>, vector<64x352xf32>
    %56 = vector.extract_strided_slice %33 {offsets = [0, 4], sizes = [64, 1], strides = [1, 1]} : vector<64x9xf32> to vector<64x1xf32>
    %57 = vector.broadcast %56 : vector<64x1xf32> to vector<64x352xf32>
    %58 = arith.mulf %55, %57 : vector<64x352xf32>
    %59 = arith.addf %54, %58 : vector<64x352xf32>
    %c0_44 = arith.constant 0 : index
    %c129_45 = arith.constant 129 : index
    %60 = vector.load %arg13[%c0_44, %c129_45] : memref<64x504xf32, #tpu.memory_space<vmem>>, vector<64x352xf32>
    %61 = vector.extract_strided_slice %33 {offsets = [0, 5], sizes = [64, 1], strides = [1, 1]} : vector<64x9xf32> to vector<64x1xf32>
    %62 = vector.broadcast %61 : vector<64x1xf32> to vector<64x352xf32>
    %63 = arith.mulf %60, %62 : vector<64x352xf32>
    %64 = arith.addf %59, %63 : vector<64x352xf32>
    %c0_46 = arith.constant 0 : index
    %c149_47 = arith.constant 149 : index
    %65 = vector.load %arg13[%c0_46, %c149_47] : memref<64x504xf32, #tpu.memory_space<vmem>>, vector<64x352xf32>
    %66 = vector.extract_strided_slice %33 {offsets = [0, 6], sizes = [64, 1], strides = [1, 1]} : vector<64x9xf32> to vector<64x1xf32>
    %67 = vector.broadcast %66 : vector<64x1xf32> to vector<64x352xf32>
    %68 = arith.mulf %65, %67 : vector<64x352xf32>
    %69 = arith.addf %64, %68 : vector<64x352xf32>
    %c0_48 = arith.constant 0 : index
    %c150_49 = arith.constant 150 : index
    %70 = vector.load %arg13[%c0_48, %c150_49] : memref<64x504xf32, #tpu.memory_space<vmem>>, vector<64x352xf32>
    %71 = vector.extract_strided_slice %33 {offsets = [0, 7], sizes = [64, 1], strides = [1, 1]} : vector<64x9xf32> to vector<64x1xf32>
    %72 = vector.broadcast %71 : vector<64x1xf32> to vector<64x352xf32>
    %73 = arith.mulf %70, %72 : vector<64x352xf32>
    %74 = arith.addf %69, %73 : vector<64x352xf32>
    %c0_50 = arith.constant 0 : index
    %c151_51 = arith.constant 151 : index
    %75 = vector.load %arg13[%c0_50, %c151_51] : memref<64x504xf32, #tpu.memory_space<vmem>>, vector<64x352xf32>
    %76 = vector.extract_strided_slice %33 {offsets = [0, 8], sizes = [64, 1], strides = [1, 1]} : vector<64x9xf32> to vector<64x1xf32>
    %77 = vector.broadcast %76 : vector<64x1xf32> to vector<64x352xf32>
    %78 = arith.mulf %75, %77 : vector<64x352xf32>
    %79 = arith.addf %74, %78 : vector<64x352xf32>
    %cst_52 = arith.constant 0.000000e+00 : f32
    %80 = vector.broadcast %cst_52 : f32 to vector<64x352xf32>
    %81 = arith.maximumf %79, %80 : vector<64x352xf32>
    %c0_53 = arith.constant 0 : index
    %c128_54 = arith.constant 128 : index
    %82 = vector.load %arg13[%c0_53, %c128_54] : memref<64x504xf32, #tpu.memory_space<vmem>>, vector<64x352xf32>
    %c0_55 = arith.constant 0 : index
    %c0_56 = arith.constant 0 : index
    %83 = vector.load %arg5[%c0_55, %c0_56] : memref<8x128xf32, #tpu.memory_space<vmem>>, vector<8x64xf32>
    %cst_57 = arith.constant dense<0.000000e+00> : vector<8x352xf32>
    %84 = tpu.matmul %83, %82, %cst_57 {dimension_numbers = #tpu.dot_dimension_numbers<[1], [0], [0], [1], [0, 0, 1, 1], [], []>} : vector<8x64xf32>, vector<64x352xf32>, vector<8x352xf32> -> vector<8x352xf32>
    %c0_58 = arith.constant 0 : index
    %c64 = arith.constant 64 : index
    %85 = vector.load %arg5[%c0_58, %c64] : memref<8x128xf32, #tpu.memory_space<vmem>>, vector<8x64xf32>
    %cst_59 = arith.constant dense<0.000000e+00> : vector<8x352xf32>
    %86 = tpu.matmul %85, %81, %cst_59 {dimension_numbers = #tpu.dot_dimension_numbers<[1], [0], [0], [1], [0, 0, 1, 1], [], []>} : vector<8x64xf32>, vector<64x352xf32>, vector<8x352xf32> -> vector<8x352xf32>
    %87 = arith.addf %84, %86 : vector<8x352xf32>
    %cst_60 = arith.constant 0.000000e+00 : f32
    %88 = vector.broadcast %cst_60 : f32 to vector<8x24xf32>
    %c0_61 = arith.constant 0 : index
    %c104_62 = arith.constant 104 : index
    %89 = vector.load %arg14[%c0_61, %c104_62] : memref<8x504xf32, #tpu.memory_space<vmem>>, vector<8x24xf32>
    tpu.vector_store %arg14[%c0_61, %c104_62], %88 {strides = array<i32>} : memref<8x504xf32, #tpu.memory_space<vmem>>, vector<8x24xf32>,
    %cst_63 = arith.constant 0.000000e+00 : f32
    %90 = vector.broadcast %cst_63 : f32 to vector<8x24xf32>
    %c0_64 = arith.constant 0 : index
    %c480_65 = arith.constant 480 : index
    %91 = vector.load %arg14[%c0_64, %c480_65] : memref<8x504xf32, #tpu.memory_space<vmem>>, vector<8x24xf32>
    tpu.vector_store %arg14[%c0_64, %c480_65], %90 {strides = array<i32>} : memref<8x504xf32, #tpu.memory_space<vmem>>, vector<8x24xf32>,
    %92 = vector.broadcast %0 : vector<1x352xf32> to vector<8x352xf32>
    %93 = arith.mulf %87, %92 : vector<8x352xf32>
    %c0_66 = arith.constant 0 : index
    %c128_67 = arith.constant 128 : index
    %94 = vector.load %arg14[%c0_66, %c128_67] : memref<8x504xf32, #tpu.memory_space<vmem>>, vector<8x352xf32>
    tpu.vector_store %arg14[%c0_66, %c128_67], %93 {strides = array<i32>} : memref<8x504xf32, #tpu.memory_space<vmem>>, vector<8x352xf32>,
    %c0_68 = arith.constant 0 : index
    %c0_69 = arith.constant 0 : index
    %95 = vector.load %arg6[%c0_68, %c0_69] : memref<8x9xf32, #tpu.memory_space<vmem>>, vector<8x9xf32>
    %cst_70 = arith.constant 0.000000e+00 : f32
    %96 = vector.broadcast %cst_70 : f32 to vector<8x352xf32>
    %c0_71 = arith.constant 0 : index
    %c105_72 = arith.constant 105 : index
    %97 = vector.load %arg14[%c0_71, %c105_72] : memref<8x504xf32, #tpu.memory_space<vmem>>, vector<8x352xf32>
    %98 = vector.extract_strided_slice %95 {offsets = [0, 0], sizes = [8, 1], strides = [1, 1]} : vector<8x9xf32> to vector<8x1xf32>
    %99 = vector.broadcast %98 : vector<8x1xf32> to vector<8x352xf32>
    %100 = arith.mulf %97, %99 : vector<8x352xf32>
    %101 = arith.addf %96, %100 : vector<8x352xf32>
    %c0_73 = arith.constant 0 : index
    %c106_74 = arith.constant 106 : index
    %102 = vector.load %arg14[%c0_73, %c106_74] : memref<8x504xf32, #tpu.memory_space<vmem>>, vector<8x352xf32>
    %103 = vector.extract_strided_slice %95 {offsets = [0, 1], sizes = [8, 1], strides = [1, 1]} : vector<8x9xf32> to vector<8x1xf32>
    %104 = vector.broadcast %103 : vector<8x1xf32> to vector<8x352xf32>
    %105 = arith.mulf %102, %104 : vector<8x352xf32>
    %106 = arith.addf %101, %105 : vector<8x352xf32>
    %c0_75 = arith.constant 0 : index
    %c107_76 = arith.constant 107 : index
    %107 = vector.load %arg14[%c0_75, %c107_76] : memref<8x504xf32, #tpu.memory_space<vmem>>, vector<8x352xf32>
    %108 = vector.extract_strided_slice %95 {offsets = [0, 2], sizes = [8, 1], strides = [1, 1]} : vector<8x9xf32> to vector<8x1xf32>
    %109 = vector.broadcast %108 : vector<8x1xf32> to vector<8x352xf32>
    %110 = arith.mulf %107, %109 : vector<8x352xf32>
    %111 = arith.addf %106, %110 : vector<8x352xf32>
    %c0_77 = arith.constant 0 : index
    %c127_78 = arith.constant 127 : index
    %112 = vector.load %arg14[%c0_77, %c127_78] : memref<8x504xf32, #tpu.memory_space<vmem>>, vector<8x352xf32>
    %113 = vector.extract_strided_slice %95 {offsets = [0, 3], sizes = [8, 1], strides = [1, 1]} : vector<8x9xf32> to vector<8x1xf32>
    %114 = vector.broadcast %113 : vector<8x1xf32> to vector<8x352xf32>
    %115 = arith.mulf %112, %114 : vector<8x352xf32>
    %116 = arith.addf %111, %115 : vector<8x352xf32>
    %c0_79 = arith.constant 0 : index
    %c128_80 = arith.constant 128 : index
    %117 = vector.load %arg14[%c0_79, %c128_80] : memref<8x504xf32, #tpu.memory_space<vmem>>, vector<8x352xf32>
    %118 = vector.extract_strided_slice %95 {offsets = [0, 4], sizes = [8, 1], strides = [1, 1]} : vector<8x9xf32> to vector<8x1xf32>
    %119 = vector.broadcast %118 : vector<8x1xf32> to vector<8x352xf32>
    %120 = arith.mulf %117, %119 : vector<8x352xf32>
    %121 = arith.addf %116, %120 : vector<8x352xf32>
    %c0_81 = arith.constant 0 : index
    %c129_82 = arith.constant 129 : index
    %122 = vector.load %arg14[%c0_81, %c129_82] : memref<8x504xf32, #tpu.memory_space<vmem>>, vector<8x352xf32>
    %123 = vector.extract_strided_slice %95 {offsets = [0, 5], sizes = [8, 1], strides = [1, 1]} : vector<8x9xf32> to vector<8x1xf32>
    %124 = vector.broadcast %123 : vector<8x1xf32> to vector<8x352xf32>
    %125 = arith.mulf %122, %124 : vector<8x352xf32>
    %126 = arith.addf %121, %125 : vector<8x352xf32>
    %c0_83 = arith.constant 0 : index
    %c149_84 = arith.constant 149 : index
    %127 = vector.load %arg14[%c0_83, %c149_84] : memref<8x504xf32, #tpu.memory_space<vmem>>, vector<8x352xf32>
    %128 = vector.extract_strided_slice %95 {offsets = [0, 6], sizes = [8, 1], strides = [1, 1]} : vector<8x9xf32> to vector<8x1xf32>
    %129 = vector.broadcast %128 : vector<8x1xf32> to vector<8x352xf32>
    %130 = arith.mulf %127, %129 : vector<8x352xf32>
    %131 = arith.addf %126, %130 : vector<8x352xf32>
    %c0_85 = arith.constant 0 : index
    %c150_86 = arith.constant 150 : index
    %132 = vector.load %arg14[%c0_85, %c150_86] : memref<8x504xf32, #tpu.memory_space<vmem>>, vector<8x352xf32>
    %133 = vector.extract_strided_slice %95 {offsets = [0, 7], sizes = [8, 1], strides = [1, 1]} : vector<8x9xf32> to vector<8x1xf32>
    %134 = vector.broadcast %133 : vector<8x1xf32> to vector<8x352xf32>
    %135 = arith.mulf %132, %134 : vector<8x352xf32>
    %136 = arith.addf %131, %135 : vector<8x352xf32>
    %c0_87 = arith.constant 0 : index
    %c151_88 = arith.constant 151 : index
    %137 = vector.load %arg14[%c0_87, %c151_88] : memref<8x504xf32, #tpu.memory_space<vmem>>, vector<8x352xf32>
    %138 = vector.extract_strided_slice %95 {offsets = [0, 8], sizes = [8, 1], strides = [1, 1]} : vector<8x9xf32> to vector<8x1xf32>
    %139 = vector.broadcast %138 : vector<8x1xf32> to vector<8x352xf32>
    %140 = arith.mulf %137, %139 : vector<8x352xf32>
    %141 = arith.addf %136, %140 : vector<8x352xf32>
    %142 = tpu.concatenate %87, %141 in 0 : vector<8x352xf32>, vector<8x352xf32> -> vector<16x352xf32>
    %cst_89 = arith.constant 2.000000e+00 : f32
    %143 = vector.broadcast %cst_89 : f32 to vector<16x352xf32>
    %144 = arith.mulf %143, %21 : vector<16x352xf32>
    %145 = arith.addf %142, %144 : vector<16x352xf32>
    %146 = vector.broadcast %0 : vector<1x352xf32> to vector<16x352xf32>
    %147 = arith.mulf %145, %146 : vector<16x352xf32>
    %cst_90 = arith.constant dense<0.000000e+00> : vector<16xf32>
    %148 = vector.multi_reduction <add>, %147, %cst_90 [1] : vector<16x352xf32> to vector<16xf32>
    %149 = vector.shape_cast %148 : vector<16xf32> to vector<16x1xf32>
    %cst_91 = arith.constant 3.906250e-03 : f32
    %150 = vector.broadcast %cst_91 : f32 to vector<16x1xf32>
    %151 = arith.mulf %149, %150 : vector<16x1xf32>
    %cst_92 = arith.constant 0.000000e+00 : f32
    %152 = vector.broadcast %cst_92 : f32 to vector<1x352xf32>
    %153 = arith.cmpf ogt, %0, %152 : vector<1x352xf32>
    %cst_93 = arith.constant -1.000000e+30 : f32
    %154 = vector.shape_cast %153 : vector<1x352xi1> to vector<1x352xi1>
    %155 = vector.broadcast %154 : vector<1x352xi1> to vector<16x352xi1>
    %156 = vector.broadcast %cst_93 : f32 to vector<16x352xf32>
    %157 = arith.select %155, %145, %156 : vector<16x352xi1>, vector<16x352xf32>
    %cst_94 = arith.constant dense<0xFF800000> : vector<16xf32>
    %158 = vector.multi_reduction <maximumf>, %157, %cst_94 [1] : vector<16x352xf32> to vector<16xf32>
    %159 = vector.shape_cast %158 : vector<16xf32> to vector<16x1xf32>
    %c0_95 = arith.constant 0 : index
    %c0_96 = arith.constant 0 : index
    %160 = vector.load %arg7[%c0_95, %c0_96] : memref<2x16xf32, #tpu.memory_space<vmem>>, vector<2x16xf32>
    %cst_97 = arith.constant dense<0.000000e+00> : vector<2x1xf32>
    %161 = tpu.matmul %160, %151, %cst_97 {dimension_numbers = #tpu.dot_dimension_numbers<[1], [0], [0], [1], [0, 0, 1, 1], [], []>} : vector<2x16xf32>, vector<16x1xf32>, vector<2x1xf32> -> vector<2x1xf32>
    %cst_98 = arith.constant 0.000000e+00 : f32
    %162 = vector.broadcast %cst_98 : f32 to vector<2x1xf32>
    %163 = arith.maximumf %161, %162 : vector<2x1xf32>
    %c0_99 = arith.constant 0 : index
    %c0_100 = arith.constant 0 : index
    %164 = vector.load %arg8[%c0_99, %c0_100] : memref<16x2xf32, #tpu.memory_space<vmem>>, vector<16x2xf32>
    %cst_101 = arith.constant dense<0.000000e+00> : vector<16x1xf32>
    %165 = tpu.matmul %164, %163, %cst_101 {dimension_numbers = #tpu.dot_dimension_numbers<[1], [0], [0], [1], [0, 0, 1, 1], [], []>} : vector<16x2xf32>, vector<2x1xf32>, vector<16x1xf32> -> vector<16x1xf32>
    %c0_102 = arith.constant 0 : index
    %c0_103 = arith.constant 0 : index
    %166 = vector.load %arg7[%c0_102, %c0_103] : memref<2x16xf32, #tpu.memory_space<vmem>>, vector<2x16xf32>
    %cst_104 = arith.constant dense<0.000000e+00> : vector<2x1xf32>
    %167 = tpu.matmul %166, %159, %cst_104 {dimension_numbers = #tpu.dot_dimension_numbers<[1], [0], [0], [1], [0, 0, 1, 1], [], []>} : vector<2x16xf32>, vector<16x1xf32>, vector<2x1xf32> -> vector<2x1xf32>
    %cst_105 = arith.constant 0.000000e+00 : f32
    %168 = vector.broadcast %cst_105 : f32 to vector<2x1xf32>
    %169 = arith.maximumf %167, %168 : vector<2x1xf32>
    %c0_106 = arith.constant 0 : index
    %c0_107 = arith.constant 0 : index
    %170 = vector.load %arg8[%c0_106, %c0_107] : memref<16x2xf32, #tpu.memory_space<vmem>>, vector<16x2xf32>
    %cst_108 = arith.constant dense<0.000000e+00> : vector<16x1xf32>
    %171 = tpu.matmul %170, %169, %cst_108 {dimension_numbers = #tpu.dot_dimension_numbers<[1], [0], [0], [1], [0, 0, 1, 1], [], []>} : vector<16x2xf32>, vector<2x1xf32>, vector<16x1xf32> -> vector<16x1xf32>
    %172 = arith.addf %165, %171 : vector<16x1xf32>
    %173 = arith.negf %172 : vector<16x1xf32>
    %174 = math.exp %173 : vector<16x1xf32>
    %cst_109 = arith.constant 1.000000e+00 : f32
    %175 = vector.broadcast %cst_109 : f32 to vector<16x1xf32>
    %176 = arith.addf %175, %174 : vector<16x1xf32>
    %177 = arith.divf %175, %176 : vector<16x1xf32>
    %178 = vector.broadcast %177 : vector<16x1xf32> to vector<16x352xf32>
    %179 = arith.mulf %145, %178 : vector<16x352xf32>
    %cst_110 = arith.constant 0.000000e+00 : f32
    %180 = vector.broadcast %cst_110 : f32 to vector<2x70xf32>
    %c0_111 = arith.constant 0 : index
    %c58 = arith.constant 58 : index
    %181 = vector.load %arg15[%c0_111, %c58] : memref<2x550xf32, #tpu.memory_space<vmem>>, vector<2x70xf32>
    tpu.vector_store %arg15[%c0_111, %c58], %180 {strides = array<i32>} : memref<2x550xf32, #tpu.memory_space<vmem>>, vector<2x70xf32>,
    %cst_112 = arith.constant 0.000000e+00 : f32
    %182 = vector.broadcast %cst_112 : f32 to vector<2x70xf32>
    %c0_113 = arith.constant 0 : index
    %c480_114 = arith.constant 480 : index
    %183 = vector.load %arg15[%c0_113, %c480_114] : memref<2x550xf32, #tpu.memory_space<vmem>>, vector<2x70xf32>
    tpu.vector_store %arg15[%c0_113, %c480_114], %182 {strides = array<i32>} : memref<2x550xf32, #tpu.memory_space<vmem>>, vector<2x70xf32>,
    %cst_115 = arith.constant dense<0.000000e+00> : vector<352xf32>
    %184 = vector.multi_reduction <add>, %179, %cst_115 [0] : vector<16x352xf32> to vector<352xf32>
    %185 = vector.shape_cast %184 : vector<352xf32> to vector<1x352xf32>
    %cst_116 = arith.constant 1.600000e+01 : f32
    %186 = vector.broadcast %cst_116 : f32 to vector<1x352xf32>
    %187 = arith.divf %185, %186 : vector<1x352xf32>
    %188 = arith.mulf %187, %0 : vector<1x352xf32>
    %c0_117 = arith.constant 0 : index
    %c128_118 = arith.constant 128 : index
    %189 = vector.load %arg15[%c0_117, %c128_118] : memref<2x550xf32, #tpu.memory_space<vmem>>, vector<1x352xf32>
    tpu.vector_store %arg15[%c0_117, %c128_118], %188 {strides = array<i32>} : memref<2x550xf32, #tpu.memory_space<vmem>>, vector<1x352xf32>,
    %cst_119 = arith.constant dense<0xFF800000> : vector<352xf32>
    %190 = vector.multi_reduction <maximumf>, %179, %cst_119 [0] : vector<16x352xf32> to vector<352xf32>
    %191 = vector.shape_cast %190 : vector<352xf32> to vector<1x352xf32>
    %192 = arith.mulf %191, %0 : vector<1x352xf32>
    %c1 = arith.constant 1 : index
    %c128_120 = arith.constant 128 : index
    %193 = vector.load %arg15[%c1, %c128_120] : memref<2x550xf32, #tpu.memory_space<vmem>>, vector<1x352xf32>
    tpu.vector_store %arg15[%c1, %c128_120], %192 {strides = array<i32>} : memref<2x550xf32, #tpu.memory_space<vmem>>, vector<1x352xf32>,
    %c0_121 = arith.constant 0 : index
    %c0_122 = arith.constant 0 : index
    %194 = vector.load %arg9[%c0_121, %c0_122] : memref<2x49xf32, #tpu.memory_space<vmem>>, vector<2x49xf32>
    %cst_123 = arith.constant 0.000000e+00 : f32
    %195 = vector.broadcast %cst_123 : f32 to vector<2x352xf32>
    %c0_124 = arith.constant 0 : index
    %c59 = arith.constant 59 : index
    %196 = vector.load %arg15[%c0_124, %c59] : memref<2x550xf32, #tpu.memory_space<vmem>>, vector<2x352xf32>
    %197 = vector.extract_strided_slice %194 {offsets = [0, 0], sizes = [2, 1], strides = [1, 1]} : vector<2x49xf32> to vector<2x1xf32>
    %198 = vector.broadcast %197 : vector<2x1xf32> to vector<2x352xf32>
    %199 = arith.mulf %196, %198 : vector<2x352xf32>
    %200 = arith.addf %195, %199 : vector<2x352xf32>
    %c0_125 = arith.constant 0 : index
    %c60 = arith.constant 60 : index
    %201 = vector.load %arg15[%c0_125, %c60] : memref<2x550xf32, #tpu.memory_space<vmem>>, vector<2x352xf32>
    %202 = vector.extract_strided_slice %194 {offsets = [0, 1], sizes = [2, 1], strides = [1, 1]} : vector<2x49xf32> to vector<2x1xf32>
    %203 = vector.broadcast %202 : vector<2x1xf32> to vector<2x352xf32>
    %204 = arith.mulf %201, %203 : vector<2x352xf32>
    %205 = arith.addf %200, %204 : vector<2x352xf32>
    %c0_126 = arith.constant 0 : index
    %c61 = arith.constant 61 : index
    %206 = vector.load %arg15[%c0_126, %c61] : memref<2x550xf32, #tpu.memory_space<vmem>>, vector<2x352xf32>
    %207 = vector.extract_strided_slice %194 {offsets = [0, 2], sizes = [2, 1], strides = [1, 1]} : vector<2x49xf32> to vector<2x1xf32>
    %208 = vector.broadcast %207 : vector<2x1xf32> to vector<2x352xf32>
    %209 = arith.mulf %206, %208 : vector<2x352xf32>
    %210 = arith.addf %205, %209 : vector<2x352xf32>
    %c0_127 = arith.constant 0 : index
    %c62 = arith.constant 62 : index
    %211 = vector.load %arg15[%c0_127, %c62] : memref<2x550xf32, #tpu.memory_space<vmem>>, vector<2x352xf32>
    %212 = vector.extract_strided_slice %194 {offsets = [0, 3], sizes = [2, 1], strides = [1, 1]} : vector<2x49xf32> to vector<2x1xf32>
    %213 = vector.broadcast %212 : vector<2x1xf32> to vector<2x352xf32>
    %214 = arith.mulf %211, %213 : vector<2x352xf32>
    %215 = arith.addf %210, %214 : vector<2x352xf32>
    %c0_128 = arith.constant 0 : index
    %c63 = arith.constant 63 : index
    %216 = vector.load %arg15[%c0_128, %c63] : memref<2x550xf32, #tpu.memory_space<vmem>>, vector<2x352xf32>
    %217 = vector.extract_strided_slice %194 {offsets = [0, 4], sizes = [2, 1], strides = [1, 1]} : vector<2x49xf32> to vector<2x1xf32>
    %218 = vector.broadcast %217 : vector<2x1xf32> to vector<2x352xf32>
    %219 = arith.mulf %216, %218 : vector<2x352xf32>
    %220 = arith.addf %215, %219 : vector<2x352xf32>
    %c0_129 = arith.constant 0 : index
    %c64_130 = arith.constant 64 : index
    %221 = vector.load %arg15[%c0_129, %c64_130] : memref<2x550xf32, #tpu.memory_space<vmem>>, vector<2x352xf32>
    %222 = vector.extract_strided_slice %194 {offsets = [0, 5], sizes = [2, 1], strides = [1, 1]} : vector<2x49xf32> to vector<2x1xf32>
    %223 = vector.broadcast %222 : vector<2x1xf32> to vector<2x352xf32>
    %224 = arith.mulf %221, %223 : vector<2x352xf32>
    %225 = arith.addf %220, %224 : vector<2x352xf32>
    %c0_131 = arith.constant 0 : index
    %c65 = arith.constant 65 : index
    %226 = vector.load %arg15[%c0_131, %c65] : memref<2x550xf32, #tpu.memory_space<vmem>>, vector<2x352xf32>
    %227 = vector.extract_strided_slice %194 {offsets = [0, 6], sizes = [2, 1], strides = [1, 1]} : vector<2x49xf32> to vector<2x1xf32>
    %228 = vector.broadcast %227 : vector<2x1xf32> to vector<2x352xf32>
    %229 = arith.mulf %226, %228 : vector<2x352xf32>
    %230 = arith.addf %225, %229 : vector<2x352xf32>
    %c0_132 = arith.constant 0 : index
    %c81 = arith.constant 81 : index
    %231 = vector.load %arg15[%c0_132, %c81] : memref<2x550xf32, #tpu.memory_space<vmem>>, vector<2x352xf32>
    %232 = vector.extract_strided_slice %194 {offsets = [0, 7], sizes = [2, 1], strides = [1, 1]} : vector<2x49xf32> to vector<2x1xf32>
    %233 = vector.broadcast %232 : vector<2x1xf32> to vector<2x352xf32>
    %234 = arith.mulf %231, %233 : vector<2x352xf32>
    %235 = arith.addf %230, %234 : vector<2x352xf32>
    %c0_133 = arith.constant 0 : index
    %c82 = arith.constant 82 : index
    %236 = vector.load %arg15[%c0_133, %c82] : memref<2x550xf32, #tpu.memory_space<vmem>>, vector<2x352xf32>
    %237 = vector.extract_strided_slice %194 {offsets = [0, 8], sizes = [2, 1], strides = [1, 1]} : vector<2x49xf32> to vector<2x1xf32>
    %238 = vector.broadcast %237 : vector<2x1xf32> to vector<2x352xf32>
    %239 = arith.mulf %236, %238 : vector<2x352xf32>
    %240 = arith.addf %235, %239 : vector<2x352xf32>
    %c0_134 = arith.constant 0 : index
    %c83 = arith.constant 83 : index
    %241 = vector.load %arg15[%c0_134, %c83] : memref<2x550xf32, #tpu.memory_space<vmem>>, vector<2x352xf32>
    %242 = vector.extract_strided_slice %194 {offsets = [0, 9], sizes = [2, 1], strides = [1, 1]} : vector<2x49xf32> to vector<2x1xf32>
    %243 = vector.broadcast %242 : vector<2x1xf32> to vector<2x352xf32>
    %244 = arith.mulf %241, %243 : vector<2x352xf32>
    %245 = arith.addf %240, %244 : vector<2x352xf32>
    %c0_135 = arith.constant 0 : index
    %c84 = arith.constant 84 : index
    %246 = vector.load %arg15[%c0_135, %c84] : memref<2x550xf32, #tpu.memory_space<vmem>>, vector<2x352xf32>
    %247 = vector.extract_strided_slice %194 {offsets = [0, 10], sizes = [2, 1], strides = [1, 1]} : vector<2x49xf32> to vector<2x1xf32>
    %248 = vector.broadcast %247 : vector<2x1xf32> to vector<2x352xf32>
    %249 = arith.mulf %246, %248 : vector<2x352xf32>
    %250 = arith.addf %245, %249 : vector<2x352xf32>
    %c0_136 = arith.constant 0 : index
    %c85 = arith.constant 85 : index
    %251 = vector.load %arg15[%c0_136, %c85] : memref<2x550xf32, #tpu.memory_space<vmem>>, vector<2x352xf32>
    %252 = vector.extract_strided_slice %194 {offsets = [0, 11], sizes = [2, 1], strides = [1, 1]} : vector<2x49xf32> to vector<2x1xf32>
    %253 = vector.broadcast %252 : vector<2x1xf32> to vector<2x352xf32>
    %254 = arith.mulf %251, %253 : vector<2x352xf32>
    %255 = arith.addf %250, %254 : vector<2x352xf32>
    %c0_137 = arith.constant 0 : index
    %c86 = arith.constant 86 : index
    %256 = vector.load %arg15[%c0_137, %c86] : memref<2x550xf32, #tpu.memory_space<vmem>>, vector<2x352xf32>
    %257 = vector.extract_strided_slice %194 {offsets = [0, 12], sizes = [2, 1], strides = [1, 1]} : vector<2x49xf32> to vector<2x1xf32>
    %258 = vector.broadcast %257 : vector<2x1xf32> to vector<2x352xf32>
    %259 = arith.mulf %256, %258 : vector<2x352xf32>
    %260 = arith.addf %255, %259 : vector<2x352xf32>
    %c0_138 = arith.constant 0 : index
    %c87 = arith.constant 87 : index
    %261 = vector.load %arg15[%c0_138, %c87] : memref<2x550xf32, #tpu.memory_space<vmem>>, vector<2x352xf32>
    %262 = vector.extract_strided_slice %194 {offsets = [0, 13], sizes = [2, 1], strides = [1, 1]} : vector<2x49xf32> to vector<2x1xf32>
    %263 = vector.broadcast %262 : vector<2x1xf32> to vector<2x352xf32>
    %264 = arith.mulf %261, %263 : vector<2x352xf32>
    %265 = arith.addf %260, %264 : vector<2x352xf32>
    %c0_139 = arith.constant 0 : index
    %c103 = arith.constant 103 : index
    %266 = vector.load %arg15[%c0_139, %c103] : memref<2x550xf32, #tpu.memory_space<vmem>>, vector<2x352xf32>
    %267 = vector.extract_strided_slice %194 {offsets = [0, 14], sizes = [2, 1], strides = [1, 1]} : vector<2x49xf32> to vector<2x1xf32>
    %268 = vector.broadcast %267 : vector<2x1xf32> to vector<2x352xf32>
    %269 = arith.mulf %266, %268 : vector<2x352xf32>
    %270 = arith.addf %265, %269 : vector<2x352xf32>
    %c0_140 = arith.constant 0 : index
    %c104_141 = arith.constant 104 : index
    %271 = vector.load %arg15[%c0_140, %c104_141] : memref<2x550xf32, #tpu.memory_space<vmem>>, vector<2x352xf32>
    %272 = vector.extract_strided_slice %194 {offsets = [0, 15], sizes = [2, 1], strides = [1, 1]} : vector<2x49xf32> to vector<2x1xf32>
    %273 = vector.broadcast %272 : vector<2x1xf32> to vector<2x352xf32>
    %274 = arith.mulf %271, %273 : vector<2x352xf32>
    %275 = arith.addf %270, %274 : vector<2x352xf32>
    %c0_142 = arith.constant 0 : index
    %c105_143 = arith.constant 105 : index
    %276 = vector.load %arg15[%c0_142, %c105_143] : memref<2x550xf32, #tpu.memory_space<vmem>>, vector<2x352xf32>
    %277 = vector.extract_strided_slice %194 {offsets = [0, 16], sizes = [2, 1], strides = [1, 1]} : vector<2x49xf32> to vector<2x1xf32>
    %278 = vector.broadcast %277 : vector<2x1xf32> to vector<2x352xf32>
    %279 = arith.mulf %276, %278 : vector<2x352xf32>
    %280 = arith.addf %275, %279 : vector<2x352xf32>
    %c0_144 = arith.constant 0 : index
    %c106_145 = arith.constant 106 : index
    %281 = vector.load %arg15[%c0_144, %c106_145] : memref<2x550xf32, #tpu.memory_space<vmem>>, vector<2x352xf32>
    %282 = vector.extract_strided_slice %194 {offsets = [0, 17], sizes = [2, 1], strides = [1, 1]} : vector<2x49xf32> to vector<2x1xf32>
    %283 = vector.broadcast %282 : vector<2x1xf32> to vector<2x352xf32>
    %284 = arith.mulf %281, %283 : vector<2x352xf32>
    %285 = arith.addf %280, %284 : vector<2x352xf32>
    %c0_146 = arith.constant 0 : index
    %c107_147 = arith.constant 107 : index
    %286 = vector.load %arg15[%c0_146, %c107_147] : memref<2x550xf32, #tpu.memory_space<vmem>>, vector<2x352xf32>
    %287 = vector.extract_strided_slice %194 {offsets = [0, 18], sizes = [2, 1], strides = [1, 1]} : vector<2x49xf32> to vector<2x1xf32>
    %288 = vector.broadcast %287 : vector<2x1xf32> to vector<2x352xf32>
    %289 = arith.mulf %286, %288 : vector<2x352xf32>
    %290 = arith.addf %285, %289 : vector<2x352xf32>
    %c0_148 = arith.constant 0 : index
    %c108 = arith.constant 108 : index
    %291 = vector.load %arg15[%c0_148, %c108] : memref<2x550xf32, #tpu.memory_space<vmem>>, vector<2x352xf32>
    %292 = vector.extract_strided_slice %194 {offsets = [0, 19], sizes = [2, 1], strides = [1, 1]} : vector<2x49xf32> to vector<2x1xf32>
    %293 = vector.broadcast %292 : vector<2x1xf32> to vector<2x352xf32>
    %294 = arith.mulf %291, %293 : vector<2x352xf32>
    %295 = arith.addf %290, %294 : vector<2x352xf32>
    %c0_149 = arith.constant 0 : index
    %c109 = arith.constant 109 : index
    %296 = vector.load %arg15[%c0_149, %c109] : memref<2x550xf32, #tpu.memory_space<vmem>>, vector<2x352xf32>
    %297 = vector.extract_strided_slice %194 {offsets = [0, 20], sizes = [2, 1], strides = [1, 1]} : vector<2x49xf32> to vector<2x1xf32>
    %298 = vector.broadcast %297 : vector<2x1xf32> to vector<2x352xf32>
    %299 = arith.mulf %296, %298 : vector<2x352xf32>
    %300 = arith.addf %295, %299 : vector<2x352xf32>
    %c0_150 = arith.constant 0 : index
    %c125 = arith.constant 125 : index
    %301 = vector.load %arg15[%c0_150, %c125] : memref<2x550xf32, #tpu.memory_space<vmem>>, vector<2x352xf32>
    %302 = vector.extract_strided_slice %194 {offsets = [0, 21], sizes = [2, 1], strides = [1, 1]} : vector<2x49xf32> to vector<2x1xf32>
    %303 = vector.broadcast %302 : vector<2x1xf32> to vector<2x352xf32>
    %304 = arith.mulf %301, %303 : vector<2x352xf32>
    %305 = arith.addf %300, %304 : vector<2x352xf32>
    %c0_151 = arith.constant 0 : index
    %c126 = arith.constant 126 : index
    %306 = vector.load %arg15[%c0_151, %c126] : memref<2x550xf32, #tpu.memory_space<vmem>>, vector<2x352xf32>
    %307 = vector.extract_strided_slice %194 {offsets = [0, 22], sizes = [2, 1], strides = [1, 1]} : vector<2x49xf32> to vector<2x1xf32>
    %308 = vector.broadcast %307 : vector<2x1xf32> to vector<2x352xf32>
    %309 = arith.mulf %306, %308 : vector<2x352xf32>
    %310 = arith.addf %305, %309 : vector<2x352xf32>
    %c0_152 = arith.constant 0 : index
    %c127_153 = arith.constant 127 : index
    %311 = vector.load %arg15[%c0_152, %c127_153] : memref<2x550xf32, #tpu.memory_space<vmem>>, vector<2x352xf32>
    %312 = vector.extract_strided_slice %194 {offsets = [0, 23], sizes = [2, 1], strides = [1, 1]} : vector<2x49xf32> to vector<2x1xf32>
    %313 = vector.broadcast %312 : vector<2x1xf32> to vector<2x352xf32>
    %314 = arith.mulf %311, %313 : vector<2x352xf32>
    %315 = arith.addf %310, %314 : vector<2x352xf32>
    %c0_154 = arith.constant 0 : index
    %c128_155 = arith.constant 128 : index
    %316 = vector.load %arg15[%c0_154, %c128_155] : memref<2x550xf32, #tpu.memory_space<vmem>>, vector<2x352xf32>
    %317 = vector.extract_strided_slice %194 {offsets = [0, 24], sizes = [2, 1], strides = [1, 1]} : vector<2x49xf32> to vector<2x1xf32>
    %318 = vector.broadcast %317 : vector<2x1xf32> to vector<2x352xf32>
    %319 = arith.mulf %316, %318 : vector<2x352xf32>
    %320 = arith.addf %315, %319 : vector<2x352xf32>
    %c0_156 = arith.constant 0 : index
    %c129_157 = arith.constant 129 : index
    %321 = vector.load %arg15[%c0_156, %c129_157] : memref<2x550xf32, #tpu.memory_space<vmem>>, vector<2x352xf32>
    %322 = vector.extract_strided_slice %194 {offsets = [0, 25], sizes = [2, 1], strides = [1, 1]} : vector<2x49xf32> to vector<2x1xf32>
    %323 = vector.broadcast %322 : vector<2x1xf32> to vector<2x352xf32>
    %324 = arith.mulf %321, %323 : vector<2x352xf32>
    %325 = arith.addf %320, %324 : vector<2x352xf32>
    %c0_158 = arith.constant 0 : index
    %c130 = arith.constant 130 : index
    %326 = vector.load %arg15[%c0_158, %c130] : memref<2x550xf32, #tpu.memory_space<vmem>>, vector<2x352xf32>
    %327 = vector.extract_strided_slice %194 {offsets = [0, 26], sizes = [2, 1], strides = [1, 1]} : vector<2x49xf32> to vector<2x1xf32>
    %328 = vector.broadcast %327 : vector<2x1xf32> to vector<2x352xf32>
    %329 = arith.mulf %326, %328 : vector<2x352xf32>
    %330 = arith.addf %325, %329 : vector<2x352xf32>
    %c0_159 = arith.constant 0 : index
    %c131 = arith.constant 131 : index
    %331 = vector.load %arg15[%c0_159, %c131] : memref<2x550xf32, #tpu.memory_space<vmem>>, vector<2x352xf32>
    %332 = vector.extract_strided_slice %194 {offsets = [0, 27], sizes = [2, 1], strides = [1, 1]} : vector<2x49xf32> to vector<2x1xf32>
    %333 = vector.broadcast %332 : vector<2x1xf32> to vector<2x352xf32>
    %334 = arith.mulf %331, %333 : vector<2x352xf32>
    %335 = arith.addf %330, %334 : vector<2x352xf32>
    %c0_160 = arith.constant 0 : index
    %c147 = arith.constant 147 : index
    %336 = vector.load %arg15[%c0_160, %c147] : memref<2x550xf32, #tpu.memory_space<vmem>>, vector<2x352xf32>
    %337 = vector.extract_strided_slice %194 {offsets = [0, 28], sizes = [2, 1], strides = [1, 1]} : vector<2x49xf32> to vector<2x1xf32>
    %338 = vector.broadcast %337 : vector<2x1xf32> to vector<2x352xf32>
    %339 = arith.mulf %336, %338 : vector<2x352xf32>
    %340 = arith.addf %335, %339 : vector<2x352xf32>
    %c0_161 = arith.constant 0 : index
    %c148 = arith.constant 148 : index
    %341 = vector.load %arg15[%c0_161, %c148] : memref<2x550xf32, #tpu.memory_space<vmem>>, vector<2x352xf32>
    %342 = vector.extract_strided_slice %194 {offsets = [0, 29], sizes = [2, 1], strides = [1, 1]} : vector<2x49xf32> to vector<2x1xf32>
    %343 = vector.broadcast %342 : vector<2x1xf32> to vector<2x352xf32>
    %344 = arith.mulf %341, %343 : vector<2x352xf32>
    %345 = arith.addf %340, %344 : vector<2x352xf32>
    %c0_162 = arith.constant 0 : index
    %c149_163 = arith.constant 149 : index
    %346 = vector.load %arg15[%c0_162, %c149_163] : memref<2x550xf32, #tpu.memory_space<vmem>>, vector<2x352xf32>
    %347 = vector.extract_strided_slice %194 {offsets = [0, 30], sizes = [2, 1], strides = [1, 1]} : vector<2x49xf32> to vector<2x1xf32>
    %348 = vector.broadcast %347 : vector<2x1xf32> to vector<2x352xf32>
    %349 = arith.mulf %346, %348 : vector<2x352xf32>
    %350 = arith.addf %345, %349 : vector<2x352xf32>
    %c0_164 = arith.constant 0 : index
    %c150_165 = arith.constant 150 : index
    %351 = vector.load %arg15[%c0_164, %c150_165] : memref<2x550xf32, #tpu.memory_space<vmem>>, vector<2x352xf32>
    %352 = vector.extract_strided_slice %194 {offsets = [0, 31], sizes = [2, 1], strides = [1, 1]} : vector<2x49xf32> to vector<2x1xf32>
    %353 = vector.broadcast %352 : vector<2x1xf32> to vector<2x352xf32>
    %354 = arith.mulf %351, %353 : vector<2x352xf32>
    %355 = arith.addf %350, %354 : vector<2x352xf32>
    %c0_166 = arith.constant 0 : index
    %c151_167 = arith.constant 151 : index
    %356 = vector.load %arg15[%c0_166, %c151_167] : memref<2x550xf32, #tpu.memory_space<vmem>>, vector<2x352xf32>
    %357 = vector.extract_strided_slice %194 {offsets = [0, 32], sizes = [2, 1], strides = [1, 1]} : vector<2x49xf32> to vector<2x1xf32>
    %358 = vector.broadcast %357 : vector<2x1xf32> to vector<2x352xf32>
    %359 = arith.mulf %356, %358 : vector<2x352xf32>
    %360 = arith.addf %355, %359 : vector<2x352xf32>
    %c0_168 = arith.constant 0 : index
    %c152 = arith.constant 152 : index
    %361 = vector.load %arg15[%c0_168, %c152] : memref<2x550xf32, #tpu.memory_space<vmem>>, vector<2x352xf32>
    %362 = vector.extract_strided_slice %194 {offsets = [0, 33], sizes = [2, 1], strides = [1, 1]} : vector<2x49xf32> to vector<2x1xf32>
    %363 = vector.broadcast %362 : vector<2x1xf32> to vector<2x352xf32>
    %364 = arith.mulf %361, %363 : vector<2x352xf32>
    %365 = arith.addf %360, %364 : vector<2x352xf32>
    %c0_169 = arith.constant 0 : index
    %c153 = arith.constant 153 : index
    %366 = vector.load %arg15[%c0_169, %c153] : memref<2x550xf32, #tpu.memory_space<vmem>>, vector<2x352xf32>
    %367 = vector.extract_strided_slice %194 {offsets = [0, 34], sizes = [2, 1], strides = [1, 1]} : vector<2x49xf32> to vector<2x1xf32>
    %368 = vector.broadcast %367 : vector<2x1xf32> to vector<2x352xf32>
    %369 = arith.mulf %366, %368 : vector<2x352xf32>
    %370 = arith.addf %365, %369 : vector<2x352xf32>
    %c0_170 = arith.constant 0 : index
    %c169 = arith.constant 169 : index
    %371 = vector.load %arg15[%c0_170, %c169] : memref<2x550xf32, #tpu.memory_space<vmem>>, vector<2x352xf32>
    %372 = vector.extract_strided_slice %194 {offsets = [0, 35], sizes = [2, 1], strides = [1, 1]} : vector<2x49xf32> to vector<2x1xf32>
    %373 = vector.broadcast %372 : vector<2x1xf32> to vector<2x352xf32>
    %374 = arith.mulf %371, %373 : vector<2x352xf32>
    %375 = arith.addf %370, %374 : vector<2x352xf32>
    %c0_171 = arith.constant 0 : index
    %c170 = arith.constant 170 : index
    %376 = vector.load %arg15[%c0_171, %c170] : memref<2x550xf32, #tpu.memory_space<vmem>>, vector<2x352xf32>
    %377 = vector.extract_strided_slice %194 {offsets = [0, 36], sizes = [2, 1], strides = [1, 1]} : vector<2x49xf32> to vector<2x1xf32>
    %378 = vector.broadcast %377 : vector<2x1xf32> to vector<2x352xf32>
    %379 = arith.mulf %376, %378 : vector<2x352xf32>
    %380 = arith.addf %375, %379 : vector<2x352xf32>
    %c0_172 = arith.constant 0 : index
    %c171 = arith.constant 171 : index
    %381 = vector.load %arg15[%c0_172, %c171] : memref<2x550xf32, #tpu.memory_space<vmem>>, vector<2x352xf32>
    %382 = vector.extract_strided_slice %194 {offsets = [0, 37], sizes = [2, 1], strides = [1, 1]} : vector<2x49xf32> to vector<2x1xf32>
    %383 = vector.broadcast %382 : vector<2x1xf32> to vector<2x352xf32>
    %384 = arith.mulf %381, %383 : vector<2x352xf32>
    %385 = arith.addf %380, %384 : vector<2x352xf32>
    %c0_173 = arith.constant 0 : index
    %c172 = arith.constant 172 : index
    %386 = vector.load %arg15[%c0_173, %c172] : memref<2x550xf32, #tpu.memory_space<vmem>>, vector<2x352xf32>
    %387 = vector.extract_strided_slice %194 {offsets = [0, 38], sizes = [2, 1], strides = [1, 1]} : vector<2x49xf32> to vector<2x1xf32>
    %388 = vector.broadcast %387 : vector<2x1xf32> to vector<2x352xf32>
    %389 = arith.mulf %386, %388 : vector<2x352xf32>
    %390 = arith.addf %385, %389 : vector<2x352xf32>
    %c0_174 = arith.constant 0 : index
    %c173 = arith.constant 173 : index
    %391 = vector.load %arg15[%c0_174, %c173] : memref<2x550xf32, #tpu.memory_space<vmem>>, vector<2x352xf32>
    %392 = vector.extract_strided_slice %194 {offsets = [0, 39], sizes = [2, 1], strides = [1, 1]} : vector<2x49xf32> to vector<2x1xf32>
    %393 = vector.broadcast %392 : vector<2x1xf32> to vector<2x352xf32>
    %394 = arith.mulf %391, %393 : vector<2x352xf32>
    %395 = arith.addf %390, %394 : vector<2x352xf32>
    %c0_175 = arith.constant 0 : index
    %c174 = arith.constant 174 : index
    %396 = vector.load %arg15[%c0_175, %c174] : memref<2x550xf32, #tpu.memory_space<vmem>>, vector<2x352xf32>
    %397 = vector.extract_strided_slice %194 {offsets = [0, 40], sizes = [2, 1], strides = [1, 1]} : vector<2x49xf32> to vector<2x1xf32>
    %398 = vector.broadcast %397 : vector<2x1xf32> to vector<2x352xf32>
    %399 = arith.mulf %396, %398 : vector<2x352xf32>
    %400 = arith.addf %395, %399 : vector<2x352xf32>
    %c0_176 = arith.constant 0 : index
    %c175 = arith.constant 175 : index
    %401 = vector.load %arg15[%c0_176, %c175] : memref<2x550xf32, #tpu.memory_space<vmem>>, vector<2x352xf32>
    %402 = vector.extract_strided_slice %194 {offsets = [0, 41], sizes = [2, 1], strides = [1, 1]} : vector<2x49xf32> to vector<2x1xf32>
    %403 = vector.broadcast %402 : vector<2x1xf32> to vector<2x352xf32>
    %404 = arith.mulf %401, %403 : vector<2x352xf32>
    %405 = arith.addf %400, %404 : vector<2x352xf32>
    %c0_177 = arith.constant 0 : index
    %c191 = arith.constant 191 : index
    %406 = vector.load %arg15[%c0_177, %c191] : memref<2x550xf32, #tpu.memory_space<vmem>>, vector<2x352xf32>
    %407 = vector.extract_strided_slice %194 {offsets = [0, 42], sizes = [2, 1], strides = [1, 1]} : vector<2x49xf32> to vector<2x1xf32>
    %408 = vector.broadcast %407 : vector<2x1xf32> to vector<2x352xf32>
    %409 = arith.mulf %406, %408 : vector<2x352xf32>
    %410 = arith.addf %405, %409 : vector<2x352xf32>
    %c0_178 = arith.constant 0 : index
    %c192 = arith.constant 192 : index
    %411 = vector.load %arg15[%c0_178, %c192] : memref<2x550xf32, #tpu.memory_space<vmem>>, vector<2x352xf32>
    %412 = vector.extract_strided_slice %194 {offsets = [0, 43], sizes = [2, 1], strides = [1, 1]} : vector<2x49xf32> to vector<2x1xf32>
    %413 = vector.broadcast %412 : vector<2x1xf32> to vector<2x352xf32>
    %414 = arith.mulf %411, %413 : vector<2x352xf32>
    %415 = arith.addf %410, %414 : vector<2x352xf32>
    %c0_179 = arith.constant 0 : index
    %c193 = arith.constant 193 : index
    %416 = vector.load %arg15[%c0_179, %c193] : memref<2x550xf32, #tpu.memory_space<vmem>>, vector<2x352xf32>
    %417 = vector.extract_strided_slice %194 {offsets = [0, 44], sizes = [2, 1], strides = [1, 1]} : vector<2x49xf32> to vector<2x1xf32>
    %418 = vector.broadcast %417 : vector<2x1xf32> to vector<2x352xf32>
    %419 = arith.mulf %416, %418 : vector<2x352xf32>
    %420 = arith.addf %415, %419 : vector<2x352xf32>
    %c0_180 = arith.constant 0 : index
    %c194 = arith.constant 194 : index
    %421 = vector.load %arg15[%c0_180, %c194] : memref<2x550xf32, #tpu.memory_space<vmem>>, vector<2x352xf32>
    %422 = vector.extract_strided_slice %194 {offsets = [0, 45], sizes = [2, 1], strides = [1, 1]} : vector<2x49xf32> to vector<2x1xf32>
    %423 = vector.broadcast %422 : vector<2x1xf32> to vector<2x352xf32>
    %424 = arith.mulf %421, %423 : vector<2x352xf32>
    %425 = arith.addf %420, %424 : vector<2x352xf32>
    %c0_181 = arith.constant 0 : index
    %c195 = arith.constant 195 : index
    %426 = vector.load %arg15[%c0_181, %c195] : memref<2x550xf32, #tpu.memory_space<vmem>>, vector<2x352xf32>
    %427 = vector.extract_strided_slice %194 {offsets = [0, 46], sizes = [2, 1], strides = [1, 1]} : vector<2x49xf32> to vector<2x1xf32>
    %428 = vector.broadcast %427 : vector<2x1xf32> to vector<2x352xf32>
    %429 = arith.mulf %426, %428 : vector<2x352xf32>
    %430 = arith.addf %425, %429 : vector<2x352xf32>
    %c0_182 = arith.constant 0 : index
    %c196 = arith.constant 196 : index
    %431 = vector.load %arg15[%c0_182, %c196] : memref<2x550xf32, #tpu.memory_space<vmem>>, vector<2x352xf32>
    %432 = vector.extract_strided_slice %194 {offsets = [0, 47], sizes = [2, 1], strides = [1, 1]} : vector<2x49xf32> to vector<2x1xf32>
    %433 = vector.broadcast %432 : vector<2x1xf32> to vector<2x352xf32>
    %434 = arith.mulf %431, %433 : vector<2x352xf32>
    %435 = arith.addf %430, %434 : vector<2x352xf32>
    %c0_183 = arith.constant 0 : index
    %c197 = arith.constant 197 : index
    %436 = vector.load %arg15[%c0_183, %c197] : memref<2x550xf32, #tpu.memory_space<vmem>>, vector<2x352xf32>
    %437 = vector.extract_strided_slice %194 {offsets = [0, 48], sizes = [2, 1], strides = [1, 1]} : vector<2x49xf32> to vector<2x1xf32>
    %438 = vector.broadcast %437 : vector<2x1xf32> to vector<2x352xf32>
    %439 = arith.mulf %436, %438 : vector<2x352xf32>
    %440 = arith.addf %435, %439 : vector<2x352xf32>
    %cst_184 = arith.constant dense<0.000000e+00> : vector<352xf32>
    %441 = vector.multi_reduction <add>, %440, %cst_184 [0] : vector<2x352xf32> to vector<352xf32>
    %442 = vector.shape_cast %441 : vector<352xf32> to vector<1x352xf32>
    %443 = arith.negf %442 : vector<1x352xf32>
    %444 = math.exp %443 : vector<1x352xf32>
    %cst_185 = arith.constant 1.000000e+00 : f32
    %445 = vector.broadcast %cst_185 : f32 to vector<1x352xf32>
    %446 = arith.addf %445, %444 : vector<1x352xf32>
    %447 = arith.divf %445, %446 : vector<1x352xf32>
    %448 = vector.broadcast %447 : vector<1x352xf32> to vector<16x352xf32>
    %449 = arith.mulf %179, %448 : vector<16x352xf32>
    %cst_186 = arith.constant 0.000000e+00 : f32
    %450 = vector.broadcast %cst_186 : f32 to vector<16x352xf32>
    %451 = arith.maximumf %449, %450 : vector<16x352xf32>
    %452 = vector.extract_strided_slice %451 {offsets = [0, 0], sizes = [16, 351], strides = [1, 1]} : vector<16x352xf32> to vector<16x351xf32>
    %453 = vector.extract_strided_slice %451 {offsets = [0, 1], sizes = [16, 351], strides = [1, 1]} : vector<16x352xf32> to vector<16x351xf32>
    %454 = arith.maximumf %452, %453 : vector<16x351xf32>
    %455 = vector.extract_strided_slice %454 {offsets = [0, 0], sizes = [16, 329], strides = [1, 1]} : vector<16x351xf32> to vector<16x329xf32>
    %456 = vector.extract_strided_slice %454 {offsets = [0, 22], sizes = [16, 329], strides = [1, 1]} : vector<16x351xf32> to vector<16x329xf32>
    %457 = arith.maximumf %455, %456 : vector<16x329xf32>
    %c0_187 = arith.constant 0 : index
    %c0_188 = arith.constant 0 : index
    %458 = vector.load %arg11[%c0_187, %c0_188] : memref<329x64xf32, #tpu.memory_space<vmem>>, vector<329x64xf32>
    %cst_189 = arith.constant dense<0.000000e+00> : vector<16x64xf32>
    %459 = tpu.matmul %457, %458, %cst_189 {dimension_numbers = #tpu.dot_dimension_numbers<[1], [0], [0], [1], [0, 0, 1, 1], [], []>} : vector<16x329xf32>, vector<329x64xf32>, vector<16x64xf32> -> vector<16x64xf32>
    %c0_190 = arith.constant 0 : index
    %c0_191 = arith.constant 0 : index
    %c0_192 = arith.constant 0 : index
    %460 = vector.load %arg12[%c0_190, %c0_191, %c0_192] : memref<1x16x64xf32, #tpu.memory_space<vmem>>, vector<1x16x64xf32>
    %461 = vector.shape_cast %460 : vector<1x16x64xf32> to vector<16x64xf32>
    %462 = vector.shape_cast %459 : vector<16x64xf32> to vector<1x16x64xf32>
    tpu.vector_store %arg12[%c0_190, %c0_191, %c0_192], %462 {strides = array<i32>} : memref<1x16x64xf32, #tpu.memory_space<vmem>>, vector<1x16x64xf32>,
    return
  }
  func.func @transform_0(%arg0: i32) -> (i32, i32, i32) {
    %c0_i32 = arith.constant 0 : i32
    %c0_i32_0 = arith.constant 0 : i32
    %c0_i32_1 = arith.constant 0 : i32
    return %arg0, %c0_i32, %c0_i32_0 : i32, i32, i32
  }
  func.func @transform_1(%arg0: i32) -> (i32, i32) {
    %c0_i32 = arith.constant 0 : i32
    %c0_i32_0 = arith.constant 0 : i32
    %c0_i32_1 = arith.constant 0 : i32
    return %c0_i32, %c0_i32_0 : i32, i32
  }
  func.func @transform_2(%arg0: i32) -> (i32, i32) {
    %c0_i32 = arith.constant 0 : i32
    %c0_i32_0 = arith.constant 0 : i32
    %c0_i32_1 = arith.constant 0 : i32
    return %c0_i32, %c0_i32_0 : i32, i32
  }
  func.func @transform_3(%arg0: i32) -> (i32, i32) {
    %c0_i32 = arith.constant 0 : i32
    %c0_i32_0 = arith.constant 0 : i32
    %c0_i32_1 = arith.constant 0 : i32
    return %c0_i32, %c0_i32_0 : i32, i32
  }
  func.func @transform_4(%arg0: i32) -> (i32, i32) {
    %c0_i32 = arith.constant 0 : i32
    %c0_i32_0 = arith.constant 0 : i32
    %c0_i32_1 = arith.constant 0 : i32
    return %c0_i32, %c0_i32_0 : i32, i32
  }
  func.func @transform_5(%arg0: i32) -> (i32, i32) {
    %c0_i32 = arith.constant 0 : i32
    %c0_i32_0 = arith.constant 0 : i32
    %c0_i32_1 = arith.constant 0 : i32
    return %c0_i32, %c0_i32_0 : i32, i32
  }
  func.func @transform_6(%arg0: i32) -> (i32, i32) {
    %c0_i32 = arith.constant 0 : i32
    %c0_i32_0 = arith.constant 0 : i32
    %c0_i32_1 = arith.constant 0 : i32
    return %c0_i32, %c0_i32_0 : i32, i32
  }
  func.func @transform_7(%arg0: i32) -> (i32, i32) {
    %c0_i32 = arith.constant 0 : i32
    %c0_i32_0 = arith.constant 0 : i32
    %c0_i32_1 = arith.constant 0 : i32
    return %c0_i32, %c0_i32_0 : i32, i32
  }
  func.func @transform_8(%arg0: i32) -> (i32, i32) {
    %c0_i32 = arith.constant 0 : i32
    %c0_i32_0 = arith.constant 0 : i32
    %c0_i32_1 = arith.constant 0 : i32
    return %c0_i32, %c0_i32_0 : i32, i32
  }
  func.func @transform_9(%arg0: i32) -> (i32, i32) {
    %c0_i32 = arith.constant 0 : i32
    %c0_i32_0 = arith.constant 0 : i32
    %c0_i32_1 = arith.constant 0 : i32
    return %c0_i32, %c0_i32_0 : i32, i32
  }
  func.func @transform_10(%arg0: i32) -> (i32, i32) {
    %c0_i32 = arith.constant 0 : i32
    %c0_i32_0 = arith.constant 0 : i32
    %c0_i32_1 = arith.constant 0 : i32
    return %c0_i32, %c0_i32_0 : i32, i32
  }
  func.func @transform_11(%arg0: i32) -> (i32, i32, i32) {
    %c0_i32 = arith.constant 0 : i32
    %c0_i32_0 = arith.constant 0 : i32
    %c0_i32_1 = arith.constant 0 : i32
    return %arg0, %c0_i32, %c0_i32_0 : i32, i32, i32
  }
}

</mosaic_0001>

<llo_original>
// kernel: conv_block_forward.1
$region0: #{conv_block_forward.1}
  #allocation0 [shape = 'u32[]', space=smem, size = 0x4, offset = 0x4, fixed_abs, tag = 'smem constant byte address 0x4 - core index']
  #allocation1 [shape = 'u32[144,128]{1,0:T(1,128)}', space=vmem, size = 0x12000, scoped, tag = 'internal scratch']
  #allocation2 [shape = 'f32[64,504]{1,0:T(8,128)}', space=vmem, size = 0x20000, scoped, tag = 'scratch operand']
  #allocation3 [shape = 'f32[8,504]{1,0:T(8,128)}', space=vmem, size = 0x4000, scoped, tag = 'scratch operand']
  #allocation4 [shape = 'f32[2,550]{1,0:T(2,128)}', space=vmem, size = 0x1400, scoped, tag = 'scratch operand']
  %s0 = inlined_call_operand.vmem [shape: f32[2,8,504], index: 0, kind: input, shape index: {}]
  %s1 = inlined_call_operand.vmem [shape: f32[16,72], index: 1, kind: input, shape index: {}]
  %s2 = inlined_call_operand.vmem [shape: f32[64,16], index: 2, kind: input, shape index: {}]
  %s3 = inlined_call_operand.vmem [shape: f32[64,9], index: 3, kind: input, shape index: {}]
  %s4 = inlined_call_operand.vmem [shape: f32[8,128], index: 4, kind: input, shape index: {}]
  %s5 = inlined_call_operand.vmem [shape: f32[8,9], index: 5, kind: input, shape index: {}]
  %s6 = inlined_call_operand.vmem [shape: f32[2,16], index: 6, kind: input, shape index: {}]
  %s7 = inlined_call_operand.vmem [shape: f32[16,2], index: 7, kind: input, shape index: {}]
  %s8 = inlined_call_operand.vmem [shape: f32[2,49], index: 8, kind: input, shape index: {}]
  %s9 = inlined_call_operand.vmem [shape: f32[1,352], index: 9, kind: input, shape index: {}]
  %s10 = inlined_call_operand.vmem [shape: f32[329,64], index: 10, kind: input, shape index: {}]
  %s11 = inlined_call_operand.vmem [shape: f32[2,16,64], index: 11, kind: output, shape index: {}]
  %s12 = sld [smem:[#allocation0]]
  $region77: #{conv_block_forward.1} parent=0
    _
  %s14 = ssub.s32 1, %s12
  %s15 = scalar_select 0, %s14, %s12
  loop: start=0, step=1, limit=4
  $region2: #{conv_block_forward.1} parent=0 // loop_pre_header
    _
  $region3: #{conv_block_forward.1} parent=0 // loop_header
    %s17 = sphi 0, %s21
    %p18 = scmp.ge.s32.totalorder %s17, 4
    %s27 = sphi 0, %s29
    %s30 = sphi 0, %s27
    %s31 = sphi 0, %s30
    %s47 = sphi 0, %s31
    %s51 = sphi 0, %s51
    %s53 = sphi 0, %s51
    %s54 = sphi 0, %s53
    %s68 = sphi 0, %s54
    %s72 = sphi 0, %s72
    %s74 = sphi 0, %s72
    %s75 = sphi 0, %s74
    %s89 = sphi 0, %s75
    %s93 = sphi 0, %s93
    %s95 = sphi 0, %s93
    %s96 = sphi 0, %s95
    %s110 = sphi 0, %s96
    %s114 = sphi 0, %s114
    %s116 = sphi 0, %s114
    %s117 = sphi 0, %s116
    %s131 = sphi 0, %s117
    %s135 = sphi 0, %s135
    %s137 = sphi 0, %s135
    %s138 = sphi 0, %s137
    %s152 = sphi 0, %s138
    %s156 = sphi 0, %s156
    %s158 = sphi 0, %s156
    %s159 = sphi 0, %s158
    %s173 = sphi 0, %s159
    %s177 = sphi 0, %s177
    %s179 = sphi 0, %s177
    %s180 = sphi 0, %s179
    %s194 = sphi 0, %s180
    %s198 = sphi 0, %s198
    %s200 = sphi 0, %s198
    %s201 = sphi 0, %s200
    %s215 = sphi 0, %s201
    %s219 = sphi 0, %s219
    %s221 = sphi 0, %s219
    %s222 = sphi 0, %s221
    %s236 = sphi 0, %s222
    %s240 = sphi 0, %s240
    %s242 = sphi 0, %s240
    %s243 = sphi 0, %s242
    %s257 = sphi 0, %s243
    %s263 = sphi 0, %s265
    %s266 = sphi 0, %s263
    %s267 = sphi 0, %s266
    %s283 = sphi 0, %s267
  $region4: #{conv_block_forward.1} parent=0 // loop_header_branch
    %20 = sbr.rel (%p18) target = $region8
  $region5: #{conv_block_forward.1} parent=0 // loop_body
    %s22 = ssub.s32 %s17, 1
    %s23 = ssub.s32 %s17, 2
    %s24 = sadd.s32 %s17, 1
    %s25 = ssub.s32 %s17, %s24
    %p26 = scmp.eq.s32.totalorder %s25, 0
    %s28 = sadd.s32 %s27, 1
    %s29 = scalar_select %p26, %s27, %s28
    %p32 = pneg %p26
    %p33 = scmp.eq.s32.totalorder %s17, 1
    %p34 = por %p32, %p33
    %p35 = scmp.ne.s32.totalorder %s27, %s30
    %p36 = scmp.eq.s32.totalorder %s17, 0
    %p37 = por %p35, %p36
    %p38 = scmp.ne.s32.totalorder %s27, %s30
    %p39 = scmp.eq.s32.totalorder %s22, 1
    %p40 = por %p38, %p39
    %p41 = scmp.ne.s32.totalorder %s30, %s31
    %p42 = scmp.eq.s32.totalorder %s22, 0
    %p43 = por %p41, %p42
    %p44 = scmp.ne.s32.totalorder %s30, %s31
    %p45 = scmp.eq.s32.totalorder %s23, 1
    %p46 = por %p44, %p45
    %p48 = scmp.ne.s32.totalorder %s31, %s47
    %p49 = scmp.eq.s32.totalorder %s23, 0
    %p50 = por %p48, %p49
    %s52 = sadd.s32 %s51, 1
    %p55 = scmp.eq.s32.totalorder %s17, 1
    %p56 = scmp.ne.s32.totalorder %s51, %s53
    %p57 = scmp.eq.s32.totalorder %s17, 0
    %p58 = por %p56, %p57
    %p59 = scmp.ne.s32.totalorder %s51, %s53
    %p60 = scmp.eq.s32.totalorder %s22, 1
    %p61 = por %p59, %p60
    %p62 = scmp.ne.s32.totalorder %s53, %s54
    %p63 = scmp.eq.s32.totalorder %s22, 0
    %p64 = por %p62, %p63
    %p65 = scmp.ne.s32.totalorder %s53, %s54
    %p66 = scmp.eq.s32.totalorder %s23, 1
    %p67 = por %p65, %p66
    %p69 = scmp.ne.s32.totalorder %s54, %s68
    %p70 = scmp.eq.s32.totalorder %s23, 0
    %p71 = por %p69, %p70
    %s73 = sadd.s32 %s72, 1
    %p76 = scmp.eq.s32.totalorder %s17, 1
    %p77 = scmp.ne.s32.totalorder %s72, %s74
    %p78 = scmp.eq.s32.totalorder %s17, 0
    %p79 = por %p77, %p78
    %p80 = scmp.ne.s32.totalorder %s72, %s74
    %p81 = scmp.eq.s32.totalorder %s22, 1
    %p82 = por %p80, %p81
    %p83 = scmp.ne.s32.totalorder %s74, %s75
    %p84 = scmp.eq.s32.totalorder %s22, 0
    %p85 = por %p83, %p84
    %p86 = scmp.ne.s32.totalorder %s74, %s75
    %p87 = scmp.eq.s32.totalorder %s23, 1
    %p88 = por %p86, %p87
    %p90 = scmp.ne.s32.totalorder %s75, %s89
    %p91 = scmp.eq.s32.totalorder %s23, 0
    %p92 = por %p90, %p91
    %s94 = sadd.s32 %s93, 1
    %p97 = scmp.eq.s32.totalorder %s17, 1
    %p98 = scmp.ne.s32.totalorder %s93, %s95
    %p99 = scmp.eq.s32.totalorder %s17, 0
    %p100 = por %p98, %p99
    %p101 = scmp.ne.s32.totalorder %s93, %s95
    %p102 = scmp.eq.s32.totalorder %s22, 1
    %p103 = por %p101, %p102
    %p104 = scmp.ne.s32.totalorder %s95, %s96
    %p105 = scmp.eq.s32.totalorder %s22, 0
    %p106 = por %p104, %p105
    %p107 = scmp.ne.s32.totalorder %s95, %s96
    %p108 = scmp.eq.s32.totalorder %s23, 1
    %p109 = por %p107, %p108
    %p111 = scmp.ne.s32.totalorder %s96, %s110
    %p112 = scmp.eq.s32.totalorder %s23, 0
    %p113 = por %p111, %p112
    %s115 = sadd.s32 %s114, 1
    %p118 = scmp.eq.s32.totalorder %s17, 1
    %p119 = scmp.ne.s32.totalorder %s114, %s116
    %p120 = scmp.eq.s32.totalorder %s17, 0
    %p121 = por %p119, %p120
    %p122 = scmp.ne.s32.totalorder %s114, %s116
    %p123 = scmp.eq.s32.totalorder %s22, 1
    %p124 = por %p122, %p123
    %p125 = scmp.ne.s32.totalorder %s116, %s117
    %p126 = scmp.eq.s32.totalorder %s22, 0
    %p127 = por %p125, %p126
    %p128 = scmp.ne.s32.totalorder %s116, %s117
    %p129 = scmp.eq.s32.totalorder %s23, 1
    %p130 = por %p128, %p129
    %p132 = scmp.ne.s32.totalorder %s117, %s131
    %p133 = scmp.eq.s32.totalorder %s23, 0
    %p134 = por %p132, %p133
    %s136 = sadd.s32 %s135, 1
    %p139 = scmp.eq.s32.totalorder %s17, 1
    %p140 = scmp.ne.s32.totalorder %s135, %s137
    %p141 = scmp.eq.s32.totalorder %s17, 0
    %p142 = por %p140, %p141
    %p143 = scmp.ne.s32.totalorder %s135, %s137
    %p144 = scmp.eq.s32.totalorder %s22, 1
    %p145 = por %p143, %p144
    %p146 = scmp.ne.s32.totalorder %s137, %s138
    %p147 = scmp.eq.s32.totalorder %s22, 0
    %p148 = por %p146, %p147
    %p149 = scmp.ne.s32.totalorder %s137, %s138
    %p150 = scmp.eq.s32.totalorder %s23, 1
    %p151 = por %p149, %p150
    %p153 = scmp.ne.s32.totalorder %s138, %s152
    %p154 = scmp.eq.s32.totalorder %s23, 0
    %p155 = por %p153, %p154
    %s157 = sadd.s32 %s156, 1
    %p160 = scmp.eq.s32.totalorder %s17, 1
    %p161 = scmp.ne.s32.totalorder %s156, %s158
    %p162 = scmp.eq.s32.totalorder %s17, 0
    %p163 = por %p161, %p162
    %p164 = scmp.ne.s32.totalorder %s156, %s158
    %p165 = scmp.eq.s32.totalorder %s22, 1
    %p166 = por %p164, %p165
    %p167 = scmp.ne.s32.totalorder %s158, %s159
    %p168 = scmp.eq.s32.totalorder %s22, 0
    %p169 = por %p167, %p168
    %p170 = scmp.ne.s32.totalorder %s158, %s159
    %p171 = scmp.eq.s32.totalorder %s23, 1
    %p172 = por %p170, %p171
    %p174 = scmp.ne.s32.totalorder %s159, %s173
    %p175 = scmp.eq.s32.totalorder %s23, 0
    %p176 = por %p174, %p175
    %s178 = sadd.s32 %s177, 1
    %p181 = scmp.eq.s32.totalorder %s17, 1
    %p182 = scmp.ne.s32.totalorder %s177, %s179
    %p183 = scmp.eq.s32.totalorder %s17, 0
    %p184 = por %p182, %p183
    %p185 = scmp.ne.s32.totalorder %s177, %s179
    %p186 = scmp.eq.s32.totalorder %s22, 1
    %p187 = por %p185, %p186
    %p188 = scmp.ne.s32.totalorder %s179, %s180
    %p189 = scmp.eq.s32.totalorder %s22, 0
    %p190 = por %p188, %p189
    %p191 = scmp.ne.s32.totalorder %s179, %s180
    %p192 = scmp.eq.s32.totalorder %s23, 1
    %p193 = por %p191, %p192
    %p195 = scmp.ne.s32.totalorder %s180, %s194
    %p196 = scmp.eq.s32.totalorder %s23, 0
    %p197 = por %p195, %p196
    %s199 = sadd.s32 %s198, 1
    %p202 = scmp.eq.s32.totalorder %s17, 1
    %p203 = scmp.ne.s32.totalorder %s198, %s200
    %p204 = scmp.eq.s32.totalorder %s17, 0
    %p205 = por %p203, %p204
    %p206 = scmp.ne.s32.totalorder %s198, %s200
    %p207 = scmp.eq.s32.totalorder %s22, 1
    %p208 = por %p206, %p207
    %p209 = scmp.ne.s32.totalorder %s200, %s201
    %p210 = scmp.eq.s32.totalorder %s22, 0
    %p211 = por %p209, %p210
    %p212 = scmp.ne.s32.totalorder %s200, %s201
    %p213 = scmp.eq.s32.totalorder %s23, 1
    %p214 = por %p212, %p213
    %p216 = scmp.ne.s32.totalorder %s201, %s215
    %p217 = scmp.eq.s32.totalorder %s23, 0
    %p218 = por %p216, %p217
    %s220 = sadd.s32 %s219, 1
    %p223 = scmp.eq.s32.totalorder %s17, 1
    %p224 = scmp.ne.s32.totalorder %s219, %s221
    %p225 = scmp.eq.s32.totalorder %s17, 0
    %p226 = por %p224, %p225
    %p227 = scmp.ne.s32.totalorder %s219, %s221
    %p228 = scmp.eq.s32.totalorder %s22, 1
    %p229 = por %p227, %p228
    %p230 = scmp.ne.s32.totalorder %s221, %s222
    %p231 = scmp.eq.s32.totalorder %s22, 0
    %p232 = por %p230, %p231
    %p233 = scmp.ne.s32.totalorder %s221, %s222
    %p234 = scmp.eq.s32.totalorder %s23, 1
    %p235 = por %p233, %p234
    %p237 = scmp.ne.s32.totalorder %s222, %s236
    %p238 = scmp.eq.s32.totalorder %s23, 0
    %p239 = por %p237, %p238
    %s241 = sadd.s32 %s240, 1
    %p244 = scmp.eq.s32.totalorder %s17, 1
    %p245 = scmp.ne.s32.totalorder %s240, %s242
    %p246 = scmp.eq.s32.totalorder %s17, 0
    %p247 = por %p245, %p246
    %p248 = scmp.ne.s32.totalorder %s240, %s242
    %p249 = scmp.eq.s32.totalorder %s22, 1
    %p250 = por %p248, %p249
    %p251 = scmp.ne.s32.totalorder %s242, %s243
    %p252 = scmp.eq.s32.totalorder %s22, 0
    %p253 = por %p251, %p252
    %p254 = scmp.ne.s32.totalorder %s242, %s243
    %p255 = scmp.eq.s32.totalorder %s23, 1
    %p256 = por %p254, %p255
    %p258 = scmp.ne.s32.totalorder %s243, %s257
    %p259 = scmp.eq.s32.totalorder %s23, 0
    %p260 = por %p258, %p259
    %s261 = ssub.s32 %s17, %s24
    %p262 = scmp.eq.s32.totalorder %s261, 0
    %s264 = sadd.s32 %s263, 1
    %s265 = scalar_select %p262, %s263, %s264
    %p268 = pneg %p262
    %p269 = scmp.eq.s32.totalorder %s17, 1
    %p270 = por %p268, %p269
    %p271 = scmp.ne.s32.totalorder %s263, %s266
    %p272 = scmp.eq.s32.totalorder %s17, 0
    %p273 = por %p271, %p272
    %p274 = scmp.ne.s32.totalorder %s263, %s266
    %p275 = scmp.eq.s32.totalorder %s22, 1
    %p276 = por %p274, %p275
    %p277 = scmp.ne.s32.totalorder %s266, %s267
    %p278 = scmp.eq.s32.totalorder %s22, 0
    %p279 = por %p277, %p278
    %p280 = scmp.ne.s32.totalorder %s266, %s267
    %p281 = scmp.eq.s32.totalorder %s23, 1
    %p282 = por %p280, %p281
    %p284 = scmp.ne.s32.totalorder %s267, %s283
    %p285 = scmp.eq.s32.totalorder %s23, 0
    %p286 = por %p284, %p285
    %p287 = scmp.le.s32.totalorder 1, %s17
    %p288 = scmp.lt.s32.totalorder %s17, 3
    %p289 = pnand %p287, %p288
    %p290 = pneg %p289
    // Predicated region
    $region9: #{conv_block_forward.1} parent=5 // pred_check
      _
    $region10: #{conv_block_forward.1} parent=5 // pred_check_branch
      %292 = sbr.rel (%p289) target = $region12
    $region11: #{conv_block_forward.1} parent=5 // pred_region
      %s293 = ssub.s32 %s17, 1
      // Predicated region
      $region13: #{conv_block_forward.1} parent=11 // pred_check
        %p294 = pneg %p64
      $region14: #{conv_block_forward.1} parent=11 // pred_check_branch
        %296 = sbr.rel (%p294) target = $region16
      $region15: #{conv_block_forward.1} parent=11 // pred_region
        _
      $region16: #{conv_block_forward.1} parent=11 // pred_fallthru
        _
      // Predicated region
      $region17: #{conv_block_forward.1} parent=11 // pred_check
        %p297 = pneg %p85
      $region18: #{conv_block_forward.1} parent=11 // pred_check_branch
        %299 = sbr.rel (%p297) target = $region20
      $region19: #{conv_block_forward.1} parent=11 // pred_region
        _
      $region20: #{conv_block_forward.1} parent=11 // pred_fallthru
        _
      // Predicated region
      $region21: #{conv_block_forward.1} parent=11 // pred_check
        %p300 = pneg %p106
      $region22: #{conv_block_forward.1} parent=11 // pred_check_branch
        %302 = sbr.rel (%p300) target = $region24
      $region23: #{conv_block_forward.1} parent=11 // pred_region
        _
      $region24: #{conv_block_forward.1} parent=11 // pred_fallthru
        _
      // Predicated region
      $region25: #{conv_block_forward.1} parent=11 // pred_check
        %p303 = pneg %p127
      $region26: #{conv_block_forward.1} parent=11 // pred_check_branch
        %305 = sbr.rel (%p303) target = $region28
      $region27: #{conv_block_forward.1} parent=11 // pred_region
        _
      $region28: #{conv_block_forward.1} parent=11 // pred_fallthru
        _
      // Predicated region
      $region29: #{conv_block_forward.1} parent=11 // pred_check
        %p306 = pneg %p148
      $region30: #{conv_block_forward.1} parent=11 // pred_check_branch
        %308 = sbr.rel (%p306) target = $region32
      $region31: #{conv_block_forward.1} parent=11 // pred_region
        _
      $region32: #{conv_block_forward.1} parent=11 // pred_fallthru
        _
      // Predicated region
      $region33: #{conv_block_forward.1} parent=11 // pred_check
        %p309 = pneg %p169
      $region34: #{conv_block_forward.1} parent=11 // pred_check_branch
        %311 = sbr.rel (%p309) target = $region36
      $region35: #{conv_block_forward.1} parent=11 // pred_region
        _
      $region36: #{conv_block_forward.1} parent=11 // pred_fallthru
        _
      // Predicated region
      $region37: #{conv_block_forward.1} parent=11 // pred_check
        %p312 = pneg %p190
      $region38: #{conv_block_forward.1} parent=11 // pred_check_branch
        %314 = sbr.rel (%p312) target = $region40
      $region39: #{conv_block_forward.1} parent=11 // pred_region
        _
      $region40: #{conv_block_forward.1} parent=11 // pred_fallthru
        _
      // Predicated region
      $region41: #{conv_block_forward.1} parent=11 // pred_check
        %p315 = pneg %p211
      $region42: #{conv_block_forward.1} parent=11 // pred_check_branch
        %317 = sbr.rel (%p315) target = $region44
      $region43: #{conv_block_forward.1} parent=11 // pred_region
        _
      $region44: #{conv_block_forward.1} parent=11 // pred_fallthru
        _
      // Predicated region
      $region45: #{conv_block_forward.1} parent=11 // pred_check
        %p318 = pneg %p232
      $region46: #{conv_block_forward.1} parent=11 // pred_check_branch
        %320 = sbr.rel (%p318) target = $region48
      $region47: #{conv_block_forward.1} parent=11 // pred_region
        _
      $region48: #{conv_block_forward.1} parent=11 // pred_fallthru
        _
      // Predicated region
      $region49: #{conv_block_forward.1} parent=11 // pred_check
        %p321 = pneg %p253
      $region50: #{conv_block_forward.1} parent=11 // pred_check_branch
        %323 = sbr.rel (%p321) target = $region52
      $region51: #{conv_block_forward.1} parent=11 // pred_region
        _
      $region52: #{conv_block_forward.1} parent=11 // pred_fallthru
        _
    $region12: #{conv_block_forward.1} parent=5 // pred_fallthru
      _
    %p324 = scmp.lt.s32.totalorder %s17, 2
    // Predicated region
    $region53: #{conv_block_forward.1} parent=5 // pred_check
      %p325 = pneg %p324
    $region54: #{conv_block_forward.1} parent=5 // pred_check_branch
      %327 = sbr.rel (%p325) target = $region56
    $region55: #{conv_block_forward.1} parent=5 // pred_region
      // Predicated region
      $region57: #{conv_block_forward.1} parent=55 // pred_check
        %p328 = pneg %p37
      $region58: #{conv_block_forward.1} parent=55 // pred_check_branch
        %330 = sbr.rel (%p328) target = $region60
      $region59: #{conv_block_forward.1} parent=55 // pred_region
        %p331 = scmp.lt.s32.totalorder %s17, 1
        %s332 = scalar_select %p331, %s17, 1
        %s333 = smul.addr %s332, 4
        %s334 = smul.addr %s333, 8
        %s335 = scalar_lea.vmem %s0, %s334
      $region60: #{conv_block_forward.1} parent=55 // pred_fallthru
        _
    $region56: #{conv_block_forward.1} parent=5 // pred_fallthru
      _
    %p336 = scmp.le.s32.totalorder 1, %s17
    %p337 = scmp.lt.s32.totalorder %s17, 3
    %p338 = pnand %p336, %p337
    %p339 = pneg %p338
    // Predicated region
    $region61: #{conv_block_forward.1} parent=5 // pred_check
      _
    $region62: #{conv_block_forward.1} parent=5 // pred_check_branch
      %341 = sbr.rel (%p338) target = $region64
    $region63: #{conv_block_forward.1} parent=5 // pred_region
      %s342 = ssub.s32 %s17, 1
      %p343 = scmp.lt.s32.totalorder %s22, 1
      %s344 = scalar_select %p343, %s22, 1
      %s345 = smul.addr %s344, 4
      %s346 = smul.addr %s345, 8
      %s347 = scalar_lea.vmem %s0, %s346
      %p348 = pneg %p43
      %p349 = pneg %p40
      %p350 = pneg %p64
      %p351 = pneg %p61
      %p352 = pneg %p85
      %p353 = pneg %p82
      %p354 = pneg %p106
      %p355 = pneg %p103
      %p356 = pneg %p127
      %p357 = pneg %p124
      %p358 = pneg %p148
      %p359 = pneg %p145
      %p360 = pneg %p169
      %p361 = pneg %p166
      %p362 = pneg %p190
      %p363 = pneg %p187
      %p364 = pneg %p211
      %p365 = pneg %p208
      %p366 = pneg %p232
      %p367 = pneg %p229
      %p368 = pneg %p253
      %p369 = pneg %p250
      %p370 = pneg %p279
      %p371 = pneg %p276
      %p372 = scmp.lt.s32.totalorder %s22, 1
      %s373 = scalar_select %p372, %s22, 1
      %s374 = smul.addr %s373, 2
      %s375 = smul.addr %s374, 8
      %s376 = scalar_lea.vmem %s11, %s375
      %p377 = scmp.lt.s32.totalorder %s22, 1
      %s378 = scalar_select %p377, %s22, 1
      %s379 = smul.addr %s378, 4
      %s380 = smul.addr %s379, 8
      %s381 = scalar_lea.vmem %s0, %s380
      %p382 = scmp.lt.s32.totalorder %s22, 1
      %s383 = scalar_select %p382, %s22, 1
      %s384 = smul.addr %s383, 2
      %s385 = smul.addr %s384, 8
      %s386 = scalar_lea.vmem %s11, %s385
      %v387 = vld [vmem:[%s9] sm:$0x7]
      %v388 = vld [vmem:[%s381] sm:$0xff]
      %v389 = vld [vmem:[%s381 + $0x8] sm:$0xff]
      %v390 = vld [vmem:[%s381 + $0x10] sm:$0xff]
      %v391 = vld [vmem:[%s381 + $0x18] sm:$0xff]
      %396 = vrot.lane.b32.xlu0 %v388, 127
      %v397 = vpop.permute.xlu0 %396
      %398 = vrot.lane.b32.xlu0 %v389, 127
      %v399 = vpop.permute.xlu0 %398
      %400 = vrot.lane.b32.xlu0 %v390, 127
      %v401 = vpop.permute.xlu0 %400
      %402 = vrot.lane.b32.xlu0 %v391, 127
      %v403 = vpop.permute.xlu0 %402
      %vm404 = vcmask 1039360
      %v405 = vsel %vm404, %v397, %v399
      %v406 = vsel %vm404, %v399, %v401
      %v407 = vsel %vm404, %v401, %v403
      %408 = vrot.lane.b32.xlu0 %v388, 126
      %v409 = vpop.permute.xlu0 %408
      %410 = vrot.lane.b32.xlu0 %v389, 126
      %v411 = vpop.permute.xlu0 %410
      %412 = vrot.lane.b32.xlu0 %v390, 126
      %v413 = vpop.permute.xlu0 %412
      %414 = vrot.lane.b32.xlu0 %v391, 126
      %v415 = vpop.permute.xlu0 %414
      %vm416 = vcmask 1031168
      %v417 = vsel %vm416, %v409, %v411
      %v418 = vsel %vm416, %v411, %v413
      %v419 = vsel %vm416, %v413, %v415
      %420 = vrot.lane.b32.xlu0 %v388, 106
      %v421 = vpop.permute.xlu0 %420
      %422 = vrot.lane.b32.xlu0 %v389, 106
      %v423 = vpop.permute.xlu0 %422
      %424 = vrot.lane.b32.xlu0 %v390, 106
      %v425 = vpop.permute.xlu0 %424
      %426 = vrot.lane.b32.xlu0 %v391, 106
      %v427 = vpop.permute.xlu0 %426
      %vm428 = vcmask 867328
      %v429 = vsel %vm428, %v421, %v423
      %v430 = vsel %vm428, %v423, %v425
      %v431 = vsel %vm428, %v425, %v427
      %432 = vrot.lane.b32.xlu0 %v389, 105
      %v433 = vpop.permute.xlu0 %432
      %434 = vrot.lane.b32.xlu0 %v390, 105
      %v435 = vpop.permute.xlu0 %434
      %436 = vrot.lane.b32.xlu0 %v391, 105
      %v437 = vpop.permute.xlu0 %436
      %vm438 = vcmask 859136
      %v439 = vsel %vm438, %v433, %v435
      %v440 = vsel %vm438, %v435, %v437
      %441 = vrot.lane.b32.xlu0 %v389, 104
      %v442 = vpop.permute.xlu0 %441
      %443 = vrot.lane.b32.xlu0 %v390, 104
      %v444 = vpop.permute.xlu0 %443
      %445 = vrot.lane.b32.xlu0 %v391, 104
      %v446 = vpop.permute.xlu0 %445
      %vm447 = vcmask 850944
      %v448 = vsel %vm447, %v442, %v444
      %v449 = vsel %vm447, %v444, %v446
      %450 = vrot.lane.b32.xlu0 %v389, 84
      %v451 = vpop.permute.xlu0 %450
      %452 = vrot.lane.b32.xlu0 %v390, 84
      %v453 = vpop.permute.xlu0 %452
      %454 = vrot.lane.b32.xlu0 %v391, 84
      %v455 = vpop.permute.xlu0 %454
      %vm456 = vcmask 687104
      %v457 = vsel %vm456, %v451, %v453
      %v458 = vsel %vm456, %v453, %v455
      %459 = vrot.lane.b32.xlu0 %v389, 83
      %v460 = vpop.permute.xlu0 %459
      %461 = vrot.lane.b32.xlu0 %v390, 83
      %v462 = vpop.permute.xlu0 %461
      %463 = vrot.lane.b32.xlu0 %v391, 83
      %v464 = vpop.permute.xlu0 %463
      %vm465 = vcmask 678912
      %v466 = vsel %vm465, %v460, %v462
      %v467 = vsel %vm465, %v462, %v464
      %468 = vrot.lane.b32.xlu0 %v389, 82
      %v469 = vpop.permute.xlu0 %468
      %470 = vrot.lane.b32.xlu0 %v390, 82
      %v471 = vpop.permute.xlu0 %470
      %472 = vrot.lane.b32.xlu0 %v391, 82
      %v473 = vpop.permute.xlu0 %472
      %vm474 = vcmask 670720
      %v475 = vsel %vm474, %v469, %v471
      %v476 = vsel %vm474, %v471, %v473
      %v477 = vld [vmem:[%s1] sm:$0xff]
      %v478 = vld [vmem:[%s1 + $0x8] sm:$0xff]
      %479 = vrot.lane.b32.xlu0 %v388, 23
      %v480 = vpop.permute.xlu0 %479
      %481 = vrot.lane.b32.xlu0 %v389, 23
      %v482 = vpop.permute.xlu0 %481
      %483 = vrot.lane.b32.xlu0 %v390, 23
      %v484 = vpop.permute.xlu0 %483
      %485 = vrot.lane.b32.xlu0 %v391, 23
      %v486 = vpop.permute.xlu0 %485
      %487 = vrot.lane.b32.xlu0 %v405, 23
      %v488 = vpop.permute.xlu0 %487
      %489 = vrot.lane.b32.xlu0 %v406, 23
      %v490 = vpop.permute.xlu0 %489
      %491 = vrot.lane.b32.xlu0 %v407, 23
      %v492 = vpop.permute.xlu0 %491
      %493 = vrot.lane.b32.xlu0 %v403, 23
      %v494 = vpop.permute.xlu0 %493
      %495 = vrot.lane.b32.xlu0 %v417, 23
      %v496 = vpop.permute.xlu0 %495
      %497 = vrot.lane.b32.xlu0 %v418, 23
      %v498 = vpop.permute.xlu0 %497
      %499 = vrot.lane.b32.xlu0 %v419, 23
      %v500 = vpop.permute.xlu0 %499
      %501 = vrot.lane.b32.xlu0 %v415, 23
      %v502 = vpop.permute.xlu0 %501
      %503 = vrot.lane.b32.xlu0 %v429, 23
      %v504 = vpop.permute.xlu0 %503
      %505 = vrot.lane.b32.xlu0 %v430, 23
      %v506 = vpop.permute.xlu0 %505
      %507 = vrot.lane.b32.xlu0 %v431, 23
      %v508 = vpop.permute.xlu0 %507
      %509 = vrot.lane.b32.xlu0 %v427, 23
      %v510 = vpop.permute.xlu0 %509
      %511 = vrot.lane.b32.xlu0 %v433, 23
      %v512 = vpop.permute.xlu0 %511
      %513 = vrot.lane.b32.xlu0 %v439, 23
      %v514 = vpop.permute.xlu0 %513
      %515 = vrot.lane.b32.xlu0 %v440, 23
      %v516 = vpop.permute.xlu0 %515
      %517 = vrot.lane.b32.xlu0 %v437, 23
      %v518 = vpop.permute.xlu0 %517
      %519 = vrot.lane.b32.xlu0 %v442, 23
      %v520 = vpop.permute.xlu0 %519
      %521 = vrot.lane.b32.xlu0 %v448, 23
      %v522 = vpop.permute.xlu0 %521
      %523 = vrot.lane.b32.xlu0 %v449, 23
      %v524 = vpop.permute.xlu0 %523
      %525 = vrot.lane.b32.xlu0 %v446, 23
      %v526 = vpop.permute.xlu0 %525
      %527 = vrot.lane.b32.xlu0 %v451, 23
      %v528 = vpop.permute.xlu0 %527
      %529 = vrot.lane.b32.xlu0 %v457, 23
      %v530 = vpop.permute.xlu0 %529
      %531 = vrot.lane.b32.xlu0 %v458, 23
      %v532 = vpop.permute.xlu0 %531
      %533 = vrot.lane.b32.xlu0 %v455, 23
      %v534 = vpop.permute.xlu0 %533
      %535 = vrot.lane.b32.xlu0 %v460, 23
      %v536 = vpop.permute.xlu0 %535
      %537 = vrot.lane.b32.xlu0 %v466, 23
      %v538 = vpop.permute.xlu0 %537
      %539 = vrot.lane.b32.xlu0 %v467, 23
      %v540 = vpop.permute.xlu0 %539
      %541 = vrot.lane.b32.xlu0 %v464, 23
      %v542 = vpop.permute.xlu0 %541
      %543 = vrot.lane.b32.xlu0 %v469, 23
      %v544 = vpop.permute.xlu0 %543
      %545 = vrot.lane.b32.xlu0 %v475, 23
      %v546 = vpop.permute.xlu0 %545
      %547 = vrot.lane.b32.xlu0 %v476, 23
      %v548 = vpop.permute.xlu0 %547
      %549 = vrot.lane.b32.xlu0 %v473, 23
      %v550 = vpop.permute.xlu0 %549
      %vm551 = vcmask 187392
      %v552 = vsel %vm551, %v480, %v482
      %v553 = vsel %vm551, %v482, %v484
      %v554 = vsel %vm551, %v484, %v486
      %v555 = vsel %vm551, %v488, %v490
      %v556 = vsel %vm551, %v490, %v492
      %v557 = vsel %vm551, %v492, %v494
      %v558 = vsel %vm551, %v496, %v498
      %v559 = vsel %vm551, %v498, %v500
      %v560 = vsel %vm551, %v500, %v502
      %v561 = vsel %vm551, %v504, %v506
      %v562 = vsel %vm551, %v506, %v508
      %v563 = vsel %vm551, %v508, %v510
      %v564 = vsel %vm551, %v512, %v514
      %v565 = vsel %vm551, %v514, %v516
      %v566 = vsel %vm551, %v516, %v518
      %v567 = vsel %vm551, %v520, %v522
      %v568 = vsel %vm551, %v522, %v524
      %v569 = vsel %vm551, %v524, %v526
      %v570 = vsel %vm551, %v528, %v530
      %v571 = vsel %vm551, %v530, %v532
      %v572 = vsel %vm551, %v532, %v534
      %v573 = vsel %vm551, %v536, %v538
      %v574 = vsel %vm551, %v538, %v540
      %v575 = vsel %vm551, %v540, %v542
      %v576 = vsel %vm551, %v544, %v546
      %v577 = vsel %vm551, %v546, %v548
      %v578 = vsel %vm551, %v548, %v550
      %vm606 = vcmask 588800
      %v608 = vsel %vm606, %v477, 0
      %v611 = vsel %vm606, %v478, 0
      %613 = vmatprep.subr.mxu0 %v553
      %614 = vmatpush1.msra.mxu0 %v552
      %615 = vmatprep.subr.mxu0 %v556
      %616 = vmatpush1.msra.mxu0 %v555
      %617 = vmatprep.subr.mxu0 %v559
      %618 = vmatpush1.msra.mxu0 %v558
      %619 = vmatprep.subr.mxu0 %v562
      %620 = vmatpush1.msra.mxu0 %v561
      %621 = vmatprep.subr.mxu0 %v565
      %622 = vmatpush1.msra.mxu0 %v564
      %623 = vmatprep.subr.mxu0 %v568
      %624 = vmatpush1.msra.mxu0 %v567
      %625 = vmatprep.subr.mxu0 %v571
      %626 = vmatpush1.msra.mxu0 %v570
      %627 = vmatprep.subr.mxu0 %v574
      %628 = vmatpush1.msra.mxu0 %v573
      %629 = vmatprep.subr.mxu0 %v577
      %630 = vmatpush1.msra.mxu0 %v576
      %631 = vmatprep.subr.mxu0 0.0
      %632 = vmatpush1.msra.mxu0 0.0
      %633 = vmatprep.subr.mxu0 0.0
      %634 = vmatpush1.msra.mxu0 0.0
      %635 = vmatprep.subr.mxu0 0.0
      %636 = vmatpush1.msra.mxu0 0.0
      %637 = vmatprep.subr.mxu0 0.0
      %638 = vmatpush1.msra.mxu0 0.0
      %639 = vmatprep.subr.mxu0 0.0
      %640 = vmatpush1.msra.mxu0 0.0
      %641 = vmatprep.subr.mxu0 0.0
      %642 = vmatpush1.msra.mxu0 0.0
      %643 = vmatprep.subr.mxu0 0.0
      %644 = vmatpush1.msra.mxu0 0.0
      %645 = vmatprep.subr.mxu0 0.0
      %646 = vmatpush1.msra.mxu0 0.0
      %647 = vmatprep.subr.mxu0 0.0
      %648 = vmatpush1.msra.mxu0 0.0
      %649 = vmatprep.subr.mxu0 0.0
      %650 = vmatpush1.msra.mxu0 0.0
      %651 = vmatprep.subr.mxu0 0.0
      %652 = vmatpush1.msra.mxu0 0.0
      %653 = vmatprep.subr.mxu0 0.0
      %654 = vmatpush1.msra.mxu0 0.0
      %655 = vmatprep.subr.mxu0 0.0
      %656 = vmatpush1.msra.mxu0 0.0
      %657 = vmatprep.subr.mxu0 0.0
      %658 = vmatpush1.msra.mxu0 0.0
      %659 = vmatprep.subr.mxu0 0.0
      %660 = vmatpush1.msra.mxu0 0.0
      %661 = vmatprep.subr.mxu0 0.0
      %662 = vmatpush1.msra.mxu0 0.0
      %663 = vmatprep.subr.mxu0 0.0
      %664 = vmatpush1.msra.mxu0 0.0
      %665 = vmatprep.subr.mxu0 0.0
      %666 = vmatpush1.msra.mxu0 0.0
      %667 = vmatprep.subr.mxu0 0.0
      %668 = vmatpush1.msra.mxu0 0.0
      %669 = vmatprep.subr.mxu0 0.0
      %670 = vmatpush1.msra.mxu0 0.0
      %671 = vmatprep.subr.mxu0 0.0
      %672 = vmatpush1.msra.mxu0 0.0
      %673 = vmatprep.subr.mxu0 0.0
      %674 = vmatpush1.msra.mxu0 0.0
      %675 = vmatprep.subr.mxu0 0.0
      %676 = vmatpush1.msra.mxu0 0.0
      %677 = vmatprep.mubr.f32.mxu0 0.0
      %678 = vmatmul.mubr.f32.gmra.mrb[0].mxu0 %v608
      %v679 = vpop.f32.mrb[0].mxu0
      %v680 = vadd.f32 0.0, %v679
      %v681 = vpop.f32.mrb[0].mxu0
      %v682 = vadd.f32 0.0, %v681
      %683 = vmatprep.mubr.f32.mxu0 0.0
      %684 = vmatmul.mubr.f32.gmra.mrb[0].mxu0 %v611
      %v685 = vpop.f32.mrb[0].mxu0
      %v686 = vadd.f32 0.0, %v685
      %v687 = vpop.f32.mrb[0].mxu0
      %v688 = vadd.f32 0.0, %v687
      %689 = vdwg.mxu0
      %690 = vmatprep.subr.mxu0 0.0
      %691 = vmatpush1.msra.mxu0 %v554
      %692 = vmatprep.subr.mxu0 0.0
      %693 = vmatpush1.msra.mxu0 %v557
      %694 = vmatprep.subr.mxu0 0.0
      %695 = vmatpush1.msra.mxu0 %v560
      %696 = vmatprep.subr.mxu0 0.0
      %697 = vmatpush1.msra.mxu0 %v563
      %698 = vmatprep.subr.mxu0 0.0
      %699 = vmatpush1.msra.mxu0 %v566
      %700 = vmatprep.subr.mxu0 0.0
      %701 = vmatpush1.msra.mxu0 %v569
      %702 = vmatprep.subr.mxu0 0.0
      %703 = vmatpush1.msra.mxu0 %v572
      %704 = vmatprep.subr.mxu0 0.0
      %705 = vmatpush1.msra.mxu0 %v575
      %706 = vmatprep.subr.mxu0 0.0
      %707 = vmatpush1.msra.mxu0 %v578
      %708 = vmatprep.subr.mxu0 0.0
      %709 = vmatpush1.msra.mxu0 0.0
      %710 = vmatprep.subr.mxu0 0.0
      %711 = vmatpush1.msra.mxu0 0.0
      %712 = vmatprep.subr.mxu0 0.0
      %713 = vmatpush1.msra.mxu0 0.0
      %714 = vmatprep.subr.mxu0 0.0
      %715 = vmatpush1.msra.mxu0 0.0
      %716 = vmatprep.subr.mxu0 0.0
      %717 = vmatpush1.msra.mxu0 0.0
      %718 = vmatprep.subr.mxu0 0.0
      %719 = vmatpush1.msra.mxu0 0.0
      %720 = vmatprep.subr.mxu0 0.0
      %721 = vmatpush1.msra.mxu0 0.0
      %722 = vmatprep.subr.mxu0 0.0
      %723 = vmatpush1.msra.mxu0 0.0
      %724 = vmatprep.subr.mxu0 0.0
      %725 = vmatpush1.msra.mxu0 0.0
      %726 = vmatprep.subr.mxu0 0.0
      %727 = vmatpush1.msra.mxu0 0.0
      %728 = vmatprep.subr.mxu0 0.0
      %729 = vmatpush1.msra.mxu0 0.0
      %730 = vmatprep.subr.mxu0 0.0
      %731 = vmatpush1.msra.mxu0 0.0
      %732 = vmatprep.subr.mxu0 0.0
      %733 = vmatpush1.msra.mxu0 0.0
      %734 = vmatprep.subr.mxu0 0.0
      %735 = vmatpush1.msra.mxu0 0.0
      %736 = vmatprep.subr.mxu0 0.0
      %737 = vmatpush1.msra.mxu0 0.0
      %738 = vmatprep.subr.mxu0 0.0
      %739 = vmatpush1.msra.mxu0 0.0
      %740 = vmatprep.subr.mxu0 0.0
      %741 = vmatpush1.msra.mxu0 0.0
      %742 = vmatprep.subr.mxu0 0.0
      %743 = vmatpush1.msra.mxu0 0.0
      %744 = vmatprep.subr.mxu0 0.0
      %745 = vmatpush1.msra.mxu0 0.0
      %746 = vmatprep.subr.mxu0 0.0
      %747 = vmatpush1.msra.mxu0 0.0
      %748 = vmatprep.subr.mxu0 0.0
      %749 = vmatpush1.msra.mxu0 0.0
      %750 = vmatprep.subr.mxu0 0.0
      %751 = vmatpush1.msra.mxu0 0.0
      %752 = vmatprep.subr.mxu0 0.0
      %753 = vmatpush1.msra.mxu0 0.0
      %754 = vmatprep.mubr.f32.mxu0 0.0
      %755 = vmatmul.mubr.f32.gmra.mrb[0].mxu0 %v608
      %v756 = vpop.f32.mrb[0].mxu0
      %v757 = vadd.f32 0.0, %v756
      %v758 = vpop.f32.mrb[0].mxu0
      %759 = vmatprep.mubr.f32.mxu0 0.0
      %760 = vmatmul.mubr.f32.gmra.mrb[0].mxu0 %v611
      %v761 = vpop.f32.mrb[0].mxu0
      %v762 = vadd.f32 0.0, %v761
      %v763 = vpop.f32.mrb[0].mxu0
      %764 = vdwg.mxu0
      %v765 = vld [vmem:[%s2] sm:$0xff]
      %v766 = vld [vmem:[%s2 + $0x8] sm:$0xff]
      %v767 = vld [vmem:[%s2 + $0x10] sm:$0xff]
      %v768 = vld [vmem:[%s2 + $0x18] sm:$0xff]
      %v769 = vld [vmem:[%s2 + $0x20] sm:$0xff]
      %v770 = vld [vmem:[%s2 + $0x28] sm:$0xff]
      %v771 = vld [vmem:[%s2 + $0x30] sm:$0xff]
      %v772 = vld [vmem:[%s2 + $0x38] sm:$0xff]
      %vm773 = vcmask 130048
      %v775 = vsel %vm773, %v765, 0
      %v778 = vsel %vm773, %v766, 0
      %v781 = vsel %vm773, %v767, 0
      %v784 = vsel %vm773, %v768, 0
      %v787 = vsel %vm773, %v769, 0
      %v790 = vsel %vm773, %v770, 0
      %v793 = vsel %vm773, %v771, 0
      %v796 = vsel %vm773, %v772, 0
      %798 = vmatprep.subr.mxu0 %v682
      %799 = vmatpush1.msra.mxu0 %v680
      %800 = vmatprep.subr.mxu0 %v688
      %801 = vmatpush1.msra.mxu0 %v686
      %802 = vmatprep.subr.mxu0 0.0
      %803 = vmatpush1.msra.mxu0 0.0
      %804 = vmatprep.subr.mxu0 0.0
      %805 = vmatpush1.msra.mxu0 0.0
      %806 = vmatprep.subr.mxu0 0.0
      %807 = vmatpush1.msra.mxu0 0.0
      %808 = vmatprep.subr.mxu0 0.0
      %809 = vmatpush1.msra.mxu0 0.0
      %810 = vmatprep.subr.mxu0 0.0
      %811 = vmatpush1.msra.mxu0 0.0
      %812 = vmatprep.subr.mxu0 0.0
      %813 = vmatpush1.msra.mxu0 0.0
      %814 = vmatprep.subr.mxu0 0.0
      %815 = vmatpush1.msra.mxu0 0.0
      %816 = vmatprep.subr.mxu0 0.0
      %817 = vmatpush1.msra.mxu0 0.0
      %818 = vmatprep.subr.mxu0 0.0
      %819 = vmatpush1.msra.mxu0 0.0
      %820 = vmatprep.subr.mxu0 0.0
      %821 = vmatpush1.msra.mxu0 0.0
      %822 = vmatprep.subr.mxu0 0.0
      %823 = vmatpush1.msra.mxu0 0.0
      %824 = vmatprep.subr.mxu0 0.0
      %825 = vmatpush1.msra.mxu0 0.0
      %826 = vmatprep.subr.mxu0 0.0
      %827 = vmatpush1.msra.mxu0 0.0
      %828 = vmatprep.subr.mxu0 0.0
      %829 = vmatpush1.msra.mxu0 0.0
      %830 = vmatprep.subr.mxu0 0.0
      %831 = vmatpush1.msra.mxu0 0.0
      %832 = vmatprep.subr.mxu0 0.0
      %833 = vmatpush1.msra.mxu0 0.0
      %834 = vmatprep.subr.mxu0 0.0
      %835 = vmatpush1.msra.mxu0 0.0
      %836 = vmatprep.subr.mxu0 0.0
      %837 = vmatpush1.msra.mxu0 0.0
      %838 = vmatprep.subr.mxu0 0.0
      %839 = vmatpush1.msra.mxu0 0.0
      %840 = vmatprep.subr.mxu0 0.0
      %841 = vmatpush1.msra.mxu0 0.0
      %842 = vmatprep.subr.mxu0 0.0
      %843 = vmatpush1.msra.mxu0 0.0
      %844 = vmatprep.subr.mxu0 0.0
      %845 = vmatpush1.msra.mxu0 0.0
      %846 = vmatprep.subr.mxu0 0.0
      %847 = vmatpush1.msra.mxu0 0.0
      %848 = vmatprep.subr.mxu0 0.0
      %849 = vmatpush1.msra.mxu0 0.0
      %850 = vmatprep.subr.mxu0 0.0
      %851 = vmatpush1.msra.mxu0 0.0
      %852 = vmatprep.subr.mxu0 0.0
      %853 = vmatpush1.msra.mxu0 0.0
      %854 = vmatprep.subr.mxu0 0.0
      %855 = vmatpush1.msra.mxu0 0.0
      %856 = vmatprep.subr.mxu0 0.0
      %857 = vmatpush1.msra.mxu0 0.0
      %858 = vmatprep.subr.mxu0 0.0
      %859 = vmatpush1.msra.mxu0 0.0
      %860 = vmatprep.subr.mxu0 0.0
      %861 = vmatpush1.msra.mxu0 0.0
      %862 = vmatprep.mubr.f32.mxu0 0.0
      %863 = vmatmul.mubr.f32.gmra.mrb[0].mxu0 %v775
      %v864 = vpop.f32.mrb[0].mxu0
      %v865 = vadd.f32 0.0, %v864
      %v866 = vpop.f32.mrb[0].mxu0
      %v867 = vadd.f32 0.0, %v866
      %868 = vmatprep.mubr.f32.mxu0 0.0
      %869 = vmatmul.mubr.f32.gmra.mrb[0].mxu0 %v778
      %v870 = vpop.f32.mrb[0].mxu0
      %v871 = vadd.f32 0.0, %v870
      %v872 = vpop.f32.mrb[0].mxu0
      %v873 = vadd.f32 0.0, %v872
      %874 = vmatprep.mubr.f32.mxu0 0.0
      %875 = vmatmul.mubr.f32.gmra.mrb[0].mxu0 %v781
      %v876 = vpop.f32.mrb[0].mxu0
      %v877 = vadd.f32 0.0, %v876
      %v878 = vpop.f32.mrb[0].mxu0
      %v879 = vadd.f32 0.0, %v878
      %880 = vmatprep.mubr.f32.mxu0 0.0
      %881 = vmatmul.mubr.f32.gmra.mrb[0].mxu0 %v784
      %v882 = vpop.f32.mrb[0].mxu0
      %v883 = vadd.f32 0.0, %v882
      %v884 = vpop.f32.mrb[0].mxu0
      %v885 = vadd.f32 0.0, %v884
      %886 = vmatprep.mubr.f32.mxu0 0.0
      %887 = vmatmul.mubr.f32.gmra.mrb[0].mxu0 %v787
      %v888 = vpop.f32.mrb[0].mxu0
      %v889 = vadd.f32 0.0, %v888
      %v890 = vpop.f32.mrb[0].mxu0
      %v891 = vadd.f32 0.0, %v890
      %892 = vmatprep.mubr.f32.mxu0 0.0
      %893 = vmatmul.mubr.f32.gmra.mrb[0].mxu0 %v790
      %v894 = vpop.f32.mrb[0].mxu0
      %v895 = vadd.f32 0.0, %v894
      %v896 = vpop.f32.mrb[0].mxu0
      %v897 = vadd.f32 0.0, %v896
      %898 = vmatprep.mubr.f32.mxu0 0.0
      %899 = vmatmul.mubr.f32.gmra.mrb[0].mxu0 %v793
      %v900 = vpop.f32.mrb[0].mxu0
      %v901 = vadd.f32 0.0, %v900
      %v902 = vpop.f32.mrb[0].mxu0
      %v903 = vadd.f32 0.0, %v902
      %904 = vmatprep.mubr.f32.mxu0 0.0
      %905 = vmatmul.mubr.f32.gmra.mrb[0].mxu0 %v796
      %v906 = vpop.f32.mrb[0].mxu0
      %v907 = vadd.f32 0.0, %v906
      %v908 = vpop.f32.mrb[0].mxu0
      %v909 = vadd.f32 0.0, %v908
      %910 = vdwg.mxu0
      %911 = vmatprep.subr.mxu0 0.0
      %912 = vmatpush1.msra.mxu0 %v757
      %913 = vmatprep.subr.mxu0 0.0
      %914 = vmatpush1.msra.mxu0 %v762
      %915 = vmatprep.subr.mxu0 0.0
      %916 = vmatpush1.msra.mxu0 0.0
      %917 = vmatprep.subr.mxu0 0.0
      %918 = vmatpush1.msra.mxu0 0.0
      %919 = vmatprep.subr.mxu0 0.0
      %920 = vmatpush1.msra.mxu0 0.0
      %921 = vmatprep.subr.mxu0 0.0
      %922 = vmatpush1.msra.mxu0 0.0
      %923 = vmatprep.subr.mxu0 0.0
      %924 = vmatpush1.msra.mxu0 0.0
      %925 = vmatprep.subr.mxu0 0.0
      %926 = vmatpush1.msra.mxu0 0.0
      %927 = vmatprep.subr.mxu0 0.0
      %928 = vmatpush1.msra.mxu0 0.0
      %929 = vmatprep.subr.mxu0 0.0
      %930 = vmatpush1.msra.mxu0 0.0
      %931 = vmatprep.subr.mxu0 0.0
      %932 = vmatpush1.msra.mxu0 0.0
      %933 = vmatprep.subr.mxu0 0.0
      %934 = vmatpush1.msra.mxu0 0.0
      %935 = vmatprep.subr.mxu0 0.0
      %936 = vmatpush1.msra.mxu0 0.0
      %937 = vmatprep.subr.mxu0 0.0
      %938 = vmatpush1.msra.mxu0 0.0
      %939 = vmatprep.subr.mxu0 0.0
      %940 = vmatpush1.msra.mxu0 0.0
      %941 = vmatprep.subr.mxu0 0.0
      %942 = vmatpush1.msra.mxu0 0.0
      %943 = vmatprep.subr.mxu0 0.0
      %944 = vmatpush1.msra.mxu0 0.0
      %945 = vmatprep.subr.mxu0 0.0
      %946 = vmatpush1.msra.mxu0 0.0
      %947 = vmatprep.subr.mxu0 0.0
      %948 = vmatpush1.msra.mxu0 0.0
      %949 = vmatprep.subr.mxu0 0.0
      %950 = vmatpush1.msra.mxu0 0.0
      %951 = vmatprep.subr.mxu0 0.0
      %952 = vmatpush1.msra.mxu0 0.0
      %953 = vmatprep.subr.mxu0 0.0
      %954 = vmatpush1.msra.mxu0 0.0
      %955 = vmatprep.subr.mxu0 0.0
      %956 = vmatpush1.msra.mxu0 0.0
      %957 = vmatprep.subr.mxu0 0.0
      %958 = vmatpush1.msra.mxu0 0.0
      %959 = vmatprep.subr.mxu0 0.0
      %960 = vmatpush1.msra.mxu0 0.0
      %961 = vmatprep.subr.mxu0 0.0
      %962 = vmatpush1.msra.mxu0 0.0
      %963 = vmatprep.subr.mxu0 0.0
      %964 = vmatpush1.msra.mxu0 0.0
      %965 = vmatprep.subr.mxu0 0.0
      %966 = vmatpush1.msra.mxu0 0.0
      %967 = vmatprep.subr.mxu0 0.0
      %968 = vmatpush1.msra.mxu0 0.0
      %969 = vmatprep.subr.mxu0 0.0
      %970 = vmatpush1.msra.mxu0 0.0
      %971 = vmatprep.subr.mxu0 0.0
      %972 = vmatpush1.msra.mxu0 0.0
      %973 = vmatprep.subr.mxu0 0.0
      %974 = vmatpush1.msra.mxu0 0.0
      %975 = vmatprep.mubr.f32.mxu0 0.0
      %976 = vmatmul.mubr.f32.gmra.mrb[0].mxu0 %v775
      %v977 = vpop.f32.mrb[0].mxu0
      %v978 = vadd.f32 0.0, %v977
      %v979 = vpop.f32.mrb[0].mxu0
      %980 = vmatprep.mubr.f32.mxu0 0.0
      %981 = vmatmul.mubr.f32.gmra.mrb[0].mxu0 %v778
      %v982 = vpop.f32.mrb[0].mxu0
      %v983 = vadd.f32 0.0, %v982
      %v984 = vpop.f32.mrb[0].mxu0
      %985 = vmatprep.mubr.f32.mxu0 0.0
      %986 = vmatmul.mubr.f32.gmra.mrb[0].mxu0 %v781
      %v987 = vpop.f32.mrb[0].mxu0
      %v988 = vadd.f32 0.0, %v987
      %v989 = vpop.f32.mrb[0].mxu0
      %990 = vmatprep.mubr.f32.mxu0 0.0
      %991 = vmatmul.mubr.f32.gmra.mrb[0].mxu0 %v784
      %v992 = vpop.f32.mrb[0].mxu0
      %v993 = vadd.f32 0.0, %v992
      %v994 = vpop.f32.mrb[0].mxu0
      %995 = vmatprep.mubr.f32.mxu0 0.0
      %996 = vmatmul.mubr.f32.gmra.mrb[0].mxu0 %v787
      %v997 = vpop.f32.mrb[0].mxu0
      %v998 = vadd.f32 0.0, %v997
      %v999 = vpop.f32.mrb[0].mxu0
      %1000 = vmatprep.mubr.f32.mxu0 0.0
      %1001 = vmatmul.mubr.f32.gmra.mrb[0].mxu0 %v790
      %v1002 = vpop.f32.mrb[0].mxu0
      %v1003 = vadd.f32 0.0, %v1002
      %v1004 = vpop.f32.mrb[0].mxu0
      %1005 = vmatprep.mubr.f32.mxu0 0.0
      %1006 = vmatmul.mubr.f32.gmra.mrb[0].mxu0 %v793
      %v1007 = vpop.f32.mrb[0].mxu0
      %v1008 = vadd.f32 0.0, %v1007
      %v1009 = vpop.f32.mrb[0].mxu0
      %1010 = vmatprep.mubr.f32.mxu0 0.0
      %1011 = vmatmul.mubr.f32.gmra.mrb[0].mxu0 %v796
      %v1012 = vpop.f32.mrb[0].mxu0
      %v1013 = vadd.f32 0.0, %v1012
      %v1014 = vpop.f32.mrb[0].mxu0
      %1015 = vdwg.mxu0
      %v1016 = vmax.f32 %v865, 0.0
      %v1017 = vmax.f32 %v867, 0.0
      %v1018 = vmax.f32 %v978, 0.0
      %v1019 = vmax.f32 %v871, 0.0
      %v1020 = vmax.f32 %v873, 0.0
      %v1021 = vmax.f32 %v983, 0.0
      %v1022 = vmax.f32 %v877, 0.0
      %v1023 = vmax.f32 %v879, 0.0
      %v1024 = vmax.f32 %v988, 0.0
      %v1025 = vmax.f32 %v883, 0.0
      %v1026 = vmax.f32 %v885, 0.0
      %v1027 = vmax.f32 %v993, 0.0
      %v1028 = vmax.f32 %v889, 0.0
      %v1029 = vmax.f32 %v891, 0.0
      %v1030 = vmax.f32 %v998, 0.0
      %v1031 = vmax.f32 %v895, 0.0
      %v1032 = vmax.f32 %v897, 0.0
      %v1033 = vmax.f32 %v1003, 0.0
      %v1034 = vmax.f32 %v901, 0.0
      %v1035 = vmax.f32 %v903, 0.0
      %v1036 = vmax.f32 %v1008, 0.0
      %v1037 = vmax.f32 %v907, 0.0
      %v1038 = vmax.f32 %v909, 0.0
      %v1039 = vmax.f32 %v1013, 0.0
      %vm1040 = vcmask 1048384
      %1041 = vst.msk [vmem:[#allocation2] sm:$0xff] %vm1040, 0.0
      %1042 = vst.msk [vmem:[#allocation2 + $0x20] sm:$0xff] %vm1040, 0.0
      %1043 = vst.msk [vmem:[#allocation2 + $0x40] sm:$0xff] %vm1040, 0.0
      %1044 = vst.msk [vmem:[#allocation2 + $0x60] sm:$0xff] %vm1040, 0.0
      %1045 = vst.msk [vmem:[#allocation2 + $0x80] sm:$0xff] %vm1040, 0.0
      %1046 = vst.msk [vmem:[#allocation2 + $0xa0] sm:$0xff] %vm1040, 0.0
      %1047 = vst.msk [vmem:[#allocation2 + $0xc0] sm:$0xff] %vm1040, 0.0
      %1048 = vst.msk [vmem:[#allocation2 + $0xe0] sm:$0xff] %vm1040, 0.0
      %vm1049 = vcmask 982784
      %1050 = vst.msk [vmem:[#allocation2 + $0x18] sm:$0xff] %vm1049, 0.0
      %1051 = vst.msk [vmem:[#allocation2 + $0x38] sm:$0xff] %vm1049, 0.0
      %1052 = vst.msk [vmem:[#allocation2 + $0x58] sm:$0xff] %vm1049, 0.0
      %1053 = vst.msk [vmem:[#allocation2 + $0x78] sm:$0xff] %vm1049, 0.0
      %1054 = vst.msk [vmem:[#allocation2 + $0x98] sm:$0xff] %vm1049, 0.0
      %1055 = vst.msk [vmem:[#allocation2 + $0xb8] sm:$0xff] %vm1049, 0.0
      %1056 = vst.msk [vmem:[#allocation2 + $0xd8] sm:$0xff] %vm1049, 0.0
      %1057 = vst.msk [vmem:[#allocation2 + $0xf8] sm:$0xff] %vm1049, 0.0
      %v1059 = vlaneseq
      %v1060 = vshrl.u32 %v1059, 7
      %v1061 = vsub.s32 0, %v1060
      %v1062 = vrot.slane %v387, %v1061
      %v1063 = vlaneseq
      %v1064 = vshrl.u32 %v1063, 7
      %v1065 = vsub.s32 1, %v1064
      %v1066 = vrot.slane %v387, %v1065
      %v1067 = vlaneseq
      %v1068 = vshrl.u32 %v1067, 7
      %v1069 = vsub.s32 2, %v1068
      %v1070 = vrot.slane %v387, %v1069
      %v1074 = vmul.f32 %v1016, %v1062
      %v1075 = vmul.f32 %v1017, %v1066
      %v1076 = vmul.f32 %v1018, %v1070
      %v1077 = vmul.f32 %v1019, %v1062
      %v1078 = vmul.f32 %v1020, %v1066
      %v1079 = vmul.f32 %v1021, %v1070
      %v1080 = vmul.f32 %v1022, %v1062
      %v1081 = vmul.f32 %v1023, %v1066
      %v1082 = vmul.f32 %v1024, %v1070
      %v1083 = vmul.f32 %v1025, %v1062
      %v1084 = vmul.f32 %v1026, %v1066
      %v1085 = vmul.f32 %v1027, %v1070
      %v1086 = vmul.f32 %v1028, %v1062
      %v1087 = vmul.f32 %v1029, %v1066
      %v1088 = vmul.f32 %v1030, %v1070
      %v1089 = vmul.f32 %v1031, %v1062
      %v1090 = vmul.f32 %v1032, %v1066
      %v1091 = vmul.f32 %v1033, %v1070
      %v1092 = vmul.f32 %v1034, %v1062
      %v1093 = vmul.f32 %v1035, %v1066
      %v1094 = vmul.f32 %v1036, %v1070
      %v1095 = vmul.f32 %v1037, %v1062
      %v1096 = vmul.f32 %v1038, %v1066
      %v1097 = vmul.f32 %v1039, %v1070
      %1098 = vst [vmem:[#allocation2 + $0x8] sm:$0xff] %v1074
      %1099 = vst [vmem:[#allocation2 + $0x10] sm:$0xff] %v1075
      %vm1100 = vcmask 785408
      %1101 = vst.msk [vmem:[#allocation2 + $0x18] sm:$0xff] %vm1100, %v1076
      %1102 = vst [vmem:[#allocation2 + $0x28] sm:$0xff] %v1077
      %1103 = vst [vmem:[#allocation2 + $0x30] sm:$0xff] %v1078
      %1104 = vst.msk [vmem:[#allocation2 + $0x38] sm:$0xff] %vm1100, %v1079
      %1105 = vst [vmem:[#allocation2 + $0x48] sm:$0xff] %v1080
      %1106 = vst [vmem:[#allocation2 + $0x50] sm:$0xff] %v1081
      %1107 = vst.msk [vmem:[#allocation2 + $0x58] sm:$0xff] %vm1100, %v1082
      %1108 = vst [vmem:[#allocation2 + $0x68] sm:$0xff] %v1083
      %1109 = vst [vmem:[#allocation2 + $0x70] sm:$0xff] %v1084
      %1110 = vst.msk [vmem:[#allocation2 + $0x78] sm:$0xff] %vm1100, %v1085
      %1111 = vst [vmem:[#allocation2 + $0x88] sm:$0xff] %v1086
      %1112 = vst [vmem:[#allocation2 + $0x90] sm:$0xff] %v1087
      %1113 = vst.msk [vmem:[#allocation2 + $0x98] sm:$0xff] %vm1100, %v1088
      %1114 = vst [vmem:[#allocation2 + $0xa8] sm:$0xff] %v1089
      %1115 = vst [vmem:[#allocation2 + $0xb0] sm:$0xff] %v1090
      %1116 = vst.msk [vmem:[#allocation2 + $0xb8] sm:$0xff] %vm1100, %v1091
      %1117 = vst [vmem:[#allocation2 + $0xc8] sm:$0xff] %v1092
      %1118 = vst [vmem:[#allocation2 + $0xd0] sm:$0xff] %v1093
      %1119 = vst.msk [vmem:[#allocation2 + $0xd8] sm:$0xff] %vm1100, %v1094
      %1120 = vst [vmem:[#allocation2 + $0xe8] sm:$0xff] %v1095
      %1121 = vst [vmem:[#allocation2 + $0xf0] sm:$0xff] %v1096
      %1122 = vst.msk [vmem:[#allocation2 + $0xf8] sm:$0xff] %vm1100, %v1097
      %v1123 = vld [vmem:[%s3] sm:$0xff]
      %v1124 = vld [vmem:[%s3 + $0x8] sm:$0xff]
      %v1125 = vld [vmem:[%s3 + $0x10] sm:$0xff]
      %v1126 = vld [vmem:[%s3 + $0x18] sm:$0xff]
      %v1127 = vld [vmem:[%s3 + $0x20] sm:$0xff]
      %v1128 = vld [vmem:[%s3 + $0x28] sm:$0xff]
      %v1129 = vld [vmem:[%s3 + $0x30] sm:$0xff]
      %v1130 = vld [vmem:[%s3 + $0x38] sm:$0xff]
      %v1131 = vld [vmem:[#allocation2] sm:$0xff]
      %v1132 = vld [vmem:[#allocation2 + $0x8] sm:$0xff]
      %v1133 = vld [vmem:[#allocation2 + $0x10] sm:$0xff]
      %v1134 = vld [vmem:[#allocation2 + $0x18] sm:$0xff]
      %v1135 = vld [vmem:[#allocation2 + $0x20] sm:$0xff]
      %v1136 = vld [vmem:[#allocation2 + $0x28] sm:$0xff]
      %v1137 = vld [vmem:[#allocation2 + $0x30] sm:$0xff]
      %v1138 = vld [vmem:[#allocation2 + $0x38] sm:$0xff]
      %v1139 = vld [vmem:[#allocation2 + $0x40] sm:$0xff]
      %v1140 = vld [vmem:[#allocation2 + $0x48] sm:$0xff]
      %v1141 = vld [vmem:[#allocation2 + $0x50] sm:$0xff]
      %v1142 = vld [vmem:[#allocation2 + $0x58] sm:$0xff]
      %v1143 = vld [vmem:[#allocation2 + $0x60] sm:$0xff]
      %v1144 = vld [vmem:[#allocation2 + $0x68] sm:$0xff]
      %v1145 = vld [vmem:[#allocation2 + $0x70] sm:$0xff]
      %v1146 = vld [vmem:[#allocation2 + $0x78] sm:$0xff]
      %v1147 = vld [vmem:[#allocation2 + $0x80] sm:$0xff]
      %v1148 = vld [vmem:[#allocation2 + $0x88] sm:$0xff]
      %v1149 = vld [vmem:[#allocation2 + $0x90] sm:$0xff]
      %v1150 = vld [vmem:[#allocation2 + $0x98] sm:$0xff]
      %v1151 = vld [vmem:[#allocation2 + $0xa0] sm:$0xff]
      %v1152 = vld [vmem:[#allocation2 + $0xa8] sm:$0xff]
      %v1153 = vld [vmem:[#allocation2 + $0xb0] sm:$0xff]
      %v1154 = vld [vmem:[#allocation2 + $0xb8] sm:$0xff]
      %v1155 = vld [vmem:[#allocation2 + $0xc0] sm:$0xff]
      %v1156 = vld [vmem:[#allocation2 + $0xc8] sm:$0xff]
      %v1157 = vld [vmem:[#allocation2 + $0xd0] sm:$0xff]
      %v1158 = vld [vmem:[#allocation2 + $0xd8] sm:$0xff]
      %v1159 = vld [vmem:[#allocation2 + $0xe0] sm:$0xff]
      %v1160 = vld [vmem:[#allocation2 + $0xe8] sm:$0xff]
      %v1161 = vld [vmem:[#allocation2 + $0xf0] sm:$0xff]
      %v1162 = vld [vmem:[#allocation2 + $0xf8] sm:$0xff]
      %1164 = vset.pattern.permute.xlu0 0
      %1165 = vperm.xlu0 %1164, %v1123
      %v1166 = vpop.permute.xlu0 %1165
      %1169 = vset.pattern.permute.xlu0 0
      %1170 = vperm.xlu0 %1169, %v1124
      %v1171 = vpop.permute.xlu0 %1170
      %1174 = vset.pattern.permute.xlu0 0
      %1175 = vperm.xlu0 %1174, %v1125
      %v1176 = vpop.permute.xlu0 %1175
      %1179 = vset.pattern.permute.xlu0 0
      %1180 = vperm.xlu0 %1179, %v1126
      %v1181 = vpop.permute.xlu0 %1180
      %1184 = vset.pattern.permute.xlu0 0
      %1185 = vperm.xlu0 %1184, %v1127
      %v1186 = vpop.permute.xlu0 %1185
      %1189 = vset.pattern.permute.xlu0 0
      %1190 = vperm.xlu0 %1189, %v1128
      %v1191 = vpop.permute.xlu0 %1190
      %1194 = vset.pattern.permute.xlu0 0
      %1195 = vperm.xlu0 %1194, %v1129
      %v1196 = vpop.permute.xlu0 %1195
      %1199 = vset.pattern.permute.xlu0 0
      %1200 = vperm.xlu0 %1199, %v1130
      %v1201 = vpop.permute.xlu0 %1200
      %v1203 = vmul.f32 %v1131, %v1166
      %v1204 = vmul.f32 %v1132, %v1166
      %v1205 = vmul.f32 %v1133, %v1166
      %v1206 = vmul.f32 %v1134, %v1166
      %v1207 = vmul.f32 %v1135, %v1171
      %v1208 = vmul.f32 %v1136, %v1171
      %v1209 = vmul.f32 %v1137, %v1171
      %v1210 = vmul.f32 %v1138, %v1171
      %v1211 = vmul.f32 %v1139, %v1176
      %v1212 = vmul.f32 %v1140, %v1176
      %v1213 = vmul.f32 %v1141, %v1176
      %v1214 = vmul.f32 %v1142, %v1176
      %v1215 = vmul.f32 %v1143, %v1181
      %v1216 = vmul.f32 %v1144, %v1181
      %v1217 = vmul.f32 %v1145, %v1181
      %v1218 = vmul.f32 %v1146, %v1181
      %v1219 = vmul.f32 %v1147, %v1186
      %v1220 = vmul.f32 %v1148, %v1186
      %v1221 = vmul.f32 %v1149, %v1186
      %v1222 = vmul.f32 %v1150, %v1186
      %v1223 = vmul.f32 %v1151, %v1191
      %v1224 = vmul.f32 %v1152, %v1191
      %v1225 = vmul.f32 %v1153, %v1191
      %v1226 = vmul.f32 %v1154, %v1191
      %v1227 = vmul.f32 %v1155, %v1196
      %v1228 = vmul.f32 %v1156, %v1196
      %v1229 = vmul.f32 %v1157, %v1196
      %v1230 = vmul.f32 %v1158, %v1196
      %v1231 = vmul.f32 %v1159, %v1201
      %v1232 = vmul.f32 %v1160, %v1201
      %v1233 = vmul.f32 %v1161, %v1201
      %v1234 = vmul.f32 %v1162, %v1201
      %v1235 = vadd.f32 %v1203, 0.0
      %v1236 = vadd.f32 %v1204, 0.0
      %v1237 = vadd.f32 %v1205, 0.0
      %v1238 = vadd.f32 %v1206, 0.0
      %v1239 = vadd.f32 %v1207, 0.0
      %v1240 = vadd.f32 %v1208, 0.0
      %v1241 = vadd.f32 %v1209, 0.0
      %v1242 = vadd.f32 %v1210, 0.0
      %v1243 = vadd.f32 %v1211, 0.0
      %v1244 = vadd.f32 %v1212, 0.0
      %v1245 = vadd.f32 %v1213, 0.0
      %v1246 = vadd.f32 %v1214, 0.0
      %v1247 = vadd.f32 %v1215, 0.0
      %v1248 = vadd.f32 %v1216, 0.0
      %v1249 = vadd.f32 %v1217, 0.0
      %v1250 = vadd.f32 %v1218, 0.0
      %v1251 = vadd.f32 %v1219, 0.0
      %v1252 = vadd.f32 %v1220, 0.0
      %v1253 = vadd.f32 %v1221, 0.0
      %v1254 = vadd.f32 %v1222, 0.0
      %v1255 = vadd.f32 %v1223, 0.0
      %v1256 = vadd.f32 %v1224, 0.0
      %v1257 = vadd.f32 %v1225, 0.0
      %v1258 = vadd.f32 %v1226, 0.0
      %v1259 = vadd.f32 %v1227, 0.0
      %v1260 = vadd.f32 %v1228, 0.0
      %v1261 = vadd.f32 %v1229, 0.0
      %v1262 = vadd.f32 %v1230, 0.0
      %v1263 = vadd.f32 %v1231, 0.0
      %v1264 = vadd.f32 %v1232, 0.0
      %v1265 = vadd.f32 %v1233, 0.0
      %v1266 = vadd.f32 %v1234, 0.0
      %1267 = vset.pattern.permute.xlu0 1
      %1268 = vperm.xlu0 %1267, %v1123
      %v1269 = vpop.permute.xlu0 %1268
      %1271 = vset.pattern.permute.xlu0 1
      %1272 = vperm.xlu0 %1271, %v1124
      %v1273 = vpop.permute.xlu0 %1272
      %1275 = vset.pattern.permute.xlu0 1
      %1276 = vperm.xlu0 %1275, %v1125
      %v1277 = vpop.permute.xlu0 %1276
      %1279 = vset.pattern.permute.xlu0 1
      %1280 = vperm.xlu0 %1279, %v1126
      %v1281 = vpop.permute.xlu0 %1280
      %1283 = vset.pattern.permute.xlu0 1
      %1284 = vperm.xlu0 %1283, %v1127
      %v1285 = vpop.permute.xlu0 %1284
      %1287 = vset.pattern.permute.xlu0 1
      %1288 = vperm.xlu0 %1287, %v1128
      %v1289 = vpop.permute.xlu0 %1288
      %1291 = vset.pattern.permute.xlu0 1
      %1292 = vperm.xlu0 %1291, %v1129
      %v1293 = vpop.permute.xlu0 %1292
      %1295 = vset.pattern.permute.xlu0 1
      %1296 = vperm.xlu0 %1295, %v1130
      %v1297 = vpop.permute.xlu0 %1296
      %v1299 = vmul.f32 %v1131, %v1269
      %v1300 = vmul.f32 %v1132, %v1269
      %v1301 = vmul.f32 %v1133, %v1269
      %v1302 = vmul.f32 %v1134, %v1269
      %v1303 = vmul.f32 %v1135, %v1273
      %v1304 = vmul.f32 %v1136, %v1273
      %v1305 = vmul.f32 %v1137, %v1273
      %v1306 = vmul.f32 %v1138, %v1273
      %v1307 = vmul.f32 %v1139, %v1277
      %v1308 = vmul.f32 %v1140, %v1277
      %v1309 = vmul.f32 %v1141, %v1277
      %v1310 = vmul.f32 %v1142, %v1277
      %v1311 = vmul.f32 %v1143, %v1281
      %v1312 = vmul.f32 %v1144, %v1281
      %v1313 = vmul.f32 %v1145, %v1281
      %v1314 = vmul.f32 %v1146, %v1281
      %v1315 = vmul.f32 %v1147, %v1285
      %v1316 = vmul.f32 %v1148, %v1285
      %v1317 = vmul.f32 %v1149, %v1285
      %v1318 = vmul.f32 %v1150, %v1285
      %v1319 = vmul.f32 %v1151, %v1289
      %v1320 = vmul.f32 %v1152, %v1289
      %v1321 = vmul.f32 %v1153, %v1289
      %v1322 = vmul.f32 %v1154, %v1289
      %v1323 = vmul.f32 %v1155, %v1293
      %v1324 = vmul.f32 %v1156, %v1293
      %v1325 = vmul.f32 %v1157, %v1293
      %v1326 = vmul.f32 %v1158, %v1293
      %v1327 = vmul.f32 %v1159, %v1297
      %v1328 = vmul.f32 %v1160, %v1297
      %v1329 = vmul.f32 %v1161, %v1297
      %v1330 = vmul.f32 %v1162, %v1297
      %1363 = vrot.lane.b32.xlu0 %v1299, 127
      %v1364 = vpop.permute.xlu0 %1363
      %1365 = vrot.lane.b32.xlu0 %v1300, 127
      %v1366 = vpop.permute.xlu0 %1365
      %1367 = vrot.lane.b32.xlu0 %v1301, 127
      %v1368 = vpop.permute.xlu0 %1367
      %1369 = vrot.lane.b32.xlu0 %v1302, 127
      %v1370 = vpop.permute.xlu0 %1369
      %1371 = vrot.lane.b32.xlu0 %v1303, 127
      %v1372 = vpop.permute.xlu0 %1371
      %1373 = vrot.lane.b32.xlu0 %v1304, 127
      %v1374 = vpop.permute.xlu0 %1373
      %1375 = vrot.lane.b32.xlu0 %v1305, 127
      %v1376 = vpop.permute.xlu0 %1375
      %1377 = vrot.lane.b32.xlu0 %v1306, 127
      %v1378 = vpop.permute.xlu0 %1377
      %1379 = vrot.lane.b32.xlu0 %v1307, 127
      %v1380 = vpop.permute.xlu0 %1379
      %1381 = vrot.lane.b32.xlu0 %v1308, 127
      %v1382 = vpop.permute.xlu0 %1381
      %1383 = vrot.lane.b32.xlu0 %v1309, 127
      %v1384 = vpop.permute.xlu0 %1383
      %1385 = vrot.lane.b32.xlu0 %v1310, 127
      %v1386 = vpop.permute.xlu0 %1385
      %1387 = vrot.lane.b32.xlu0 %v1311, 127
      %v1388 = vpop.permute.xlu0 %1387
      %1389 = vrot.lane.b32.xlu0 %v1312, 127
      %v1390 = vpop.permute.xlu0 %1389
      %1391 = vrot.lane.b32.xlu0 %v1313, 127
      %v1392 = vpop.permute.xlu0 %1391
      %1393 = vrot.lane.b32.xlu0 %v1314, 127
      %v1394 = vpop.permute.xlu0 %1393
      %1395 = vrot.lane.b32.xlu0 %v1315, 127
      %v1396 = vpop.permute.xlu0 %1395
      %1397 = vrot.lane.b32.xlu0 %v1316, 127
      %v1398 = vpop.permute.xlu0 %1397
      %1399 = vrot.lane.b32.xlu0 %v1317, 127
      %v1400 = vpop.permute.xlu0 %1399
      %1401 = vrot.lane.b32.xlu0 %v1318, 127
      %v1402 = vpop.permute.xlu0 %1401
      %1403 = vrot.lane.b32.xlu0 %v1319, 127
      %v1404 = vpop.permute.xlu0 %1403
      %1405 = vrot.lane.b32.xlu0 %v1320, 127
      %v1406 = vpop.permute.xlu0 %1405
      %1407 = vrot.lane.b32.xlu0 %v1321, 127
      %v1408 = vpop.permute.xlu0 %1407
      %1409 = vrot.lane.b32.xlu0 %v1322, 127
      %v1410 = vpop.permute.xlu0 %1409
      %1411 = vrot.lane.b32.xlu0 %v1323, 127
      %v1412 = vpop.permute.xlu0 %1411
      %1413 = vrot.lane.b32.xlu0 %v1324, 127
      %v1414 = vpop.permute.xlu0 %1413
      %1415 = vrot.lane.b32.xlu0 %v1325, 127
      %v1416 = vpop.permute.xlu0 %1415
      %1417 = vrot.lane.b32.xlu0 %v1326, 127
      %v1418 = vpop.permute.xlu0 %1417
      %1419 = vrot.lane.b32.xlu0 %v1327, 127
      %v1420 = vpop.permute.xlu0 %1419
      %1421 = vrot.lane.b32.xlu0 %v1328, 127
      %v1422 = vpop.permute.xlu0 %1421
      %1423 = vrot.lane.b32.xlu0 %v1329, 127
      %v1424 = vpop.permute.xlu0 %1423
      %1425 = vrot.lane.b32.xlu0 %v1330, 127
      %v1426 = vpop.permute.xlu0 %1425
      %v1427 = vsel %vm404, %v1364, %v1366
      %v1428 = vsel %vm404, %v1366, %v1368
      %v1429 = vsel %vm404, %v1368, %v1370
      %v1430 = vsel %vm404, %v1372, %v1374
      %v1431 = vsel %vm404, %v1374, %v1376
      %v1432 = vsel %vm404, %v1376, %v1378
      %v1433 = vsel %vm404, %v1380, %v1382
      %v1434 = vsel %vm404, %v1382, %v1384
      %v1435 = vsel %vm404, %v1384, %v1386
      %v1436 = vsel %vm404, %v1388, %v1390
      %v1437 = vsel %vm404, %v1390, %v1392
      %v1438 = vsel %vm404, %v1392, %v1394
      %v1439 = vsel %vm404, %v1396, %v1398
      %v1440 = vsel %vm404, %v1398, %v1400
      %v1441 = vsel %vm404, %v1400, %v1402
      %v1442 = vsel %vm404, %v1404, %v1406
      %v1443 = vsel %vm404, %v1406, %v1408
      %v1444 = vsel %vm404, %v1408, %v1410
      %v1445 = vsel %vm404, %v1412, %v1414
      %v1446 = vsel %vm404, %v1414, %v1416
      %v1447 = vsel %vm404, %v1416, %v1418
      %v1448 = vsel %vm404, %v1420, %v1422
      %v1449 = vsel %vm404, %v1422, %v1424
      %v1450 = vsel %vm404, %v1424, %v1426
      %v1483 = vadd.f32 %v1235, %v1427
      %v1484 = vadd.f32 %v1236, %v1428
      %v1485 = vadd.f32 %v1237, %v1429
      %v1486 = vadd.f32 %v1238, %v1370
      %v1487 = vadd.f32 %v1239, %v1430
      %v1488 = vadd.f32 %v1240, %v1431
      %v1489 = vadd.f32 %v1241, %v1432
      %v1490 = vadd.f32 %v1242, %v1378
      %v1491 = vadd.f32 %v1243, %v1433
      %v1492 = vadd.f32 %v1244, %v1434
      %v1493 = vadd.f32 %v1245, %v1435
      %v1494 = vadd.f32 %v1246, %v1386
      %v1495 = vadd.f32 %v1247, %v1436
      %v1496 = vadd.f32 %v1248, %v1437
      %v1497 = vadd.f32 %v1249, %v1438
      %v1498 = vadd.f32 %v1250, %v1394
      %v1499 = vadd.f32 %v1251, %v1439
      %v1500 = vadd.f32 %v1252, %v1440
      %v1501 = vadd.f32 %v1253, %v1441
      %v1502 = vadd.f32 %v1254, %v1402
      %v1503 = vadd.f32 %v1255, %v1442
      %v1504 = vadd.f32 %v1256, %v1443
      %v1505 = vadd.f32 %v1257, %v1444
      %v1506 = vadd.f32 %v1258, %v1410
      %v1507 = vadd.f32 %v1259, %v1445
      %v1508 = vadd.f32 %v1260, %v1446
      %v1509 = vadd.f32 %v1261, %v1447
      %v1510 = vadd.f32 %v1262, %v1418
      %v1511 = vadd.f32 %v1263, %v1448
      %v1512 = vadd.f32 %v1264, %v1449
      %v1513 = vadd.f32 %v1265, %v1450
      %v1514 = vadd.f32 %v1266, %v1426
      %1515 = vset.pattern.permute.xlu0 2
      %1516 = vperm.xlu0 %1515, %v1123
      %v1517 = vpop.permute.xlu0 %1516
      %1519 = vset.pattern.permute.xlu0 2
      %1520 = vperm.xlu0 %1519, %v1124
      %v1521 = vpop.permute.xlu0 %1520
      %1523 = vset.pattern.permute.xlu0 2
      %1524 = vperm.xlu0 %1523, %v1125
      %v1525 = vpop.permute.xlu0 %1524
      %1527 = vset.pattern.permute.xlu0 2
      %1528 = vperm.xlu0 %1527, %v1126
      %v1529 = vpop.permute.xlu0 %1528
      %1531 = vset.pattern.permute.xlu0 2
      %1532 = vperm.xlu0 %1531, %v1127
      %v1533 = vpop.permute.xlu0 %1532
      %1535 = vset.pattern.permute.xlu0 2
      %1536 = vperm.xlu0 %1535, %v1128
      %v1537 = vpop.permute.xlu0 %1536
      %1539 = vset.pattern.permute.xlu0 2
      %1540 = vperm.xlu0 %1539, %v1129
      %v1541 = vpop.permute.xlu0 %1540
      %1543 = vset.pattern.permute.xlu0 2
      %1544 = vperm.xlu0 %1543, %v1130
      %v1545 = vpop.permute.xlu0 %1544
      %v1547 = vmul.f32 %v1131, %v1517
      %v1548 = vmul.f32 %v1132, %v1517
      %v1549 = vmul.f32 %v1133, %v1517
      %v1550 = vmul.f32 %v1134, %v1517
      %v1551 = vmul.f32 %v1135, %v1521
      %v1552 = vmul.f32 %v1136, %v1521
      %v1553 = vmul.f32 %v1137, %v1521
      %v1554 = vmul.f32 %v1138, %v1521
      %v1555 = vmul.f32 %v1139, %v1525
      %v1556 = vmul.f32 %v1140, %v1525
      %v1557 = vmul.f32 %v1141, %v1525
      %v1558 = vmul.f32 %v1142, %v1525
      %v1559 = vmul.f32 %v1143, %v1529
      %v1560 = vmul.f32 %v1144, %v1529
      %v1561 = vmul.f32 %v1145, %v1529
      %v1562 = vmul.f32 %v1146, %v1529
      %v1563 = vmul.f32 %v1147, %v1533
      %v1564 = vmul.f32 %v1148, %v1533
      %v1565 = vmul.f32 %v1149, %v1533
      %v1566 = vmul.f32 %v1150, %v1533
      %v1567 = vmul.f32 %v1151, %v1537
      %v1568 = vmul.f32 %v1152, %v1537
      %v1569 = vmul.f32 %v1153, %v1537
      %v1570 = vmul.f32 %v1154, %v1537
      %v1571 = vmul.f32 %v1155, %v1541
      %v1572 = vmul.f32 %v1156, %v1541
      %v1573 = vmul.f32 %v1157, %v1541
      %v1574 = vmul.f32 %v1158, %v1541
      %v1575 = vmul.f32 %v1159, %v1545
      %v1576 = vmul.f32 %v1160, %v1545
      %v1577 = vmul.f32 %v1161, %v1545
      %v1578 = vmul.f32 %v1162, %v1545
      %1611 = vrot.lane.b32.xlu0 %v1547, 126
      %v1612 = vpop.permute.xlu0 %1611
      %1613 = vrot.lane.b32.xlu0 %v1548, 126
      %v1614 = vpop.permute.xlu0 %1613
      %1615 = vrot.lane.b32.xlu0 %v1549, 126
      %v1616 = vpop.permute.xlu0 %1615
      %1617 = vrot.lane.b32.xlu0 %v1550, 126
      %v1618 = vpop.permute.xlu0 %1617
      %1619 = vrot.lane.b32.xlu0 %v1551, 126
      %v1620 = vpop.permute.xlu0 %1619
      %1621 = vrot.lane.b32.xlu0 %v1552, 126
      %v1622 = vpop.permute.xlu0 %1621
      %1623 = vrot.lane.b32.xlu0 %v1553, 126
      %v1624 = vpop.permute.xlu0 %1623
      %1625 = vrot.lane.b32.xlu0 %v1554, 126
      %v1626 = vpop.permute.xlu0 %1625
      %1627 = vrot.lane.b32.xlu0 %v1555, 126
      %v1628 = vpop.permute.xlu0 %1627
      %1629 = vrot.lane.b32.xlu0 %v1556, 126
      %v1630 = vpop.permute.xlu0 %1629
      %1631 = vrot.lane.b32.xlu0 %v1557, 126
      %v1632 = vpop.permute.xlu0 %1631
      %1633 = vrot.lane.b32.xlu0 %v1558, 126
      %v1634 = vpop.permute.xlu0 %1633
      %1635 = vrot.lane.b32.xlu0 %v1559, 126
      %v1636 = vpop.permute.xlu0 %1635
      %1637 = vrot.lane.b32.xlu0 %v1560, 126
      %v1638 = vpop.permute.xlu0 %1637
      %1639 = vrot.lane.b32.xlu0 %v1561, 126
      %v1640 = vpop.permute.xlu0 %1639
      %1641 = vrot.lane.b32.xlu0 %v1562, 126
      %v1642 = vpop.permute.xlu0 %1641
      %1643 = vrot.lane.b32.xlu0 %v1563, 126
      %v1644 = vpop.permute.xlu0 %1643
      %1645 = vrot.lane.b32.xlu0 %v1564, 126
      %v1646 = vpop.permute.xlu0 %1645
      %1647 = vrot.lane.b32.xlu0 %v1565, 126
      %v1648 = vpop.permute.xlu0 %1647
      %1649 = vrot.lane.b32.xlu0 %v1566, 126
      %v1650 = vpop.permute.xlu0 %1649
      %1651 = vrot.lane.b32.xlu0 %v1567, 126
      %v1652 = vpop.permute.xlu0 %1651
      %1653 = vrot.lane.b32.xlu0 %v1568, 126
      %v1654 = vpop.permute.xlu0 %1653
      %1655 = vrot.lane.b32.xlu0 %v1569, 126
      %v1656 = vpop.permute.xlu0 %1655
      %1657 = vrot.lane.b32.xlu0 %v1570, 126
      %v1658 = vpop.permute.xlu0 %1657
      %1659 = vrot.lane.b32.xlu0 %v1571, 126
      %v1660 = vpop.permute.xlu0 %1659
      %1661 = vrot.lane.b32.xlu0 %v1572, 126
      %v1662 = vpop.permute.xlu0 %1661
      %1663 = vrot.lane.b32.xlu0 %v1573, 126
      %v1664 = vpop.permute.xlu0 %1663
      %1665 = vrot.lane.b32.xlu0 %v1574, 126
      %v1666 = vpop.permute.xlu0 %1665
      %1667 = vrot.lane.b32.xlu0 %v1575, 126
      %v1668 = vpop.permute.xlu0 %1667
      %1669 = vrot.lane.b32.xlu0 %v1576, 126
      %v1670 = vpop.permute.xlu0 %1669
      %1671 = vrot.lane.b32.xlu0 %v1577, 126
      %v1672 = vpop.permute.xlu0 %1671
      %1673 = vrot.lane.b32.xlu0 %v1578, 126
      %v1674 = vpop.permute.xlu0 %1673
      %v1675 = vsel %vm416, %v1612, %v1614
      %v1676 = vsel %vm416, %v1614, %v1616
      %v1677 = vsel %vm416, %v1616, %v1618
      %v1678 = vsel %vm416, %v1620, %v1622
      %v1679 = vsel %vm416, %v1622, %v1624
      %v1680 = vsel %vm416, %v1624, %v1626
      %v1681 = vsel %vm416, %v1628, %v1630
      %v1682 = vsel %vm416, %v1630, %v1632
      %v1683 = vsel %vm416, %v1632, %v1634
      %v1684 = vsel %vm416, %v1636, %v1638
      %v1685 = vsel %vm416, %v1638, %v1640
      %v1686 = vsel %vm416, %v1640, %v1642
      %v1687 = vsel %vm416, %v1644, %v1646
      %v1688 = vsel %vm416, %v1646, %v1648
      %v1689 = vsel %vm416, %v1648, %v1650
      %v1690 = vsel %vm416, %v1652, %v1654
      %v1691 = vsel %vm416, %v1654, %v1656
      %v1692 = vsel %vm416, %v1656, %v1658
      %v1693 = vsel %vm416, %v1660, %v1662
      %v1694 = vsel %vm416, %v1662, %v1664
      %v1695 = vsel %vm416, %v1664, %v1666
      %v1696 = vsel %vm416, %v1668, %v1670
      %v1697 = vsel %vm416, %v1670, %v1672
      %v1698 = vsel %vm416, %v1672, %v1674
      %v1731 = vadd.f32 %v1483, %v1675
      %v1732 = vadd.f32 %v1484, %v1676
      %v1733 = vadd.f32 %v1485, %v1677
      %v1734 = vadd.f32 %v1486, %v1618
      %v1735 = vadd.f32 %v1487, %v1678
      %v1736 = vadd.f32 %v1488, %v1679
      %v1737 = vadd.f32 %v1489, %v1680
      %v1738 = vadd.f32 %v1490, %v1626
      %v1739 = vadd.f32 %v1491, %v1681
      %v1740 = vadd.f32 %v1492, %v1682
      %v1741 = vadd.f32 %v1493, %v1683
      %v1742 = vadd.f32 %v1494, %v1634
      %v1743 = vadd.f32 %v1495, %v1684
      %v1744 = vadd.f32 %v1496, %v1685
      %v1745 = vadd.f32 %v1497, %v1686
      %v1746 = vadd.f32 %v1498, %v1642
      %v1747 = vadd.f32 %v1499, %v1687
      %v1748 = vadd.f32 %v1500, %v1688
      %v1749 = vadd.f32 %v1501, %v1689
      %v1750 = vadd.f32 %v1502, %v1650
      %v1751 = vadd.f32 %v1503, %v1690
      %v1752 = vadd.f32 %v1504, %v1691
      %v1753 = vadd.f32 %v1505, %v1692
      %v1754 = vadd.f32 %v1506, %v1658
      %v1755 = vadd.f32 %v1507, %v1693
      %v1756 = vadd.f32 %v1508, %v1694
      %v1757 = vadd.f32 %v1509, %v1695
      %v1758 = vadd.f32 %v1510, %v1666
      %v1759 = vadd.f32 %v1511, %v1696
      %v1760 = vadd.f32 %v1512, %v1697
      %v1761 = vadd.f32 %v1513, %v1698
      %v1762 = vadd.f32 %v1514, %v1674
      %1763 = vset.pattern.permute.xlu0 3
      %1764 = vperm.xlu0 %1763, %v1123
      %v1765 = vpop.permute.xlu0 %1764
      %1767 = vset.pattern.permute.xlu0 3
      %1768 = vperm.xlu0 %1767, %v1124
      %v1769 = vpop.permute.xlu0 %1768
      %1771 = vset.pattern.permute.xlu0 3
      %1772 = vperm.xlu0 %1771, %v1125
      %v1773 = vpop.permute.xlu0 %1772
      %1775 = vset.pattern.permute.xlu0 3
      %1776 = vperm.xlu0 %1775, %v1126
      %v1777 = vpop.permute.xlu0 %1776
      %1779 = vset.pattern.permute.xlu0 3
      %1780 = vperm.xlu0 %1779, %v1127
      %v1781 = vpop.permute.xlu0 %1780
      %1783 = vset.pattern.permute.xlu0 3
      %1784 = vperm.xlu0 %1783, %v1128
      %v1785 = vpop.permute.xlu0 %1784
      %1787 = vset.pattern.permute.xlu0 3
      %1788 = vperm.xlu0 %1787, %v1129
      %v1789 = vpop.permute.xlu0 %1788
      %1791 = vset.pattern.permute.xlu0 3
      %1792 = vperm.xlu0 %1791, %v1130
      %v1793 = vpop.permute.xlu0 %1792
      %v1795 = vmul.f32 %v1131, %v1765
      %v1796 = vmul.f32 %v1132, %v1765
      %v1797 = vmul.f32 %v1133, %v1765
      %v1798 = vmul.f32 %v1134, %v1765
      %v1799 = vmul.f32 %v1135, %v1769
      %v1800 = vmul.f32 %v1136, %v1769
      %v1801 = vmul.f32 %v1137, %v1769
      %v1802 = vmul.f32 %v1138, %v1769
      %v1803 = vmul.f32 %v1139, %v1773
      %v1804 = vmul.f32 %v1140, %v1773
      %v1805 = vmul.f32 %v1141, %v1773
      %v1806 = vmul.f32 %v1142, %v1773
      %v1807 = vmul.f32 %v1143, %v1777
      %v1808 = vmul.f32 %v1144, %v1777
      %v1809 = vmul.f32 %v1145, %v1777
      %v1810 = vmul.f32 %v1146, %v1777
      %v1811 = vmul.f32 %v1147, %v1781
      %v1812 = vmul.f32 %v1148, %v1781
      %v1813 = vmul.f32 %v1149, %v1781
      %v1814 = vmul.f32 %v1150, %v1781
      %v1815 = vmul.f32 %v1151, %v1785
      %v1816 = vmul.f32 %v1152, %v1785
      %v1817 = vmul.f32 %v1153, %v1785
      %v1818 = vmul.f32 %v1154, %v1785
      %v1819 = vmul.f32 %v1155, %v1789
      %v1820 = vmul.f32 %v1156, %v1789
      %v1821 = vmul.f32 %v1157, %v1789
      %v1822 = vmul.f32 %v1158, %v1789
      %v1823 = vmul.f32 %v1159, %v1793
      %v1824 = vmul.f32 %v1160, %v1793
      %v1825 = vmul.f32 %v1161, %v1793
      %v1826 = vmul.f32 %v1162, %v1793
      %1859 = vrot.lane.b32.xlu0 %v1795, 106
      %v1860 = vpop.permute.xlu0 %1859
      %1861 = vrot.lane.b32.xlu0 %v1796, 106
      %v1862 = vpop.permute.xlu0 %1861
      %1863 = vrot.lane.b32.xlu0 %v1797, 106
      %v1864 = vpop.permute.xlu0 %1863
      %1865 = vrot.lane.b32.xlu0 %v1798, 106
      %v1866 = vpop.permute.xlu0 %1865
      %1867 = vrot.lane.b32.xlu0 %v1799, 106
      %v1868 = vpop.permute.xlu0 %1867
      %1869 = vrot.lane.b32.xlu0 %v1800, 106
      %v1870 = vpop.permute.xlu0 %1869
      %1871 = vrot.lane.b32.xlu0 %v1801, 106
      %v1872 = vpop.permute.xlu0 %1871
      %1873 = vrot.lane.b32.xlu0 %v1802, 106
      %v1874 = vpop.permute.xlu0 %1873
      %1875 = vrot.lane.b32.xlu0 %v1803, 106
      %v1876 = vpop.permute.xlu0 %1875
      %1877 = vrot.lane.b32.xlu0 %v1804, 106
      %v1878 = vpop.permute.xlu0 %1877
      %1879 = vrot.lane.b32.xlu0 %v1805, 106
      %v1880 = vpop.permute.xlu0 %1879
      %1881 = vrot.lane.b32.xlu0 %v1806, 106
      %v1882 = vpop.permute.xlu0 %1881
      %1883 = vrot.lane.b32.xlu0 %v1807, 106
      %v1884 = vpop.permute.xlu0 %1883
      %1885 = vrot.lane.b32.xlu0 %v1808, 106
      %v1886 = vpop.permute.xlu0 %1885
      %1887 = vrot.lane.b32.xlu0 %v1809, 106
      %v1888 = vpop.permute.xlu0 %1887
      %1889 = vrot.lane.b32.xlu0 %v1810, 106
      %v1890 = vpop.permute.xlu0 %1889
      %1891 = vrot.lane.b32.xlu0 %v1811, 106
      %v1892 = vpop.permute.xlu0 %1891
      %1893 = vrot.lane.b32.xlu0 %v1812, 106
      %v1894 = vpop.permute.xlu0 %1893
      %1895 = vrot.lane.b32.xlu0 %v1813, 106
      %v1896 = vpop.permute.xlu0 %1895
      %1897 = vrot.lane.b32.xlu0 %v1814, 106
      %v1898 = vpop.permute.xlu0 %1897
      %1899 = vrot.lane.b32.xlu0 %v1815, 106
      %v1900 = vpop.permute.xlu0 %1899
      %1901 = vrot.lane.b32.xlu0 %v1816, 106
      %v1902 = vpop.permute.xlu0 %1901
      %1903 = vrot.lane.b32.xlu0 %v1817, 106
      %v1904 = vpop.permute.xlu0 %1903
      %1905 = vrot.lane.b32.xlu0 %v1818, 106
      %v1906 = vpop.permute.xlu0 %1905
      %1907 = vrot.lane.b32.xlu0 %v1819, 106
      %v1908 = vpop.permute.xlu0 %1907
      %1909 = vrot.lane.b32.xlu0 %v1820, 106
      %v1910 = vpop.permute.xlu0 %1909
      %1911 = vrot.lane.b32.xlu0 %v1821, 106
      %v1912 = vpop.permute.xlu0 %1911
      %1913 = vrot.lane.b32.xlu0 %v1822, 106
      %v1914 = vpop.permute.xlu0 %1913
      %1915 = vrot.lane.b32.xlu0 %v1823, 106
      %v1916 = vpop.permute.xlu0 %1915
      %1917 = vrot.lane.b32.xlu0 %v1824, 106
      %v1918 = vpop.permute.xlu0 %1917
      %1919 = vrot.lane.b32.xlu0 %v1825, 106
      %v1920 = vpop.permute.xlu0 %1919
      %1921 = vrot.lane.b32.xlu0 %v1826, 106
      %v1922 = vpop.permute.xlu0 %1921
      %v1923 = vsel %vm428, %v1860, %v1862
      %v1924 = vsel %vm428, %v1862, %v1864
      %v1925 = vsel %vm428, %v1864, %v1866
      %v1926 = vsel %vm428, %v1868, %v1870
      %v1927 = vsel %vm428, %v1870, %v1872
      %v1928 = vsel %vm428, %v1872, %v1874
      %v1929 = vsel %vm428, %v1876, %v1878
      %v1930 = vsel %vm428, %v1878, %v1880
      %v1931 = vsel %vm428, %v1880, %v1882
      %v1932 = vsel %vm428, %v1884, %v1886
      %v1933 = vsel %vm428, %v1886, %v1888
      %v1934 = vsel %vm428, %v1888, %v1890
      %v1935 = vsel %vm428, %v1892, %v1894
      %v1936 = vsel %vm428, %v1894, %v1896
      %v1937 = vsel %vm428, %v1896, %v1898
      %v1938 = vsel %vm428, %v1900, %v1902
      %v1939 = vsel %vm428, %v1902, %v1904
      %v1940 = vsel %vm428, %v1904, %v1906
      %v1941 = vsel %vm428, %v1908, %v1910
      %v1942 = vsel %vm428, %v1910, %v1912
      %v1943 = vsel %vm428, %v1912, %v1914
      %v1944 = vsel %vm428, %v1916, %v1918
      %v1945 = vsel %vm428, %v1918, %v1920
      %v1946 = vsel %vm428, %v1920, %v1922
      %v1979 = vadd.f32 %v1731, %v1923
      %v1980 = vadd.f32 %v1732, %v1924
      %v1981 = vadd.f32 %v1733, %v1925
      %v1982 = vadd.f32 %v1734, %v1866
      %v1983 = vadd.f32 %v1735, %v1926
      %v1984 = vadd.f32 %v1736, %v1927
      %v1985 = vadd.f32 %v1737, %v1928
      %v1986 = vadd.f32 %v1738, %v1874
      %v1987 = vadd.f32 %v1739, %v1929
      %v1988 = vadd.f32 %v1740, %v1930
      %v1989 = vadd.f32 %v1741, %v1931
      %v1990 = vadd.f32 %v1742, %v1882
      %v1991 = vadd.f32 %v1743, %v1932
      %v1992 = vadd.f32 %v1744, %v1933
      %v1993 = vadd.f32 %v1745, %v1934
      %v1994 = vadd.f32 %v1746, %v1890
      %v1995 = vadd.f32 %v1747, %v1935
      %v1996 = vadd.f32 %v1748, %v1936
      %v1997 = vadd.f32 %v1749, %v1937
      %v1998 = vadd.f32 %v1750, %v1898
      %v1999 = vadd.f32 %v1751, %v1938
      %v2000 = vadd.f32 %v1752, %v1939
      %v2001 = vadd.f32 %v1753, %v1940
      %v2002 = vadd.f32 %v1754, %v1906
      %v2003 = vadd.f32 %v1755, %v1941
      %v2004 = vadd.f32 %v1756, %v1942
      %v2005 = vadd.f32 %v1757, %v1943
      %v2006 = vadd.f32 %v1758, %v1914
      %v2007 = vadd.f32 %v1759, %v1944
      %v2008 = vadd.f32 %v1760, %v1945
      %v2009 = vadd.f32 %v1761, %v1946
      %v2010 = vadd.f32 %v1762, %v1922
      %2011 = vset.pattern.permute.xlu0 4
      %2012 = vperm.xlu0 %2011, %v1123
      %v2013 = vpop.permute.xlu0 %2012
      %2015 = vset.pattern.permute.xlu0 4
      %2016 = vperm.xlu0 %2015, %v1124
      %v2017 = vpop.permute.xlu0 %2016
      %2019 = vset.pattern.permute.xlu0 4
      %2020 = vperm.xlu0 %2019, %v1125
      %v2021 = vpop.permute.xlu0 %2020
      %2023 = vset.pattern.permute.xlu0 4
      %2024 = vperm.xlu0 %2023, %v1126
      %v2025 = vpop.permute.xlu0 %2024
      %2027 = vset.pattern.permute.xlu0 4
      %2028 = vperm.xlu0 %2027, %v1127
      %v2029 = vpop.permute.xlu0 %2028
      %2031 = vset.pattern.permute.xlu0 4
      %2032 = vperm.xlu0 %2031, %v1128
      %v2033 = vpop.permute.xlu0 %2032
      %2035 = vset.pattern.permute.xlu0 4
      %2036 = vperm.xlu0 %2035, %v1129
      %v2037 = vpop.permute.xlu0 %2036
      %2039 = vset.pattern.permute.xlu0 4
      %2040 = vperm.xlu0 %2039, %v1130
      %v2041 = vpop.permute.xlu0 %2040
      %v2043 = vmul.f32 %v1132, %v2013
      %v2044 = vmul.f32 %v1133, %v2013
      %v2045 = vmul.f32 %v1134, %v2013
      %v2046 = vmul.f32 %v1136, %v2017
      %v2047 = vmul.f32 %v1137, %v2017
      %v2048 = vmul.f32 %v1138, %v2017
      %v2049 = vmul.f32 %v1140, %v2021
      %v2050 = vmul.f32 %v1141, %v2021
      %v2051 = vmul.f32 %v1142, %v2021
      %v2052 = vmul.f32 %v1144, %v2025
      %v2053 = vmul.f32 %v1145, %v2025
      %v2054 = vmul.f32 %v1146, %v2025
      %v2055 = vmul.f32 %v1148, %v2029
      %v2056 = vmul.f32 %v1149, %v2029
      %v2057 = vmul.f32 %v1150, %v2029
      %v2058 = vmul.f32 %v1152, %v2033
      %v2059 = vmul.f32 %v1153, %v2033
      %v2060 = vmul.f32 %v1154, %v2033
      %v2061 = vmul.f32 %v1156, %v2037
      %v2062 = vmul.f32 %v1157, %v2037
      %v2063 = vmul.f32 %v1158, %v2037
      %v2064 = vmul.f32 %v1160, %v2041
      %v2065 = vmul.f32 %v1161, %v2041
      %v2066 = vmul.f32 %v1162, %v2041
      %2091 = vrot.lane.b32.xlu0 %v2043, 105
      %v2092 = vpop.permute.xlu0 %2091
      %2093 = vrot.lane.b32.xlu0 %v2044, 105
      %v2094 = vpop.permute.xlu0 %2093
      %2095 = vrot.lane.b32.xlu0 %v2045, 105
      %v2096 = vpop.permute.xlu0 %2095
      %2097 = vrot.lane.b32.xlu0 %v2046, 105
      %v2098 = vpop.permute.xlu0 %2097
      %2099 = vrot.lane.b32.xlu0 %v2047, 105
      %v2100 = vpop.permute.xlu0 %2099
      %2101 = vrot.lane.b32.xlu0 %v2048, 105
      %v2102 = vpop.permute.xlu0 %2101
      %2103 = vrot.lane.b32.xlu0 %v2049, 105
      %v2104 = vpop.permute.xlu0 %2103
      %2105 = vrot.lane.b32.xlu0 %v2050, 105
      %v2106 = vpop.permute.xlu0 %2105
      %2107 = vrot.lane.b32.xlu0 %v2051, 105
      %v2108 = vpop.permute.xlu0 %2107
      %2109 = vrot.lane.b32.xlu0 %v2052, 105
      %v2110 = vpop.permute.xlu0 %2109
      %2111 = vrot.lane.b32.xlu0 %v2053, 105
      %v2112 = vpop.permute.xlu0 %2111
      %2113 = vrot.lane.b32.xlu0 %v2054, 105
      %v2114 = vpop.permute.xlu0 %2113
      %2115 = vrot.lane.b32.xlu0 %v2055, 105
      %v2116 = vpop.permute.xlu0 %2115
      %2117 = vrot.lane.b32.xlu0 %v2056, 105
      %v2118 = vpop.permute.xlu0 %2117
      %2119 = vrot.lane.b32.xlu0 %v2057, 105
      %v2120 = vpop.permute.xlu0 %2119
      %2121 = vrot.lane.b32.xlu0 %v2058, 105
      %v2122 = vpop.permute.xlu0 %2121
      %2123 = vrot.lane.b32.xlu0 %v2059, 105
      %v2124 = vpop.permute.xlu0 %2123
      %2125 = vrot.lane.b32.xlu0 %v2060, 105
      %v2126 = vpop.permute.xlu0 %2125
      %2127 = vrot.lane.b32.xlu0 %v2061, 105
      %v2128 = vpop.permute.xlu0 %2127
      %2129 = vrot.lane.b32.xlu0 %v2062, 105
      %v2130 = vpop.permute.xlu0 %2129
      %2131 = vrot.lane.b32.xlu0 %v2063, 105
      %v2132 = vpop.permute.xlu0 %2131
      %2133 = vrot.lane.b32.xlu0 %v2064, 105
      %v2134 = vpop.permute.xlu0 %2133
      %2135 = vrot.lane.b32.xlu0 %v2065, 105
      %v2136 = vpop.permute.xlu0 %2135
      %2137 = vrot.lane.b32.xlu0 %v2066, 105
      %v2138 = vpop.permute.xlu0 %2137
      %v2139 = vsel %vm438, %v2092, %v2094
      %v2140 = vsel %vm438, %v2094, %v2096
      %v2141 = vsel %vm438, %v2098, %v2100
      %v2142 = vsel %vm438, %v2100, %v2102
      %v2143 = vsel %vm438, %v2104, %v2106
      %v2144 = vsel %vm438, %v2106, %v2108
      %v2145 = vsel %vm438, %v2110, %v2112
      %v2146 = vsel %vm438, %v2112, %v2114
      %v2147 = vsel %vm438, %v2116, %v2118
      %v2148 = vsel %vm438, %v2118, %v2120
      %v2149 = vsel %vm438, %v2122, %v2124
      %v2150 = vsel %vm438, %v2124, %v2126
      %v2151 = vsel %vm438, %v2128, %v2130
      %v2152 = vsel %vm438, %v2130, %v2132
      %v2153 = vsel %vm438, %v2134, %v2136
      %v2154 = vsel %vm438, %v2136, %v2138
      %v2187 = vadd.f32 %v1979, %v2092
      %v2188 = vadd.f32 %v1980, %v2139
      %v2189 = vadd.f32 %v1981, %v2140
      %v2190 = vadd.f32 %v1982, %v2096
      %v2191 = vadd.f32 %v1983, %v2098
      %v2192 = vadd.f32 %v1984, %v2141
      %v2193 = vadd.f32 %v1985, %v2142
      %v2194 = vadd.f32 %v1986, %v2102
      %v2195 = vadd.f32 %v1987, %v2104
      %v2196 = vadd.f32 %v1988, %v2143
      %v2197 = vadd.f32 %v1989, %v2144
      %v2198 = vadd.f32 %v1990, %v2108
      %v2199 = vadd.f32 %v1991, %v2110
      %v2200 = vadd.f32 %v1992, %v2145
      %v2201 = vadd.f32 %v1993, %v2146
      %v2202 = vadd.f32 %v1994, %v2114
      %v2203 = vadd.f32 %v1995, %v2116
      %v2204 = vadd.f32 %v1996, %v2147
      %v2205 = vadd.f32 %v1997, %v2148
      %v2206 = vadd.f32 %v1998, %v2120
      %v2207 = vadd.f32 %v1999, %v2122
      %v2208 = vadd.f32 %v2000, %v2149
      %v2209 = vadd.f32 %v2001, %v2150
      %v2210 = vadd.f32 %v2002, %v2126
      %v2211 = vadd.f32 %v2003, %v2128
      %v2212 = vadd.f32 %v2004, %v2151
      %v2213 = vadd.f32 %v2005, %v2152
      %v2214 = vadd.f32 %v2006, %v2132
      %v2215 = vadd.f32 %v2007, %v2134
      %v2216 = vadd.f32 %v2008, %v2153
      %v2217 = vadd.f32 %v2009, %v2154
      %v2218 = vadd.f32 %v2010, %v2138
      %2219 = vset.pattern.permute.xlu0 5
      %2220 = vperm.xlu0 %2219, %v1123
      %v2221 = vpop.permute.xlu0 %2220
      %2223 = vset.pattern.permute.xlu0 5
      %2224 = vperm.xlu0 %2223, %v1124
      %v2225 = vpop.permute.xlu0 %2224
      %2227 = vset.pattern.permute.xlu0 5
      %2228 = vperm.xlu0 %2227, %v1125
      %v2229 = vpop.permute.xlu0 %2228
      %2231 = vset.pattern.permute.xlu0 5
      %2232 = vperm.xlu0 %2231, %v1126
      %v2233 = vpop.permute.xlu0 %2232
      %2235 = vset.pattern.permute.xlu0 5
      %2236 = vperm.xlu0 %2235, %v1127
      %v2237 = vpop.permute.xlu0 %2236
      %2239 = vset.pattern.permute.xlu0 5
      %2240 = vperm.xlu0 %2239, %v1128
      %v2241 = vpop.permute.xlu0 %2240
      %2243 = vset.pattern.permute.xlu0 5
      %2244 = vperm.xlu0 %2243, %v1129
      %v2245 = vpop.permute.xlu0 %2244
      %2247 = vset.pattern.permute.xlu0 5
      %2248 = vperm.xlu0 %2247, %v1130
      %v2249 = vpop.permute.xlu0 %2248
      %v2251 = vmul.f32 %v1132, %v2221
      %v2252 = vmul.f32 %v1133, %v2221
      %v2253 = vmul.f32 %v1134, %v2221
      %v2254 = vmul.f32 %v1136, %v2225
      %v2255 = vmul.f32 %v1137, %v2225
      %v2256 = vmul.f32 %v1138, %v2225
      %v2257 = vmul.f32 %v1140, %v2229
      %v2258 = vmul.f32 %v1141, %v2229
      %v2259 = vmul.f32 %v1142, %v2229
      %v2260 = vmul.f32 %v1144, %v2233
      %v2261 = vmul.f32 %v1145, %v2233
      %v2262 = vmul.f32 %v1146, %v2233
      %v2263 = vmul.f32 %v1148, %v2237
      %v2264 = vmul.f32 %v1149, %v2237
      %v2265 = vmul.f32 %v1150, %v2237
      %v2266 = vmul.f32 %v1152, %v2241
      %v2267 = vmul.f32 %v1153, %v2241
      %v2268 = vmul.f32 %v1154, %v2241
      %v2269 = vmul.f32 %v1156, %v2245
      %v2270 = vmul.f32 %v1157, %v2245
      %v2271 = vmul.f32 %v1158, %v2245
      %v2272 = vmul.f32 %v1160, %v2249
      %v2273 = vmul.f32 %v1161, %v2249
      %v2274 = vmul.f32 %v1162, %v2249
      %2299 = vrot.lane.b32.xlu0 %v2251, 104
      %v2300 = vpop.permute.xlu0 %2299
      %2301 = vrot.lane.b32.xlu0 %v2252, 104
      %v2302 = vpop.permute.xlu0 %2301
      %2303 = vrot.lane.b32.xlu0 %v2253, 104
      %v2304 = vpop.permute.xlu0 %2303
      %2305 = vrot.lane.b32.xlu0 %v2254, 104
      %v2306 = vpop.permute.xlu0 %2305
      %2307 = vrot.lane.b32.xlu0 %v2255, 104
      %v2308 = vpop.permute.xlu0 %2307
      %2309 = vrot.lane.b32.xlu0 %v2256, 104
      %v2310 = vpop.permute.xlu0 %2309
      %2311 = vrot.lane.b32.xlu0 %v2257, 104
      %v2312 = vpop.permute.xlu0 %2311
      %2313 = vrot.lane.b32.xlu0 %v2258, 104
      %v2314 = vpop.permute.xlu0 %2313
      %2315 = vrot.lane.b32.xlu0 %v2259, 104
      %v2316 = vpop.permute.xlu0 %2315
      %2317 = vrot.lane.b32.xlu0 %v2260, 104
      %v2318 = vpop.permute.xlu0 %2317
      %2319 = vrot.lane.b32.xlu0 %v2261, 104
      %v2320 = vpop.permute.xlu0 %2319
      %2321 = vrot.lane.b32.xlu0 %v2262, 104
      %v2322 = vpop.permute.xlu0 %2321
      %2323 = vrot.lane.b32.xlu0 %v2263, 104
      %v2324 = vpop.permute.xlu0 %2323
      %2325 = vrot.lane.b32.xlu0 %v2264, 104
      %v2326 = vpop.permute.xlu0 %2325
      %2327 = vrot.lane.b32.xlu0 %v2265, 104
      %v2328 = vpop.permute.xlu0 %2327
      %2329 = vrot.lane.b32.xlu0 %v2266, 104
      %v2330 = vpop.permute.xlu0 %2329
      %2331 = vrot.lane.b32.xlu0 %v2267, 104
      %v2332 = vpop.permute.xlu0 %2331
      %2333 = vrot.lane.b32.xlu0 %v2268, 104
      %v2334 = vpop.permute.xlu0 %2333
      %2335 = vrot.lane.b32.xlu0 %v2269, 104
      %v2336 = vpop.permute.xlu0 %2335
      %2337 = vrot.lane.b32.xlu0 %v2270, 104
      %v2338 = vpop.permute.xlu0 %2337
      %2339 = vrot.lane.b32.xlu0 %v2271, 104
      %v2340 = vpop.permute.xlu0 %2339
      %2341 = vrot.lane.b32.xlu0 %v2272, 104
      %v2342 = vpop.permute.xlu0 %2341
      %2343 = vrot.lane.b32.xlu0 %v2273, 104
      %v2344 = vpop.permute.xlu0 %2343
      %2345 = vrot.lane.b32.xlu0 %v2274, 104
      %v2346 = vpop.permute.xlu0 %2345
      %v2347 = vsel %vm447, %v2300, %v2302
      %v2348 = vsel %vm447, %v2302, %v2304
      %v2349 = vsel %vm447, %v2306, %v2308
      %v2350 = vsel %vm447, %v2308, %v2310
      %v2351 = vsel %vm447, %v2312, %v2314
      %v2352 = vsel %vm447, %v2314, %v2316
      %v2353 = vsel %vm447, %v2318, %v2320
      %v2354 = vsel %vm447, %v2320, %v2322
      %v2355 = vsel %vm447, %v2324, %v2326
      %v2356 = vsel %vm447, %v2326, %v2328
      %v2357 = vsel %vm447, %v2330, %v2332
      %v2358 = vsel %vm447, %v2332, %v2334
      %v2359 = vsel %vm447, %v2336, %v2338
      %v2360 = vsel %vm447, %v2338, %v2340
      %v2361 = vsel %vm447, %v2342, %v2344
      %v2362 = vsel %vm447, %v2344, %v2346
      %v2395 = vadd.f32 %v2187, %v2300
      %v2396 = vadd.f32 %v2188, %v2347
      %v2397 = vadd.f32 %v2189, %v2348
      %v2398 = vadd.f32 %v2190, %v2304
      %v2399 = vadd.f32 %v2191, %v2306
      %v2400 = vadd.f32 %v2192, %v2349
      %v2401 = vadd.f32 %v2193, %v2350
      %v2402 = vadd.f32 %v2194, %v2310
      %v2403 = vadd.f32 %v2195, %v2312
      %v2404 = vadd.f32 %v2196, %v2351
      %v2405 = vadd.f32 %v2197, %v2352
      %v2406 = vadd.f32 %v2198, %v2316
      %v2407 = vadd.f32 %v2199, %v2318
      %v2408 = vadd.f32 %v2200, %v2353
      %v2409 = vadd.f32 %v2201, %v2354
      %v2410 = vadd.f32 %v2202, %v2322
      %v2411 = vadd.f32 %v2203, %v2324
      %v2412 = vadd.f32 %v2204, %v2355
      %v2413 = vadd.f32 %v2205, %v2356
      %v2414 = vadd.f32 %v2206, %v2328
      %v2415 = vadd.f32 %v2207, %v2330
      %v2416 = vadd.f32 %v2208, %v2357
      %v2417 = vadd.f32 %v2209, %v2358
      %v2418 = vadd.f32 %v2210, %v2334
      %v2419 = vadd.f32 %v2211, %v2336
      %v2420 = vadd.f32 %v2212, %v2359
      %v2421 = vadd.f32 %v2213, %v2360
      %v2422 = vadd.f32 %v2214, %v2340
      %v2423 = vadd.f32 %v2215, %v2342
      %v2424 = vadd.f32 %v2216, %v2361
      %v2425 = vadd.f32 %v2217, %v2362
      %v2426 = vadd.f32 %v2218, %v2346
      %2427 = vset.pattern.permute.xlu0 6
      %2428 = vperm.xlu0 %2427, %v1123
      %v2429 = vpop.permute.xlu0 %2428
      %2431 = vset.pattern.permute.xlu0 6
      %2432 = vperm.xlu0 %2431, %v1124
      %v2433 = vpop.permute.xlu0 %2432
      %2435 = vset.pattern.permute.xlu0 6
      %2436 = vperm.xlu0 %2435, %v1125
      %v2437 = vpop.permute.xlu0 %2436
      %2439 = vset.pattern.permute.xlu0 6
      %2440 = vperm.xlu0 %2439, %v1126
      %v2441 = vpop.permute.xlu0 %2440
      %2443 = vset.pattern.permute.xlu0 6
      %2444 = vperm.xlu0 %2443, %v1127
      %v2445 = vpop.permute.xlu0 %2444
      %2447 = vset.pattern.permute.xlu0 6
      %2448 = vperm.xlu0 %2447, %v1128
      %v2449 = vpop.permute.xlu0 %2448
      %2451 = vset.pattern.permute.xlu0 6
      %2452 = vperm.xlu0 %2451, %v1129
      %v2453 = vpop.permute.xlu0 %2452
      %2455 = vset.pattern.permute.xlu0 6
      %2456 = vperm.xlu0 %2455, %v1130
      %v2457 = vpop.permute.xlu0 %2456
      %v2459 = vmul.f32 %v1132, %v2429
      %v2460 = vmul.f32 %v1133, %v2429
      %v2461 = vmul.f32 %v1134, %v2429
      %v2462 = vmul.f32 %v1136, %v2433
      %v2463 = vmul.f32 %v1137, %v2433
      %v2464 = vmul.f32 %v1138, %v2433
      %v2465 = vmul.f32 %v1140, %v2437
      %v2466 = vmul.f32 %v1141, %v2437
      %v2467 = vmul.f32 %v1142, %v2437
      %v2468 = vmul.f32 %v1144, %v2441
      %v2469 = vmul.f32 %v1145, %v2441
      %v2470 = vmul.f32 %v1146, %v2441
      %v2471 = vmul.f32 %v1148, %v2445
      %v2472 = vmul.f32 %v1149, %v2445
      %v2473 = vmul.f32 %v1150, %v2445
      %v2474 = vmul.f32 %v1152, %v2449
      %v2475 = vmul.f32 %v1153, %v2449
      %v2476 = vmul.f32 %v1154, %v2449
      %v2477 = vmul.f32 %v1156, %v2453
      %v2478 = vmul.f32 %v1157, %v2453
      %v2479 = vmul.f32 %v1158, %v2453
      %v2480 = vmul.f32 %v1160, %v2457
      %v2481 = vmul.f32 %v1161, %v2457
      %v2482 = vmul.f32 %v1162, %v2457
      %2507 = vrot.lane.b32.xlu0 %v2459, 84
      %v2508 = vpop.permute.xlu0 %2507
      %2509 = vrot.lane.b32.xlu0 %v2460, 84
      %v2510 = vpop.permute.xlu0 %2509
      %2511 = vrot.lane.b32.xlu0 %v2461, 84
      %v2512 = vpop.permute.xlu0 %2511
      %2513 = vrot.lane.b32.xlu0 %v2462, 84
      %v2514 = vpop.permute.xlu0 %2513
      %2515 = vrot.lane.b32.xlu0 %v2463, 84
      %v2516 = vpop.permute.xlu0 %2515
      %2517 = vrot.lane.b32.xlu0 %v2464, 84
      %v2518 = vpop.permute.xlu0 %2517
      %2519 = vrot.lane.b32.xlu0 %v2465, 84
      %v2520 = vpop.permute.xlu0 %2519
      %2521 = vrot.lane.b32.xlu0 %v2466, 84
      %v2522 = vpop.permute.xlu0 %2521
      %2523 = vrot.lane.b32.xlu0 %v2467, 84
      %v2524 = vpop.permute.xlu0 %2523
      %2525 = vrot.lane.b32.xlu0 %v2468, 84
      %v2526 = vpop.permute.xlu0 %2525
      %2527 = vrot.lane.b32.xlu0 %v2469, 84
      %v2528 = vpop.permute.xlu0 %2527
      %2529 = vrot.lane.b32.xlu0 %v2470, 84
      %v2530 = vpop.permute.xlu0 %2529
      %2531 = vrot.lane.b32.xlu0 %v2471, 84
      %v2532 = vpop.permute.xlu0 %2531
      %2533 = vrot.lane.b32.xlu0 %v2472, 84
      %v2534 = vpop.permute.xlu0 %2533
      %2535 = vrot.lane.b32.xlu0 %v2473, 84
      %v2536 = vpop.permute.xlu0 %2535
      %2537 = vrot.lane.b32.xlu0 %v2474, 84
      %v2538 = vpop.permute.xlu0 %2537
      %2539 = vrot.lane.b32.xlu0 %v2475, 84
      %v2540 = vpop.permute.xlu0 %2539
      %2541 = vrot.lane.b32.xlu0 %v2476, 84
      %v2542 = vpop.permute.xlu0 %2541
      %2543 = vrot.lane.b32.xlu0 %v2477, 84
      %v2544 = vpop.permute.xlu0 %2543
      %2545 = vrot.lane.b32.xlu0 %v2478, 84
      %v2546 = vpop.permute.xlu0 %2545
      %2547 = vrot.lane.b32.xlu0 %v2479, 84
      %v2548 = vpop.permute.xlu0 %2547
      %2549 = vrot.lane.b32.xlu0 %v2480, 84
      %v2550 = vpop.permute.xlu0 %2549
      %2551 = vrot.lane.b32.xlu0 %v2481, 84
      %v2552 = vpop.permute.xlu0 %2551
      %2553 = vrot.lane.b32.xlu0 %v2482, 84
      %v2554 = vpop.permute.xlu0 %2553
      %v2555 = vsel %vm456, %v2508, %v2510
      %v2556 = vsel %vm456, %v2510, %v2512
      %v2557 = vsel %vm456, %v2514, %v2516
      %v2558 = vsel %vm456, %v2516, %v2518
      %v2559 = vsel %vm456, %v2520, %v2522
      %v2560 = vsel %vm456, %v2522, %v2524
      %v2561 = vsel %vm456, %v2526, %v2528
      %v2562 = vsel %vm456, %v2528, %v2530
      %v2563 = vsel %vm456, %v2532, %v2534
      %v2564 = vsel %vm456, %v2534, %v2536
      %v2565 = vsel %vm456, %v2538, %v2540
      %v2566 = vsel %vm456, %v2540, %v2542
      %v2567 = vsel %vm456, %v2544, %v2546
      %v2568 = vsel %vm456, %v2546, %v2548
      %v2569 = vsel %vm456, %v2550, %v2552
      %v2570 = vsel %vm456, %v2552, %v2554
      %v2603 = vadd.f32 %v2395, %v2508
      %v2604 = vadd.f32 %v2396, %v2555
      %v2605 = vadd.f32 %v2397, %v2556
      %v2606 = vadd.f32 %v2398, %v2512
      %v2607 = vadd.f32 %v2399, %v2514
      %v2608 = vadd.f32 %v2400, %v2557
      %v2609 = vadd.f32 %v2401, %v2558
      %v2610 = vadd.f32 %v2402, %v2518
      %v2611 = vadd.f32 %v2403, %v2520
      %v2612 = vadd.f32 %v2404, %v2559
      %v2613 = vadd.f32 %v2405, %v2560
      %v2614 = vadd.f32 %v2406, %v2524
      %v2615 = vadd.f32 %v2407, %v2526
      %v2616 = vadd.f32 %v2408, %v2561
      %v2617 = vadd.f32 %v2409, %v2562
      %v2618 = vadd.f32 %v2410, %v2530
      %v2619 = vadd.f32 %v2411, %v2532
      %v2620 = vadd.f32 %v2412, %v2563
      %v2621 = vadd.f32 %v2413, %v2564
      %v2622 = vadd.f32 %v2414, %v2536
      %v2623 = vadd.f32 %v2415, %v2538
      %v2624 = vadd.f32 %v2416, %v2565
      %v2625 = vadd.f32 %v2417, %v2566
      %v2626 = vadd.f32 %v2418, %v2542
      %v2627 = vadd.f32 %v2419, %v2544
      %v2628 = vadd.f32 %v2420, %v2567
      %v2629 = vadd.f32 %v2421, %v2568
      %v2630 = vadd.f32 %v2422, %v2548
      %v2631 = vadd.f32 %v2423, %v2550
      %v2632 = vadd.f32 %v2424, %v2569
      %v2633 = vadd.f32 %v2425, %v2570
      %v2634 = vadd.f32 %v2426, %v2554
      %2635 = vset.pattern.permute.xlu0 7
      %2636 = vperm.xlu0 %2635, %v1123
      %v2637 = vpop.permute.xlu0 %2636
      %2639 = vset.pattern.permute.xlu0 7
      %2640 = vperm.xlu0 %2639, %v1124
      %v2641 = vpop.permute.xlu0 %2640
      %2643 = vset.pattern.permute.xlu0 7
      %2644 = vperm.xlu0 %2643, %v1125
      %v2645 = vpop.permute.xlu0 %2644
      %2647 = vset.pattern.permute.xlu0 7
      %2648 = vperm.xlu0 %2647, %v1126
      %v2649 = vpop.permute.xlu0 %2648
      %2651 = vset.pattern.permute.xlu0 7
      %2652 = vperm.xlu0 %2651, %v1127
      %v2653 = vpop.permute.xlu0 %2652
      %2655 = vset.pattern.permute.xlu0 7
      %2656 = vperm.xlu0 %2655, %v1128
      %v2657 = vpop.permute.xlu0 %2656
      %2659 = vset.pattern.permute.xlu0 7
      %2660 = vperm.xlu0 %2659, %v1129
      %v2661 = vpop.permute.xlu0 %2660
      %2663 = vset.pattern.permute.xlu0 7
      %2664 = vperm.xlu0 %2663, %v1130
      %v2665 = vpop.permute.xlu0 %2664
      %v2667 = vmul.f32 %v1132, %v2637
      %v2668 = vmul.f32 %v1133, %v2637
      %v2669 = vmul.f32 %v1134, %v2637
      %v2670 = vmul.f32 %v1136, %v2641
      %v2671 = vmul.f32 %v1137, %v2641
      %v2672 = vmul.f32 %v1138, %v2641
      %v2673 = vmul.f32 %v1140, %v2645
      %v2674 = vmul.f32 %v1141, %v2645
      %v2675 = vmul.f32 %v1142, %v2645
      %v2676 = vmul.f32 %v1144, %v2649
      %v2677 = vmul.f32 %v1145, %v2649
      %v2678 = vmul.f32 %v1146, %v2649
      %v2679 = vmul.f32 %v1148, %v2653
      %v2680 = vmul.f32 %v1149, %v2653
      %v2681 = vmul.f32 %v1150, %v2653
      %v2682 = vmul.f32 %v1152, %v2657
      %v2683 = vmul.f32 %v1153, %v2657
      %v2684 = vmul.f32 %v1154, %v2657
      %v2685 = vmul.f32 %v1156, %v2661
      %v2686 = vmul.f32 %v1157, %v2661
      %v2687 = vmul.f32 %v1158, %v2661
      %v2688 = vmul.f32 %v1160, %v2665
      %v2689 = vmul.f32 %v1161, %v2665
      %v2690 = vmul.f32 %v1162, %v2665
      %2715 = vrot.lane.b32.xlu0 %v2667, 83
      %v2716 = vpop.permute.xlu0 %2715
      %2717 = vrot.lane.b32.xlu0 %v2668, 83
      %v2718 = vpop.permute.xlu0 %2717
      %2719 = vrot.lane.b32.xlu0 %v2669, 83
      %v2720 = vpop.permute.xlu0 %2719
      %2721 = vrot.lane.b32.xlu0 %v2670, 83
      %v2722 = vpop.permute.xlu0 %2721
      %2723 = vrot.lane.b32.xlu0 %v2671, 83
      %v2724 = vpop.permute.xlu0 %2723
      %2725 = vrot.lane.b32.xlu0 %v2672, 83
      %v2726 = vpop.permute.xlu0 %2725
      %2727 = vrot.lane.b32.xlu0 %v2673, 83
      %v2728 = vpop.permute.xlu0 %2727
      %2729 = vrot.lane.b32.xlu0 %v2674, 83
      %v2730 = vpop.permute.xlu0 %2729
      %2731 = vrot.lane.b32.xlu0 %v2675, 83
      %v2732 = vpop.permute.xlu0 %2731
      %2733 = vrot.lane.b32.xlu0 %v2676, 83
      %v2734 = vpop.permute.xlu0 %2733
      %2735 = vrot.lane.b32.xlu0 %v2677, 83
      %v2736 = vpop.permute.xlu0 %2735
      %2737 = vrot.lane.b32.xlu0 %v2678, 83
      %v2738 = vpop.permute.xlu0 %2737
      %2739 = vrot.lane.b32.xlu0 %v2679, 83
      %v2740 = vpop.permute.xlu0 %2739
      %2741 = vrot.lane.b32.xlu0 %v2680, 83
      %v2742 = vpop.permute.xlu0 %2741
      %2743 = vrot.lane.b32.xlu0 %v2681, 83
      %v2744 = vpop.permute.xlu0 %2743
      %2745 = vrot.lane.b32.xlu0 %v2682, 83
      %v2746 = vpop.permute.xlu0 %2745
      %2747 = vrot.lane.b32.xlu0 %v2683, 83
      %v2748 = vpop.permute.xlu0 %2747
      %2749 = vrot.lane.b32.xlu0 %v2684, 83
      %v2750 = vpop.permute.xlu0 %2749
      %2751 = vrot.lane.b32.xlu0 %v2685, 83
      %v2752 = vpop.permute.xlu0 %2751
      %2753 = vrot.lane.b32.xlu0 %v2686, 83
      %v2754 = vpop.permute.xlu0 %2753
      %2755 = vrot.lane.b32.xlu0 %v2687, 83
      %v2756 = vpop.permute.xlu0 %2755
      %2757 = vrot.lane.b32.xlu0 %v2688, 83
      %v2758 = vpop.permute.xlu0 %2757
      %2759 = vrot.lane.b32.xlu0 %v2689, 83
      %v2760 = vpop.permute.xlu0 %2759
      %2761 = vrot.lane.b32.xlu0 %v2690, 83
      %v2762 = vpop.permute.xlu0 %2761
      %v2763 = vsel %vm465, %v2716, %v2718
      %v2764 = vsel %vm465, %v2718, %v2720
      %v2765 = vsel %vm465, %v2722, %v2724
      %v2766 = vsel %vm465, %v2724, %v2726
      %v2767 = vsel %vm465, %v2728, %v2730
      %v2768 = vsel %vm465, %v2730, %v2732
      %v2769 = vsel %vm465, %v2734, %v2736
      %v2770 = vsel %vm465, %v2736, %v2738
      %v2771 = vsel %vm465, %v2740, %v2742
      %v2772 = vsel %vm465, %v2742, %v2744
      %v2773 = vsel %vm465, %v2746, %v2748
      %v2774 = vsel %vm465, %v2748, %v2750
      %v2775 = vsel %vm465, %v2752, %v2754
      %v2776 = vsel %vm465, %v2754, %v2756
      %v2777 = vsel %vm465, %v2758, %v2760
      %v2778 = vsel %vm465, %v2760, %v2762
      %v2811 = vadd.f32 %v2603, %v2716
      %v2812 = vadd.f32 %v2604, %v2763
      %v2813 = vadd.f32 %v2605, %v2764
      %v2814 = vadd.f32 %v2606, %v2720
      %v2815 = vadd.f32 %v2607, %v2722
      %v2816 = vadd.f32 %v2608, %v2765
      %v2817 = vadd.f32 %v2609, %v2766
      %v2818 = vadd.f32 %v2610, %v2726
      %v2819 = vadd.f32 %v2611, %v2728
      %v2820 = vadd.f32 %v2612, %v2767
      %v2821 = vadd.f32 %v2613, %v2768
      %v2822 = vadd.f32 %v2614, %v2732
      %v2823 = vadd.f32 %v2615, %v2734
      %v2824 = vadd.f32 %v2616, %v2769
      %v2825 = vadd.f32 %v2617, %v2770
      %v2826 = vadd.f32 %v2618, %v2738
      %v2827 = vadd.f32 %v2619, %v2740
      %v2828 = vadd.f32 %v2620, %v2771
      %v2829 = vadd.f32 %v2621, %v2772
      %v2830 = vadd.f32 %v2622, %v2744
      %v2831 = vadd.f32 %v2623, %v2746
      %v2832 = vadd.f32 %v2624, %v2773
      %v2833 = vadd.f32 %v2625, %v2774
      %v2834 = vadd.f32 %v2626, %v2750
      %v2835 = vadd.f32 %v2627, %v2752
      %v2836 = vadd.f32 %v2628, %v2775
      %v2837 = vadd.f32 %v2629, %v2776
      %v2838 = vadd.f32 %v2630, %v2756
      %v2839 = vadd.f32 %v2631, %v2758
      %v2840 = vadd.f32 %v2632, %v2777
      %v2841 = vadd.f32 %v2633, %v2778
      %v2842 = vadd.f32 %v2634, %v2762
      %2843 = vset.pattern.permute.xlu0 8
      %2844 = vperm.xlu0 %2843, %v1123
      %v2845 = vpop.permute.xlu0 %2844
      %2847 = vset.pattern.permute.xlu0 8
      %2848 = vperm.xlu0 %2847, %v1124
      %v2849 = vpop.permute.xlu0 %2848
      %2851 = vset.pattern.permute.xlu0 8
      %2852 = vperm.xlu0 %2851, %v1125
      %v2853 = vpop.permute.xlu0 %2852
      %2855 = vset.pattern.permute.xlu0 8
      %2856 = vperm.xlu0 %2855, %v1126
      %v2857 = vpop.permute.xlu0 %2856
      %2859 = vset.pattern.permute.xlu0 8
      %2860 = vperm.xlu0 %2859, %v1127
      %v2861 = vpop.permute.xlu0 %2860
      %2863 = vset.pattern.permute.xlu0 8
      %2864 = vperm.xlu0 %2863, %v1128
      %v2865 = vpop.permute.xlu0 %2864
      %2867 = vset.pattern.permute.xlu0 8
      %2868 = vperm.xlu0 %2867, %v1129
      %v2869 = vpop.permute.xlu0 %2868
      %2871 = vset.pattern.permute.xlu0 8
      %2872 = vperm.xlu0 %2871, %v1130
      %v2873 = vpop.permute.xlu0 %2872
      %v2875 = vmul.f32 %v1132, %v2845
      %v2876 = vmul.f32 %v1133, %v2845
      %v2877 = vmul.f32 %v1134, %v2845
      %v2878 = vmul.f32 %v1136, %v2849
      %v2879 = vmul.f32 %v1137, %v2849
      %v2880 = vmul.f32 %v1138, %v2849
      %v2881 = vmul.f32 %v1140, %v2853
      %v2882 = vmul.f32 %v1141, %v2853
      %v2883 = vmul.f32 %v1142, %v2853
      %v2884 = vmul.f32 %v1144, %v2857
      %v2885 = vmul.f32 %v1145, %v2857
      %v2886 = vmul.f32 %v1146, %v2857
      %v2887 = vmul.f32 %v1148, %v2861
      %v2888 = vmul.f32 %v1149, %v2861
      %v2889 = vmul.f32 %v1150, %v2861
      %v2890 = vmul.f32 %v1152, %v2865
      %v2891 = vmul.f32 %v1153, %v2865
      %v2892 = vmul.f32 %v1154, %v2865
      %v2893 = vmul.f32 %v1156, %v2869
      %v2894 = vmul.f32 %v1157, %v2869
      %v2895 = vmul.f32 %v1158, %v2869
      %v2896 = vmul.f32 %v1160, %v2873
      %v2897 = vmul.f32 %v1161, %v2873
      %v2898 = vmul.f32 %v1162, %v2873
      %2923 = vrot.lane.b32.xlu0 %v2875, 82
      %v2924 = vpop.permute.xlu0 %2923
      %2925 = vrot.lane.b32.xlu0 %v2876, 82
      %v2926 = vpop.permute.xlu0 %2925
      %2927 = vrot.lane.b32.xlu0 %v2877, 82
      %v2928 = vpop.permute.xlu0 %2927
      %2929 = vrot.lane.b32.xlu0 %v2878, 82
      %v2930 = vpop.permute.xlu0 %2929
      %2931 = vrot.lane.b32.xlu0 %v2879, 82
      %v2932 = vpop.permute.xlu0 %2931
      %2933 = vrot.lane.b32.xlu0 %v2880, 82
      %v2934 = vpop.permute.xlu0 %2933
      %2935 = vrot.lane.b32.xlu0 %v2881, 82
      %v2936 = vpop.permute.xlu0 %2935
      %2937 = vrot.lane.b32.xlu0 %v2882, 82
      %v2938 = vpop.permute.xlu0 %2937
      %2939 = vrot.lane.b32.xlu0 %v2883, 82
      %v2940 = vpop.permute.xlu0 %2939
      %2941 = vrot.lane.b32.xlu0 %v2884, 82
      %v2942 = vpop.permute.xlu0 %2941
      %2943 = vrot.lane.b32.xlu0 %v2885, 82
      %v2944 = vpop.permute.xlu0 %2943
      %2945 = vrot.lane.b32.xlu0 %v2886, 82
      %v2946 = vpop.permute.xlu0 %2945
      %2947 = vrot.lane.b32.xlu0 %v2887, 82
      %v2948 = vpop.permute.xlu0 %2947
      %2949 = vrot.lane.b32.xlu0 %v2888, 82
      %v2950 = vpop.permute.xlu0 %2949
      %2951 = vrot.lane.b32.xlu0 %v2889, 82
      %v2952 = vpop.permute.xlu0 %2951
      %2953 = vrot.lane.b32.xlu0 %v2890, 82
      %v2954 = vpop.permute.xlu0 %2953
      %2955 = vrot.lane.b32.xlu0 %v2891, 82
      %v2956 = vpop.permute.xlu0 %2955
      %2957 = vrot.lane.b32.xlu0 %v2892, 82
      %v2958 = vpop.permute.xlu0 %2957
      %2959 = vrot.lane.b32.xlu0 %v2893, 82
      %v2960 = vpop.permute.xlu0 %2959
      %2961 = vrot.lane.b32.xlu0 %v2894, 82
      %v2962 = vpop.permute.xlu0 %2961
      %2963 = vrot.lane.b32.xlu0 %v2895, 82
      %v2964 = vpop.permute.xlu0 %2963
      %2965 = vrot.lane.b32.xlu0 %v2896, 82
      %v2966 = vpop.permute.xlu0 %2965
      %2967 = vrot.lane.b32.xlu0 %v2897, 82
      %v2968 = vpop.permute.xlu0 %2967
      %2969 = vrot.lane.b32.xlu0 %v2898, 82
      %v2970 = vpop.permute.xlu0 %2969
      %v2971 = vsel %vm474, %v2924, %v2926
      %v2972 = vsel %vm474, %v2926, %v2928
      %v2973 = vsel %vm474, %v2930, %v2932
      %v2974 = vsel %vm474, %v2932, %v2934
      %v2975 = vsel %vm474, %v2936, %v2938
      %v2976 = vsel %vm474, %v2938, %v2940
      %v2977 = vsel %vm474, %v2942, %v2944
      %v2978 = vsel %vm474, %v2944, %v2946
      %v2979 = vsel %vm474, %v2948, %v2950
      %v2980 = vsel %vm474, %v2950, %v2952
      %v2981 = vsel %vm474, %v2954, %v2956
      %v2982 = vsel %vm474, %v2956, %v2958
      %v2983 = vsel %vm474, %v2960, %v2962
      %v2984 = vsel %vm474, %v2962, %v2964
      %v2985 = vsel %vm474, %v2966, %v2968
      %v2986 = vsel %vm474, %v2968, %v2970
      %v3019 = vadd.f32 %v2811, %v2924
      %v3020 = vadd.f32 %v2812, %v2971
      %v3021 = vadd.f32 %v2813, %v2972
      %v3022 = vadd.f32 %v2814, %v2928
      %v3023 = vadd.f32 %v2815, %v2930
      %v3024 = vadd.f32 %v2816, %v2973
      %v3025 = vadd.f32 %v2817, %v2974
      %v3026 = vadd.f32 %v2818, %v2934
      %v3027 = vadd.f32 %v2819, %v2936
      %v3028 = vadd.f32 %v2820, %v2975
      %v3029 = vadd.f32 %v2821, %v2976
      %v3030 = vadd.f32 %v2822, %v2940
      %v3031 = vadd.f32 %v2823, %v2942
      %v3032 = vadd.f32 %v2824, %v2977
      %v3033 = vadd.f32 %v2825, %v2978
      %v3034 = vadd.f32 %v2826, %v2946
      %v3035 = vadd.f32 %v2827, %v2948
      %v3036 = vadd.f32 %v2828, %v2979
      %v3037 = vadd.f32 %v2829, %v2980
      %v3038 = vadd.f32 %v2830, %v2952
      %v3039 = vadd.f32 %v2831, %v2954
      %v3040 = vadd.f32 %v2832, %v2981
      %v3041 = vadd.f32 %v2833, %v2982
      %v3042 = vadd.f32 %v2834, %v2958
      %v3043 = vadd.f32 %v2835, %v2960
      %v3044 = vadd.f32 %v2836, %v2983
      %v3045 = vadd.f32 %v2837, %v2984
      %v3046 = vadd.f32 %v2838, %v2964
      %v3047 = vadd.f32 %v2839, %v2966
      %v3048 = vadd.f32 %v2840, %v2985
      %v3049 = vadd.f32 %v2841, %v2986
      %v3050 = vadd.f32 %v2842, %v2970
      %v3051 = vmax.f32 %v3019, 0.0
      %v3052 = vmax.f32 %v3020, 0.0
      %v3053 = vmax.f32 %v3021, 0.0
      %v3054 = vmax.f32 %v3022, 0.0
      %v3055 = vmax.f32 %v3023, 0.0
      %v3056 = vmax.f32 %v3024, 0.0
      %v3057 = vmax.f32 %v3025, 0.0
      %v3058 = vmax.f32 %v3026, 0.0
      %v3059 = vmax.f32 %v3027, 0.0
      %v3060 = vmax.f32 %v3028, 0.0
      %v3061 = vmax.f32 %v3029, 0.0
      %v3062 = vmax.f32 %v3030, 0.0
      %v3063 = vmax.f32 %v3031, 0.0
      %v3064 = vmax.f32 %v3032, 0.0
      %v3065 = vmax.f32 %v3033, 0.0
      %v3066 = vmax.f32 %v3034, 0.0
      %v3067 = vmax.f32 %v3035, 0.0
      %v3068 = vmax.f32 %v3036, 0.0
      %v3069 = vmax.f32 %v3037, 0.0
      %v3070 = vmax.f32 %v3038, 0.0
      %v3071 = vmax.f32 %v3039, 0.0
      %v3072 = vmax.f32 %v3040, 0.0
      %v3073 = vmax.f32 %v3041, 0.0
      %v3074 = vmax.f32 %v3042, 0.0
      %v3075 = vmax.f32 %v3043, 0.0
      %v3076 = vmax.f32 %v3044, 0.0
      %v3077 = vmax.f32 %v3045, 0.0
      %v3078 = vmax.f32 %v3046, 0.0
      %v3079 = vmax.f32 %v3047, 0.0
      %v3080 = vmax.f32 %v3048, 0.0
      %v3081 = vmax.f32 %v3049, 0.0
      %v3082 = vmax.f32 %v3050, 0.0
      %v3083 = vld [vmem:[%s4] sm:$0xff]
      %3085 = vrot.lane.b32.xlu0 %v3083, 64
      %v3086 = vpop.permute.xlu0 %3085
      %3119 = vrot.lane.b32.xlu0 %v3051, 23
      %v3120 = vpop.permute.xlu0 %3119
      %3121 = vrot.lane.b32.xlu0 %v3052, 23
      %v3122 = vpop.permute.xlu0 %3121
      %3123 = vrot.lane.b32.xlu0 %v3053, 23
      %v3124 = vpop.permute.xlu0 %3123
      %3125 = vrot.lane.b32.xlu0 %v3054, 23
      %v3126 = vpop.permute.xlu0 %3125
      %3127 = vrot.lane.b32.xlu0 %v3055, 23
      %v3128 = vpop.permute.xlu0 %3127
      %3129 = vrot.lane.b32.xlu0 %v3056, 23
      %v3130 = vpop.permute.xlu0 %3129
      %3131 = vrot.lane.b32.xlu0 %v3057, 23
      %v3132 = vpop.permute.xlu0 %3131
      %3133 = vrot.lane.b32.xlu0 %v3058, 23
      %v3134 = vpop.permute.xlu0 %3133
      %3135 = vrot.lane.b32.xlu0 %v3059, 23
      %v3136 = vpop.permute.xlu0 %3135
      %3137 = vrot.lane.b32.xlu0 %v3060, 23
      %v3138 = vpop.permute.xlu0 %3137
      %3139 = vrot.lane.b32.xlu0 %v3061, 23
      %v3140 = vpop.permute.xlu0 %3139
      %3141 = vrot.lane.b32.xlu0 %v3062, 23
      %v3142 = vpop.permute.xlu0 %3141
      %3143 = vrot.lane.b32.xlu0 %v3063, 23
      %v3144 = vpop.permute.xlu0 %3143
      %3145 = vrot.lane.b32.xlu0 %v3064, 23
      %v3146 = vpop.permute.xlu0 %3145
      %3147 = vrot.lane.b32.xlu0 %v3065, 23
      %v3148 = vpop.permute.xlu0 %3147
      %3149 = vrot.lane.b32.xlu0 %v3066, 23
      %v3150 = vpop.permute.xlu0 %3149
      %3151 = vrot.lane.b32.xlu0 %v3067, 23
      %v3152 = vpop.permute.xlu0 %3151
      %3153 = vrot.lane.b32.xlu0 %v3068, 23
      %v3154 = vpop.permute.xlu0 %3153
      %3155 = vrot.lane.b32.xlu0 %v3069, 23
      %v3156 = vpop.permute.xlu0 %3155
      %3157 = vrot.lane.b32.xlu0 %v3070, 23
      %v3158 = vpop.permute.xlu0 %3157
      %3159 = vrot.lane.b32.xlu0 %v3071, 23
      %v3160 = vpop.permute.xlu0 %3159
      %3161 = vrot.lane.b32.xlu0 %v3072, 23
      %v3162 = vpop.permute.xlu0 %3161
      %3163 = vrot.lane.b32.xlu0 %v3073, 23
      %v3164 = vpop.permute.xlu0 %3163
      %3165 = vrot.lane.b32.xlu0 %v3074, 23
      %v3166 = vpop.permute.xlu0 %3165
      %3167 = vrot.lane.b32.xlu0 %v3075, 23
      %v3168 = vpop.permute.xlu0 %3167
      %3169 = vrot.lane.b32.xlu0 %v3076, 23
      %v3170 = vpop.permute.xlu0 %3169
      %3171 = vrot.lane.b32.xlu0 %v3077, 23
      %v3172 = vpop.permute.xlu0 %3171
      %3173 = vrot.lane.b32.xlu0 %v3078, 23
      %v3174 = vpop.permute.xlu0 %3173
      %3175 = vrot.lane.b32.xlu0 %v3079, 23
      %v3176 = vpop.permute.xlu0 %3175
      %3177 = vrot.lane.b32.xlu0 %v3080, 23
      %v3178 = vpop.permute.xlu0 %3177
      %3179 = vrot.lane.b32.xlu0 %v3081, 23
      %v3180 = vpop.permute.xlu0 %3179
      %3181 = vrot.lane.b32.xlu0 %v3082, 23
      %v3182 = vpop.permute.xlu0 %3181
      %v3183 = vsel %vm551, %v3120, %v3122
      %v3184 = vsel %vm551, %v3122, %v3124
      %v3185 = vsel %vm551, %v3124, %v3126
      %v3186 = vsel %vm551, %v3128, %v3130
      %v3187 = vsel %vm551, %v3130, %v3132
      %v3188 = vsel %vm551, %v3132, %v3134
      %v3189 = vsel %vm551, %v3136, %v3138
      %v3190 = vsel %vm551, %v3138, %v3140
      %v3191 = vsel %vm551, %v3140, %v3142
      %v3192 = vsel %vm551, %v3144, %v3146
      %v3193 = vsel %vm551, %v3146, %v3148
      %v3194 = vsel %vm551, %v3148, %v3150
      %v3195 = vsel %vm551, %v3152, %v3154
      %v3196 = vsel %vm551, %v3154, %v3156
      %v3197 = vsel %vm551, %v3156, %v3158
      %v3198 = vsel %vm551, %v3160, %v3162
      %v3199 = vsel %vm551, %v3162, %v3164
      %v3200 = vsel %vm551, %v3164, %v3166
      %v3201 = vsel %vm551, %v3168, %v3170
      %v3202 = vsel %vm551, %v3170, %v3172
      %v3203 = vsel %vm551, %v3172, %v3174
      %v3204 = vsel %vm551, %v3176, %v3178
      %v3205 = vsel %vm551, %v3178, %v3180
      %v3206 = vsel %vm551, %v3180, %v3182
      %vm3231 = vcmask 523264
      %v3232 = vsel %vm3231, %v3086, 0
      %3234 = vmatprep.subr.mxu0 %v3184
      %3235 = vmatpush1.msra.mxu0 %v3183
      %3236 = vmatprep.subr.mxu0 %v3187
      %3237 = vmatpush1.msra.mxu0 %v3186
      %3238 = vmatprep.subr.mxu0 %v3190
      %3239 = vmatpush1.msra.mxu0 %v3189
      %3240 = vmatprep.subr.mxu0 %v3193
      %3241 = vmatpush1.msra.mxu0 %v3192
      %3242 = vmatprep.subr.mxu0 %v3196
      %3243 = vmatpush1.msra.mxu0 %v3195
      %3244 = vmatprep.subr.mxu0 %v3199
      %3245 = vmatpush1.msra.mxu0 %v3198
      %3246 = vmatprep.subr.mxu0 %v3202
      %3247 = vmatpush1.msra.mxu0 %v3201
      %3248 = vmatprep.subr.mxu0 %v3205
      %3249 = vmatpush1.msra.mxu0 %v3204
      %3250 = vmatprep.subr.mxu0 0.0
      %3251 = vmatpush1.msra.mxu0 0.0
      %3252 = vmatprep.subr.mxu0 0.0
      %3253 = vmatpush1.msra.mxu0 0.0
      %3254 = vmatprep.subr.mxu0 0.0
      %3255 = vmatpush1.msra.mxu0 0.0
      %3256 = vmatprep.subr.mxu0 0.0
      %3257 = vmatpush1.msra.mxu0 0.0
      %3258 = vmatprep.subr.mxu0 0.0
      %3259 = vmatpush1.msra.mxu0 0.0
      %3260 = vmatprep.subr.mxu0 0.0
      %3261 = vmatpush1.msra.mxu0 0.0
      %3262 = vmatprep.subr.mxu0 0.0
      %3263 = vmatpush1.msra.mxu0 0.0
      %3264 = vmatprep.subr.mxu0 0.0
      %3265 = vmatpush1.msra.mxu0 0.0
      %3266 = vmatprep.subr.mxu0 0.0
      %3267 = vmatpush1.msra.mxu0 0.0
      %3268 = vmatprep.subr.mxu0 0.0
      %3269 = vmatpush1.msra.mxu0 0.0
      %3270 = vmatprep.subr.mxu0 0.0
      %3271 = vmatpush1.msra.mxu0 0.0
      %3272 = vmatprep.subr.mxu0 0.0
      %3273 = vmatpush1.msra.mxu0 0.0
      %3274 = vmatprep.subr.mxu0 0.0
      %3275 = vmatpush1.msra.mxu0 0.0
      %3276 = vmatprep.subr.mxu0 0.0
      %3277 = vmatpush1.msra.mxu0 0.0
      %3278 = vmatprep.subr.mxu0 0.0
      %3279 = vmatpush1.msra.mxu0 0.0
      %3280 = vmatprep.subr.mxu0 0.0
      %3281 = vmatpush1.msra.mxu0 0.0
      %3282 = vmatprep.subr.mxu0 0.0
      %3283 = vmatpush1.msra.mxu0 0.0
      %3284 = vmatprep.subr.mxu0 0.0
      %3285 = vmatpush1.msra.mxu0 0.0
      %3286 = vmatprep.subr.mxu0 0.0
      %3287 = vmatpush1.msra.mxu0 0.0
      %3288 = vmatprep.subr.mxu0 0.0
      %3289 = vmatpush1.msra.mxu0 0.0
      %3290 = vmatprep.subr.mxu0 0.0
      %3291 = vmatpush1.msra.mxu0 0.0
      %3292 = vmatprep.subr.mxu0 0.0
      %3293 = vmatpush1.msra.mxu0 0.0
      %3294 = vmatprep.subr.mxu0 0.0
      %3295 = vmatpush1.msra.mxu0 0.0
      %3296 = vmatprep.subr.mxu0 0.0
      %3297 = vmatpush1.msra.mxu0 0.0
      %3298 = vmatprep.mubr.f32.mxu0 0.0
      %3299 = vmatmul.mubr.f32.gmra.mrb[0].mxu0 %v3232
      %v3300 = vpop.f32.mrb[0].mxu0
      %v3301 = vadd.f32 0.0, %v3300
      %v3302 = vpop.f32.mrb[0].mxu0
      %v3303 = vadd.f32 0.0, %v3302
      %3304 = vdwg.mxu0
      %3305 = vmatprep.subr.mxu0 0.0
      %3306 = vmatpush1.msra.mxu0 %v3185
      %3307 = vmatprep.subr.mxu0 0.0
      %3308 = vmatpush1.msra.mxu0 %v3188
      %3309 = vmatprep.subr.mxu0 0.0
      %3310 = vmatpush1.msra.mxu0 %v3191
      %3311 = vmatprep.subr.mxu0 0.0
      %3312 = vmatpush1.msra.mxu0 %v3194
      %3313 = vmatprep.subr.mxu0 0.0
      %3314 = vmatpush1.msra.mxu0 %v3197
      %3315 = vmatprep.subr.mxu0 0.0
      %3316 = vmatpush1.msra.mxu0 %v3200
      %3317 = vmatprep.subr.mxu0 0.0
      %3318 = vmatpush1.msra.mxu0 %v3203
      %3319 = vmatprep.subr.mxu0 0.0
      %3320 = vmatpush1.msra.mxu0 %v3206
      %3321 = vmatprep.subr.mxu0 0.0
      %3322 = vmatpush1.msra.mxu0 0.0
      %3323 = vmatprep.subr.mxu0 0.0
      %3324 = vmatpush1.msra.mxu0 0.0
      %3325 = vmatprep.subr.mxu0 0.0
      %3326 = vmatpush1.msra.mxu0 0.0
      %3327 = vmatprep.subr.mxu0 0.0
      %3328 = vmatpush1.msra.mxu0 0.0
      %3329 = vmatprep.subr.mxu0 0.0
      %3330 = vmatpush1.msra.mxu0 0.0
      %3331 = vmatprep.subr.mxu0 0.0
      %3332 = vmatpush1.msra.mxu0 0.0
      %3333 = vmatprep.subr.mxu0 0.0
      %3334 = vmatpush1.msra.mxu0 0.0
      %3335 = vmatprep.subr.mxu0 0.0
      %3336 = vmatpush1.msra.mxu0 0.0
      %3337 = vmatprep.subr.mxu0 0.0
      %3338 = vmatpush1.msra.mxu0 0.0
      %3339 = vmatprep.subr.mxu0 0.0
      %3340 = vmatpush1.msra.mxu0 0.0
      %3341 = vmatprep.subr.mxu0 0.0
      %3342 = vmatpush1.msra.mxu0 0.0
      %3343 = vmatprep.subr.mxu0 0.0
      %3344 = vmatpush1.msra.mxu0 0.0
      %3345 = vmatprep.subr.mxu0 0.0
      %3346 = vmatpush1.msra.mxu0 0.0
      %3347 = vmatprep.subr.mxu0 0.0
      %3348 = vmatpush1.msra.mxu0 0.0
      %3349 = vmatprep.subr.mxu0 0.0
      %3350 = vmatpush1.msra.mxu0 0.0
      %3351 = vmatprep.subr.mxu0 0.0
      %3352 = vmatpush1.msra.mxu0 0.0
      %3353 = vmatprep.subr.mxu0 0.0
      %3354 = vmatpush1.msra.mxu0 0.0
      %3355 = vmatprep.subr.mxu0 0.0
      %3356 = vmatpush1.msra.mxu0 0.0
      %3357 = vmatprep.subr.mxu0 0.0
      %3358 = vmatpush1.msra.mxu0 0.0
      %3359 = vmatprep.subr.mxu0 0.0
      %3360 = vmatpush1.msra.mxu0 0.0
      %3361 = vmatprep.subr.mxu0 0.0
      %3362 = vmatpush1.msra.mxu0 0.0
      %3363 = vmatprep.subr.mxu0 0.0
      %3364 = vmatpush1.msra.mxu0 0.0
      %3365 = vmatprep.subr.mxu0 0.0
      %3366 = vmatpush1.msra.mxu0 0.0
      %3367 = vmatprep.subr.mxu0 0.0
      %3368 = vmatpush1.msra.mxu0 0.0
      %3369 = vmatprep.mubr.f32.mxu0 0.0
      %3370 = vmatmul.mubr.f32.gmra.mrb[0].mxu0 %v3232
      %v3371 = vpop.f32.mrb[0].mxu0
      %v3372 = vadd.f32 0.0, %v3371
      %v3373 = vpop.f32.mrb[0].mxu0
      %3374 = vdwg.mxu0
      %v3375 = vsel %vm3231, %v3083, 0
      %3377 = vmatprep.subr.mxu0 %v1133
      %3378 = vmatpush1.msra.mxu0 %v1132
      %3379 = vmatprep.subr.mxu0 %v1137
      %3380 = vmatpush1.msra.mxu0 %v1136
      %3381 = vmatprep.subr.mxu0 %v1141
      %3382 = vmatpush1.msra.mxu0 %v1140
      %3383 = vmatprep.subr.mxu0 %v1145
      %3384 = vmatpush1.msra.mxu0 %v1144
      %3385 = vmatprep.subr.mxu0 %v1149
      %3386 = vmatpush1.msra.mxu0 %v1148
      %3387 = vmatprep.subr.mxu0 %v1153
      %3388 = vmatpush1.msra.mxu0 %v1152
      %3389 = vmatprep.subr.mxu0 %v1157
      %3390 = vmatpush1.msra.mxu0 %v1156
      %3391 = vmatprep.subr.mxu0 %v1161
      %3392 = vmatpush1.msra.mxu0 %v1160
      %3393 = vmatprep.subr.mxu0 0.0
      %3394 = vmatpush1.msra.mxu0 0.0
      %3395 = vmatprep.subr.mxu0 0.0
      %3396 = vmatpush1.msra.mxu0 0.0
      %3397 = vmatprep.subr.mxu0 0.0
      %3398 = vmatpush1.msra.mxu0 0.0
      %3399 = vmatprep.subr.mxu0 0.0
      %3400 = vmatpush1.msra.mxu0 0.0
      %3401 = vmatprep.subr.mxu0 0.0
      %3402 = vmatpush1.msra.mxu0 0.0
      %3403 = vmatprep.subr.mxu0 0.0
      %3404 = vmatpush1.msra.mxu0 0.0
      %3405 = vmatprep.subr.mxu0 0.0
      %3406 = vmatpush1.msra.mxu0 0.0
      %3407 = vmatprep.subr.mxu0 0.0
      %3408 = vmatpush1.msra.mxu0 0.0
      %3409 = vmatprep.subr.mxu0 0.0
      %3410 = vmatpush1.msra.mxu0 0.0
      %3411 = vmatprep.subr.mxu0 0.0
      %3412 = vmatpush1.msra.mxu0 0.0
      %3413 = vmatprep.subr.mxu0 0.0
      %3414 = vmatpush1.msra.mxu0 0.0
      %3415 = vmatprep.subr.mxu0 0.0
      %3416 = vmatpush1.msra.mxu0 0.0
      %3417 = vmatprep.subr.mxu0 0.0
      %3418 = vmatpush1.msra.mxu0 0.0
      %3419 = vmatprep.subr.mxu0 0.0
      %3420 = vmatpush1.msra.mxu0 0.0
      %3421 = vmatprep.subr.mxu0 0.0
      %3422 = vmatpush1.msra.mxu0 0.0
      %3423 = vmatprep.subr.mxu0 0.0
      %3424 = vmatpush1.msra.mxu0 0.0
      %3425 = vmatprep.subr.mxu0 0.0
      %3426 = vmatpush1.msra.mxu0 0.0
      %3427 = vmatprep.subr.mxu0 0.0
      %3428 = vmatpush1.msra.mxu0 0.0
      %3429 = vmatprep.subr.mxu0 0.0
      %3430 = vmatpush1.msra.mxu0 0.0
      %3431 = vmatprep.subr.mxu0 0.0
      %3432 = vmatpush1.msra.mxu0 0.0
      %3433 = vmatprep.subr.mxu0 0.0
      %3434 = vmatpush1.msra.mxu0 0.0
      %3435 = vmatprep.subr.mxu0 0.0
      %3436 = vmatpush1.msra.mxu0 0.0
      %3437 = vmatprep.subr.mxu0 0.0
      %3438 = vmatpush1.msra.mxu0 0.0
      %3439 = vmatprep.subr.mxu0 0.0
      %3440 = vmatpush1.msra.mxu0 0.0
      %3441 = vmatprep.mubr.f32.mxu0 0.0
      %3442 = vmatmul.mubr.f32.gmra.mrb[0].mxu0 %v3375
      %v3443 = vpop.f32.mrb[0].mxu0
      %v3444 = vadd.f32 %v3301, %v3443
      %v3445 = vpop.f32.mrb[0].mxu0
      %v3446 = vadd.f32 %v3303, %v3445
      %3447 = vdwg.mxu0
      %3448 = vmatprep.subr.mxu0 0.0
      %3449 = vmatpush1.msra.mxu0 %v1134
      %3450 = vmatprep.subr.mxu0 0.0
      %3451 = vmatpush1.msra.mxu0 %v1138
      %3452 = vmatprep.subr.mxu0 0.0
      %3453 = vmatpush1.msra.mxu0 %v1142
      %3454 = vmatprep.subr.mxu0 0.0
      %3455 = vmatpush1.msra.mxu0 %v1146
      %3456 = vmatprep.subr.mxu0 0.0
      %3457 = vmatpush1.msra.mxu0 %v1150
      %3458 = vmatprep.subr.mxu0 0.0
      %3459 = vmatpush1.msra.mxu0 %v1154
      %3460 = vmatprep.subr.mxu0 0.0
      %3461 = vmatpush1.msra.mxu0 %v1158
      %3462 = vmatprep.subr.mxu0 0.0
      %3463 = vmatpush1.msra.mxu0 %v1162
      %3464 = vmatprep.subr.mxu0 0.0
      %3465 = vmatpush1.msra.mxu0 0.0
      %3466 = vmatprep.subr.mxu0 0.0
      %3467 = vmatpush1.msra.mxu0 0.0
      %3468 = vmatprep.subr.mxu0 0.0
      %3469 = vmatpush1.msra.mxu0 0.0
      %3470 = vmatprep.subr.mxu0 0.0
      %3471 = vmatpush1.msra.mxu0 0.0
      %3472 = vmatprep.subr.mxu0 0.0
      %3473 = vmatpush1.msra.mxu0 0.0
      %3474 = vmatprep.subr.mxu0 0.0
      %3475 = vmatpush1.msra.mxu0 0.0
      %3476 = vmatprep.subr.mxu0 0.0
      %3477 = vmatpush1.msra.mxu0 0.0
      %3478 = vmatprep.subr.mxu0 0.0
      %3479 = vmatpush1.msra.mxu0 0.0
      %3480 = vmatprep.subr.mxu0 0.0
      %3481 = vmatpush1.msra.mxu0 0.0
      %3482 = vmatprep.subr.mxu0 0.0
      %3483 = vmatpush1.msra.mxu0 0.0
      %3484 = vmatprep.subr.mxu0 0.0
      %3485 = vmatpush1.msra.mxu0 0.0
      %3486 = vmatprep.subr.mxu0 0.0
      %3487 = vmatpush1.msra.mxu0 0.0
      %3488 = vmatprep.subr.mxu0 0.0
      %3489 = vmatpush1.msra.mxu0 0.0
      %3490 = vmatprep.subr.mxu0 0.0
      %3491 = vmatpush1.msra.mxu0 0.0
      %3492 = vmatprep.subr.mxu0 0.0
      %3493 = vmatpush1.msra.mxu0 0.0
      %3494 = vmatprep.subr.mxu0 0.0
      %3495 = vmatpush1.msra.mxu0 0.0
      %3496 = vmatprep.subr.mxu0 0.0
      %3497 = vmatpush1.msra.mxu0 0.0
      %3498 = vmatprep.subr.mxu0 0.0
      %3499 = vmatpush1.msra.mxu0 0.0
      %3500 = vmatprep.subr.mxu0 0.0
      %3501 = vmatpush1.msra.mxu0 0.0
      %3502 = vmatprep.subr.mxu0 0.0
      %3503 = vmatpush1.msra.mxu0 0.0
      %3504 = vmatprep.subr.mxu0 0.0
      %3505 = vmatpush1.msra.mxu0 0.0
      %3506 = vmatprep.subr.mxu0 0.0
      %3507 = vmatpush1.msra.mxu0 0.0
      %3508 = vmatprep.subr.mxu0 0.0
      %3509 = vmatpush1.msra.mxu0 0.0
      %3510 = vmatprep.subr.mxu0 0.0
      %3511 = vmatpush1.msra.mxu0 0.0
      %3512 = vmatprep.mubr.f32.mxu0 0.0
      %3513 = vmatmul.mubr.f32.gmra.mrb[0].mxu0 %v3375
      %v3514 = vpop.f32.mrb[0].mxu0
      %v3515 = vadd.f32 %v3372, %v3514
      %v3516 = vpop.f32.mrb[0].mxu0
      %3517 = vdwg.mxu0
      %3518 = vst.msk [vmem:[#allocation3] sm:$0xff] %vm1040, 0.0
      %3519 = vst.msk [vmem:[#allocation3 + $0x18] sm:$0xff] %vm1049, 0.0
      %v3520 = vmul.f32 %v3444, %v1062
      %v3521 = vmul.f32 %v3446, %v1066
      %v3522 = vmul.f32 %v3515, %v1070
      %3523 = vst [vmem:[#allocation3 + $0x8] sm:$0xff] %v3520
      %3524 = vst [vmem:[#allocation3 + $0x10] sm:$0xff] %v3521
      %3525 = vst.msk [vmem:[#allocation3 + $0x18] sm:$0xff] %vm1100, %v3522
      %v3526 = vld [vmem:[%s5] sm:$0xff]
      %v3527 = vld [vmem:[#allocation3] sm:$0xff]
      %v3528 = vld [vmem:[#allocation3 + $0x8] sm:$0xff]
      %v3529 = vld [vmem:[#allocation3 + $0x10] sm:$0xff]
      %v3530 = vld [vmem:[#allocation3 + $0x18] sm:$0xff]
      %3532 = vset.pattern.permute.xlu0 0
      %3533 = vperm.xlu0 %3532, %v3526
      %v3534 = vpop.permute.xlu0 %3533
      %v3536 = vmul.f32 %v3527, %v3534
      %v3537 = vmul.f32 %v3528, %v3534
      %v3538 = vmul.f32 %v3529, %v3534
      %v3539 = vmul.f32 %v3530, %v3534
      %v3540 = vadd.f32 %v3536, 0.0
      %v3541 = vadd.f32 %v3537, 0.0
      %v3542 = vadd.f32 %v3538, 0.0
      %v3543 = vadd.f32 %v3539, 0.0
      %3544 = vset.pattern.permute.xlu0 1
      %3545 = vperm.xlu0 %3544, %v3526
      %v3546 = vpop.permute.xlu0 %3545
      %v3548 = vmul.f32 %v3527, %v3546
      %v3549 = vmul.f32 %v3528, %v3546
      %v3550 = vmul.f32 %v3529, %v3546
      %v3551 = vmul.f32 %v3530, %v3546
      %3556 = vrot.lane.b32.xlu0 %v3548, 127
      %v3557 = vpop.permute.xlu0 %3556
      %3558 = vrot.lane.b32.xlu0 %v3549, 127
      %v3559 = vpop.permute.xlu0 %3558
      %3560 = vrot.lane.b32.xlu0 %v3550, 127
      %v3561 = vpop.permute.xlu0 %3560
      %3562 = vrot.lane.b32.xlu0 %v3551, 127
      %v3563 = vpop.permute.xlu0 %3562
      %v3564 = vsel %vm404, %v3557, %v3559
      %v3565 = vsel %vm404, %v3559, %v3561
      %v3566 = vsel %vm404, %v3561, %v3563
      %v3571 = vadd.f32 %v3540, %v3564
      %v3572 = vadd.f32 %v3541, %v3565
      %v3573 = vadd.f32 %v3542, %v3566
      %v3574 = vadd.f32 %v3543, %v3563
      %3575 = vset.pattern.permute.xlu0 2
      %3576 = vperm.xlu0 %3575, %v3526
      %v3577 = vpop.permute.xlu0 %3576
      %v3579 = vmul.f32 %v3527, %v3577
      %v3580 = vmul.f32 %v3528, %v3577
      %v3581 = vmul.f32 %v3529, %v3577
      %v3582 = vmul.f32 %v3530, %v3577
      %3587 = vrot.lane.b32.xlu0 %v3579, 126
      %v3588 = vpop.permute.xlu0 %3587
      %3589 = vrot.lane.b32.xlu0 %v3580, 126
      %v3590 = vpop.permute.xlu0 %3589
      %3591 = vrot.lane.b32.xlu0 %v3581, 126
      %v3592 = vpop.permute.xlu0 %3591
      %3593 = vrot.lane.b32.xlu0 %v3582, 126
      %v3594 = vpop.permute.xlu0 %3593
      %v3595 = vsel %vm416, %v3588, %v3590
      %v3596 = vsel %vm416, %v3590, %v3592
      %v3597 = vsel %vm416, %v3592, %v3594
      %v3602 = vadd.f32 %v3571, %v3595
      %v3603 = vadd.f32 %v3572, %v3596
      %v3604 = vadd.f32 %v3573, %v3597
      %v3605 = vadd.f32 %v3574, %v3594
      %3606 = vset.pattern.permute.xlu0 3
      %3607 = vperm.xlu0 %3606, %v3526
      %v3608 = vpop.permute.xlu0 %3607
      %v3610 = vmul.f32 %v3527, %v3608
      %v3611 = vmul.f32 %v3528, %v3608
      %v3612 = vmul.f32 %v3529, %v3608
      %v3613 = vmul.f32 %v3530, %v3608
      %3618 = vrot.lane.b32.xlu0 %v3610, 106
      %v3619 = vpop.permute.xlu0 %3618
      %3620 = vrot.lane.b32.xlu0 %v3611, 106
      %v3621 = vpop.permute.xlu0 %3620
      %3622 = vrot.lane.b32.xlu0 %v3612, 106
      %v3623 = vpop.permute.xlu0 %3622
      %3624 = vrot.lane.b32.xlu0 %v3613, 106
      %v3625 = vpop.permute.xlu0 %3624
      %v3626 = vsel %vm428, %v3619, %v3621
      %v3627 = vsel %vm428, %v3621, %v3623
      %v3628 = vsel %vm428, %v3623, %v3625
      %v3633 = vadd.f32 %v3602, %v3626
      %v3634 = vadd.f32 %v3603, %v3627
      %v3635 = vadd.f32 %v3604, %v3628
      %v3636 = vadd.f32 %v3605, %v3625
      %3637 = vset.pattern.permute.xlu0 4
      %3638 = vperm.xlu0 %3637, %v3526
      %v3639 = vpop.permute.xlu0 %3638
      %v3641 = vmul.f32 %v3528, %v3639
      %v3642 = vmul.f32 %v3529, %v3639
      %v3643 = vmul.f32 %v3530, %v3639
      %3647 = vrot.lane.b32.xlu0 %v3641, 105
      %v3648 = vpop.permute.xlu0 %3647
      %3649 = vrot.lane.b32.xlu0 %v3642, 105
      %v3650 = vpop.permute.xlu0 %3649
      %3651 = vrot.lane.b32.xlu0 %v3643, 105
      %v3652 = vpop.permute.xlu0 %3651
      %v3653 = vsel %vm438, %v3648, %v3650
      %v3654 = vsel %vm438, %v3650, %v3652
      %v3659 = vadd.f32 %v3633, %v3648
      %v3660 = vadd.f32 %v3634, %v3653
      %v3661 = vadd.f32 %v3635, %v3654
      %v3662 = vadd.f32 %v3636, %v3652
      %3663 = vset.pattern.permute.xlu0 5
      %3664 = vperm.xlu0 %3663, %v3526
      %v3665 = vpop.permute.xlu0 %3664
      %v3667 = vmul.f32 %v3528, %v3665
      %v3668 = vmul.f32 %v3529, %v3665
      %v3669 = vmul.f32 %v3530, %v3665
      %3673 = vrot.lane.b32.xlu0 %v3667, 104
      %v3674 = vpop.permute.xlu0 %3673
      %3675 = vrot.lane.b32.xlu0 %v3668, 104
      %v3676 = vpop.permute.xlu0 %3675
      %3677 = vrot.lane.b32.xlu0 %v3669, 104
      %v3678 = vpop.permute.xlu0 %3677
      %v3679 = vsel %vm447, %v3674, %v3676
      %v3680 = vsel %vm447, %v3676, %v3678
      %v3685 = vadd.f32 %v3659, %v3674
      %v3686 = vadd.f32 %v3660, %v3679
      %v3687 = vadd.f32 %v3661, %v3680
      %v3688 = vadd.f32 %v3662, %v3678
      %3689 = vset.pattern.permute.xlu0 6
      %3690 = vperm.xlu0 %3689, %v3526
      %v3691 = vpop.permute.xlu0 %3690
      %v3693 = vmul.f32 %v3528, %v3691
      %v3694 = vmul.f32 %v3529, %v3691
      %v3695 = vmul.f32 %v3530, %v3691
      %3699 = vrot.lane.b32.xlu0 %v3693, 84
      %v3700 = vpop.permute.xlu0 %3699
      %3701 = vrot.lane.b32.xlu0 %v3694, 84
      %v3702 = vpop.permute.xlu0 %3701
      %3703 = vrot.lane.b32.xlu0 %v3695, 84
      %v3704 = vpop.permute.xlu0 %3703
      %v3705 = vsel %vm456, %v3700, %v3702
      %v3706 = vsel %vm456, %v3702, %v3704
      %v3711 = vadd.f32 %v3685, %v3700
      %v3712 = vadd.f32 %v3686, %v3705
      %v3713 = vadd.f32 %v3687, %v3706
      %v3714 = vadd.f32 %v3688, %v3704
      %3715 = vset.pattern.permute.xlu0 7
      %3716 = vperm.xlu0 %3715, %v3526
      %v3717 = vpop.permute.xlu0 %3716
      %v3719 = vmul.f32 %v3528, %v3717
      %v3720 = vmul.f32 %v3529, %v3717
      %v3721 = vmul.f32 %v3530, %v3717
      %3725 = vrot.lane.b32.xlu0 %v3719, 83
      %v3726 = vpop.permute.xlu0 %3725
      %3727 = vrot.lane.b32.xlu0 %v3720, 83
      %v3728 = vpop.permute.xlu0 %3727
      %3729 = vrot.lane.b32.xlu0 %v3721, 83
      %v3730 = vpop.permute.xlu0 %3729
      %v3731 = vsel %vm465, %v3726, %v3728
      %v3732 = vsel %vm465, %v3728, %v3730
      %v3737 = vadd.f32 %v3711, %v3726
      %v3738 = vadd.f32 %v3712, %v3731
      %v3739 = vadd.f32 %v3713, %v3732
      %v3740 = vadd.f32 %v3714, %v3730
      %3741 = vset.pattern.permute.xlu0 8
      %3742 = vperm.xlu0 %3741, %v3526
      %v3743 = vpop.permute.xlu0 %3742
      %v3745 = vmul.f32 %v3528, %v3743
      %v3746 = vmul.f32 %v3529, %v3743
      %v3747 = vmul.f32 %v3530, %v3743
      %3751 = vrot.lane.b32.xlu0 %v3745, 82
      %v3752 = vpop.permute.xlu0 %3751
      %3753 = vrot.lane.b32.xlu0 %v3746, 82
      %v3754 = vpop.permute.xlu0 %3753
      %3755 = vrot.lane.b32.xlu0 %v3747, 82
      %v3756 = vpop.permute.xlu0 %3755
      %v3757 = vsel %vm474, %v3752, %v3754
      %v3758 = vsel %vm474, %v3754, %v3756
      %v3763 = vadd.f32 %v3737, %v3752
      %v3764 = vadd.f32 %v3738, %v3757
      %v3765 = vadd.f32 %v3739, %v3758
      %v3766 = vadd.f32 %v3740, %v3756
      %3771 = vrot.lane.b32.xlu0 %v3763, 23
      %v3772 = vpop.permute.xlu0 %3771
      %3773 = vrot.lane.b32.xlu0 %v3764, 23
      %v3774 = vpop.permute.xlu0 %3773
      %3775 = vrot.lane.b32.xlu0 %v3765, 23
      %v3776 = vpop.permute.xlu0 %3775
      %3777 = vrot.lane.b32.xlu0 %v3766, 23
      %v3778 = vpop.permute.xlu0 %3777
      %v3779 = vsel %vm551, %v3772, %v3774
      %v3780 = vsel %vm551, %v3774, %v3776
      %v3781 = vsel %vm551, %v3776, %v3778
      %v3785 = vmul.f32 %v680, 2.0
      %v3786 = vmul.f32 %v682, 2.0
      %v3787 = vmul.f32 %v757, 2.0
      %v3788 = vmul.f32 %v686, 2.0
      %v3789 = vmul.f32 %v688, 2.0
      %v3790 = vmul.f32 %v762, 2.0
      %v3791 = vadd.f32 %v3444, %v3785
      %v3792 = vadd.f32 %v3446, %v3786
      %v3793 = vadd.f32 %v3515, %v3787
      %v3794 = vadd.f32 %v3779, %v3788
      %v3795 = vadd.f32 %v3780, %v3789
      %v3796 = vadd.f32 %v3781, %v3790
      %v3797 = vmul.f32 %v3791, %v1062
      %v3798 = vmul.f32 %v3792, %v1066
      %v3799 = vmul.f32 %v3793, %v1070
      %v3800 = vmul.f32 %v3794, %v1062
      %v3801 = vmul.f32 %v3795, %v1066
      %v3802 = vmul.f32 %v3796, %v1070
      %v3803 = vadd.f32 %v3797, %v3798
      %v3804 = vsel %vm1100, %v3799, 0.0
      %v3805 = vadd.f32 %v3803, %v3804
      %3806 = vadd.xlane.f32.xlu0 %v3805
      %v3807 = vpop.xlane.xlu0 %3806
      %v3808 = vadd.f32 %v3800, %v3801
      %v3809 = vsel %vm1100, %v3802, 0.0
      %v3810 = vadd.f32 %v3808, %v3809
      %3811 = vadd.xlane.f32.xlu0 %v3810
      %v3812 = vpop.xlane.xlu0 %3811
      %v3813 = vmul.f32 %v3807, 0.00390625
      %v3814 = vmul.f32 %v3812, 0.00390625
      %vm3815 = vcmp.gt.f32.partialorder %v387, 0.0
      %v3816 = vsel %vm3815, 1, 0
      %v3817 = vlaneseq
      %v3818 = vshrl.u32 %v3817, 7
      %v3819 = vsub.s32 0, %v3818
      %v3820 = vrot.slane %v3816, %v3819
      %v3821 = vlaneseq
      %v3822 = vshrl.u32 %v3821, 7
      %v3823 = vsub.s32 1, %v3822
      %v3824 = vrot.slane %v3816, %v3823
      %v3825 = vlaneseq
      %v3826 = vshrl.u32 %v3825, 7
      %v3827 = vsub.s32 2, %v3826
      %v3828 = vrot.slane %v3816, %v3827
      %vm3829 = vcmp.eq.s32.totalorder %v3820, 1
      %vm3830 = vcmp.eq.s32.totalorder %v3824, 1
      %vm3831 = vcmp.eq.s32.totalorder %v3828, 1
      %v3832 = vsel %vm3829, %v3791, -1e+30
      %v3833 = vsel %vm3830, %v3792, -1e+30
      %v3834 = vsel %vm3831, %v3793, -1e+30
      %v3835 = vsel %vm3829, %v3794, -1e+30
      %v3836 = vsel %vm3830, %v3795, -1e+30
      %v3837 = vsel %vm3831, %v3796, -1e+30
      %v3838 = vsel %vm1100, %v3834, -inf
      %v3839 = vmax.f32 %v3832, %v3838
      %v3840 = vmax.f32 %v3839, %v3833
      %3841 = vmax.xlane.f32.xlu0 %v3840
      %v3842 = vpop.xlane.xlu0 %3841
      %v3843 = vsel %vm1100, %v3837, -inf
      %v3844 = vmax.f32 %v3835, %v3843
      %v3845 = vmax.f32 %v3844, %v3836
      %3846 = vmax.xlane.f32.xlu0 %v3845
      %v3847 = vpop.xlane.xlu0 %3846
      %v3848 = vld [vmem:[%s6] sm:$0x3]
      %v3850 = vsel %vm773, %v3848, 0
      %3852 = vmatprep.subr.mxu0 0.0
      %3853 = vmatpush1.msra.mxu0 %v3813
      %3854 = vmatprep.subr.mxu0 0.0
      %3855 = vmatpush1.msra.mxu0 %v3814
      %3856 = vmatprep.subr.mxu0 0.0
      %3857 = vmatpush1.msra.mxu0 0.0
      %3858 = vmatprep.subr.mxu0 0.0
      %3859 = vmatpush1.msra.mxu0 0.0
      %3860 = vmatprep.subr.mxu0 0.0
      %3861 = vmatpush1.msra.mxu0 0.0
      %3862 = vmatprep.subr.mxu0 0.0
      %3863 = vmatpush1.msra.mxu0 0.0
      %3864 = vmatprep.subr.mxu0 0.0
      %3865 = vmatpush1.msra.mxu0 0.0
      %3866 = vmatprep.subr.mxu0 0.0
      %3867 = vmatpush1.msra.mxu0 0.0
      %3868 = vmatprep.subr.mxu0 0.0
      %3869 = vmatpush1.msra.mxu0 0.0
      %3870 = vmatprep.subr.mxu0 0.0
      %3871 = vmatpush1.msra.mxu0 0.0
      %3872 = vmatprep.subr.mxu0 0.0
      %3873 = vmatpush1.msra.mxu0 0.0
      %3874 = vmatprep.subr.mxu0 0.0
      %3875 = vmatpush1.msra.mxu0 0.0
      %3876 = vmatprep.subr.mxu0 0.0
      %3877 = vmatpush1.msra.mxu0 0.0
      %3878 = vmatprep.subr.mxu0 0.0
      %3879 = vmatpush1.msra.mxu0 0.0
      %3880 = vmatprep.subr.mxu0 0.0
      %3881 = vmatpush1.msra.mxu0 0.0
      %3882 = vmatprep.subr.mxu0 0.0
      %3883 = vmatpush1.msra.mxu0 0.0
      %3884 = vmatprep.subr.mxu0 0.0
      %3885 = vmatpush1.msra.mxu0 0.0
      %3886 = vmatprep.subr.mxu0 0.0
      %3887 = vmatpush1.msra.mxu0 0.0
      %3888 = vmatprep.subr.mxu0 0.0
      %3889 = vmatpush1.msra.mxu0 0.0
      %3890 = vmatprep.subr.mxu0 0.0
      %3891 = vmatpush1.msra.mxu0 0.0
      %3892 = vmatprep.subr.mxu0 0.0
      %3893 = vmatpush1.msra.mxu0 0.0
      %3894 = vmatprep.subr.mxu0 0.0
      %3895 = vmatpush1.msra.mxu0 0.0
      %3896 = vmatprep.subr.mxu0 0.0
      %3897 = vmatpush1.msra.mxu0 0.0
      %3898 = vmatprep.subr.mxu0 0.0
      %3899 = vmatpush1.msra.mxu0 0.0
      %3900 = vmatprep.subr.mxu0 0.0
      %3901 = vmatpush1.msra.mxu0 0.0
      %3902 = vmatprep.subr.mxu0 0.0
      %3903 = vmatpush1.msra.mxu0 0.0
      %3904 = vmatprep.subr.mxu0 0.0
      %3905 = vmatpush1.msra.mxu0 0.0
      %3906 = vmatprep.subr.mxu0 0.0
      %3907 = vmatpush1.msra.mxu0 0.0
      %3908 = vmatprep.subr.mxu0 0.0
      %3909 = vmatpush1.msra.mxu0 0.0
      %3910 = vmatprep.subr.mxu0 0.0
      %3911 = vmatpush1.msra.mxu0 0.0
      %3912 = vmatprep.subr.mxu0 0.0
      %3913 = vmatpush1.msra.mxu0 0.0
      %3914 = vmatprep.subr.mxu0 0.0
      %3915 = vmatpush1.msra.mxu0 0.0
      %3916 = vmatprep.mubr.f32.mxu0 0.0
      %3917 = vmatmul.mubr.f32.gmra.mrb[0].mxu0 %v3850
      %v3918 = vpop.f32.mrb[0].mxu0
      %v3919 = vadd.f32 0.0, %v3918
      %v3920 = vpop.f32.mrb[0].mxu0
      %3921 = vdwg.mxu0
      %v3922 = vmax.f32 %v3919, 0.0
      %v3923 = vld [vmem:[%s7] sm:$0xff]
      %v3924 = vld [vmem:[%s7 + $0x8] sm:$0xff]
      %3925 = vmatprep.subr.mxu0 0.0
      %3926 = vmatpush1.msra.mxu0 %v3842
      %3927 = vmatprep.subr.mxu0 0.0
      %3928 = vmatpush1.msra.mxu0 %v3847
      %3929 = vmatprep.subr.mxu0 0.0
      %3930 = vmatpush1.msra.mxu0 0.0
      %3931 = vmatprep.subr.mxu0 0.0
      %3932 = vmatpush1.msra.mxu0 0.0
      %3933 = vmatprep.subr.mxu0 0.0
      %3934 = vmatpush1.msra.mxu0 0.0
      %3935 = vmatprep.subr.mxu0 0.0
      %3936 = vmatpush1.msra.mxu0 0.0
      %3937 = vmatprep.subr.mxu0 0.0
      %3938 = vmatpush1.msra.mxu0 0.0
      %3939 = vmatprep.subr.mxu0 0.0
      %3940 = vmatpush1.msra.mxu0 0.0
      %3941 = vmatprep.subr.mxu0 0.0
      %3942 = vmatpush1.msra.mxu0 0.0
      %3943 = vmatprep.subr.mxu0 0.0
      %3944 = vmatpush1.msra.mxu0 0.0
      %3945 = vmatprep.subr.mxu0 0.0
      %3946 = vmatpush1.msra.mxu0 0.0
      %3947 = vmatprep.subr.mxu0 0.0
      %3948 = vmatpush1.msra.mxu0 0.0
      %3949 = vmatprep.subr.mxu0 0.0
      %3950 = vmatpush1.msra.mxu0 0.0
      %3951 = vmatprep.subr.mxu0 0.0
      %3952 = vmatpush1.msra.mxu0 0.0
      %3953 = vmatprep.subr.mxu0 0.0
      %3954 = vmatpush1.msra.mxu0 0.0
      %3955 = vmatprep.subr.mxu0 0.0
      %3956 = vmatpush1.msra.mxu0 0.0
      %3957 = vmatprep.subr.mxu0 0.0
      %3958 = vmatpush1.msra.mxu0 0.0
      %3959 = vmatprep.subr.mxu0 0.0
      %3960 = vmatpush1.msra.mxu0 0.0
      %3961 = vmatprep.subr.mxu0 0.0
      %3962 = vmatpush1.msra.mxu0 0.0
      %3963 = vmatprep.subr.mxu0 0.0
      %3964 = vmatpush1.msra.mxu0 0.0
      %3965 = vmatprep.subr.mxu0 0.0
      %3966 = vmatpush1.msra.mxu0 0.0
      %3967 = vmatprep.subr.mxu0 0.0
      %3968 = vmatpush1.msra.mxu0 0.0
      %3969 = vmatprep.subr.mxu0 0.0
      %3970 = vmatpush1.msra.mxu0 0.0
      %3971 = vmatprep.subr.mxu0 0.0
      %3972 = vmatpush1.msra.mxu0 0.0
      %3973 = vmatprep.subr.mxu0 0.0
      %3974 = vmatpush1.msra.mxu0 0.0
      %3975 = vmatprep.subr.mxu0 0.0
      %3976 = vmatpush1.msra.mxu0 0.0
      %3977 = vmatprep.subr.mxu0 0.0
      %3978 = vmatpush1.msra.mxu0 0.0
      %3979 = vmatprep.subr.mxu0 0.0
      %3980 = vmatpush1.msra.mxu0 0.0
      %3981 = vmatprep.subr.mxu0 0.0
      %3982 = vmatpush1.msra.mxu0 0.0
      %3983 = vmatprep.subr.mxu0 0.0
      %3984 = vmatpush1.msra.mxu0 0.0
      %3985 = vmatprep.subr.mxu0 0.0
      %3986 = vmatpush1.msra.mxu0 0.0
      %3987 = vmatprep.subr.mxu0 0.0
      %3988 = vmatpush1.msra.mxu0 0.0
      %3989 = vmatprep.mubr.f32.mxu0 0.0
      %3990 = vmatmul.mubr.f32.gmra.mrb[0].mxu0 %v3850
      %v3991 = vpop.f32.mrb[0].mxu0
      %v3992 = vadd.f32 0.0, %v3991
      %v3993 = vpop.f32.mrb[0].mxu0
      %3994 = vdwg.mxu0
      %v3995 = vmax.f32 %v3992, 0.0
      %vm3996 = vcmask 15360
      %v3998 = vsel %vm3996, %v3923, 0
      %v4001 = vsel %vm3996, %v3924, 0
      %vm4003 = vcmask 1041408
      %v4005 = vsel %vm4003, %v3995, 0
      %4007 = vmatprep.subr.mxu0 0.0
      %4008 = vmatpush1.msra.mxu0 %v4005
      %4009 = vmatprep.subr.mxu0 0.0
      %4010 = vmatpush1.msra.mxu0 0.0
      %4011 = vmatprep.subr.mxu0 0.0
      %4012 = vmatpush1.msra.mxu0 0.0
      %4013 = vmatprep.subr.mxu0 0.0
      %4014 = vmatpush1.msra.mxu0 0.0
      %4015 = vmatprep.subr.mxu0 0.0
      %4016 = vmatpush1.msra.mxu0 0.0
      %4017 = vmatprep.subr.mxu0 0.0
      %4018 = vmatpush1.msra.mxu0 0.0
      %4019 = vmatprep.subr.mxu0 0.0
      %4020 = vmatpush1.msra.mxu0 0.0
      %4021 = vmatprep.subr.mxu0 0.0
      %4022 = vmatpush1.msra.mxu0 0.0
      %4023 = vmatprep.subr.mxu0 0.0
      %4024 = vmatpush1.msra.mxu0 0.0
      %4025 = vmatprep.subr.mxu0 0.0
      %4026 = vmatpush1.msra.mxu0 0.0
      %4027 = vmatprep.subr.mxu0 0.0
      %4028 = vmatpush1.msra.mxu0 0.0
      %4029 = vmatprep.subr.mxu0 0.0
      %4030 = vmatpush1.msra.mxu0 0.0
      %4031 = vmatprep.subr.mxu0 0.0
      %4032 = vmatpush1.msra.mxu0 0.0
      %4033 = vmatprep.subr.mxu0 0.0
      %4034 = vmatpush1.msra.mxu0 0.0
      %4035 = vmatprep.subr.mxu0 0.0
      %4036 = vmatpush1.msra.mxu0 0.0
      %4037 = vmatprep.subr.mxu0 0.0
      %4038 = vmatpush1.msra.mxu0 0.0
      %4039 = vmatprep.subr.mxu0 0.0
      %4040 = vmatpush1.msra.mxu0 0.0
      %4041 = vmatprep.subr.mxu0 0.0
      %4042 = vmatpush1.msra.mxu0 0.0
      %4043 = vmatprep.subr.mxu0 0.0
      %4044 = vmatpush1.msra.mxu0 0.0
      %4045 = vmatprep.subr.mxu0 0.0
      %4046 = vmatpush1.msra.mxu0 0.0
      %4047 = vmatprep.subr.mxu0 0.0
      %4048 = vmatpush1.msra.mxu0 0.0
      %4049 = vmatprep.subr.mxu0 0.0
      %4050 = vmatpush1.msra.mxu0 0.0
      %4051 = vmatprep.subr.mxu0 0.0
      %4052 = vmatpush1.msra.mxu0 0.0
      %4053 = vmatprep.subr.mxu0 0.0
      %4054 = vmatpush1.msra.mxu0 0.0
      %4055 = vmatprep.subr.mxu0 0.0
      %4056 = vmatpush1.msra.mxu0 0.0
      %4057 = vmatprep.subr.mxu0 0.0
      %4058 = vmatpush1.msra.mxu0 0.0
      %4059 = vmatprep.subr.mxu0 0.0
      %4060 = vmatpush1.msra.mxu0 0.0
      %4061 = vmatprep.subr.mxu0 0.0
      %4062 = vmatpush1.msra.mxu0 0.0
      %4063 = vmatprep.subr.mxu0 0.0
      %4064 = vmatpush1.msra.mxu0 0.0
      %4065 = vmatprep.subr.mxu0 0.0
      %4066 = vmatpush1.msra.mxu0 0.0
      %4067 = vmatprep.subr.mxu0 0.0
      %4068 = vmatpush1.msra.mxu0 0.0
      %4069 = vmatprep.subr.mxu0 0.0
      %4070 = vmatpush1.msra.mxu0 0.0
      %4071 = vmatprep.mubr.f32.mxu0 0.0
      %4072 = vmatmul.mubr.f32.gmra.mrb[0].mxu0 %v3998
      %v4073 = vpop.f32.mrb[0].mxu0
      %v4074 = vadd.f32 0.0, %v4073
      %v4075 = vpop.f32.mrb[0].mxu0
      %4076 = vmatprep.mubr.f32.mxu0 0.0
      %4077 = vmatmul.mubr.f32.gmra.mrb[0].mxu0 %v4001
      %v4078 = vpop.f32.mrb[0].mxu0
      %v4079 = vadd.f32 0.0, %v4078
      %v4080 = vpop.f32.mrb[0].mxu0
      %4081 = vdwg.mxu0
      %v4083 = vsel %vm4003, %v3922, 0
      %4085 = vmatprep.subr.mxu0 0.0
      %4086 = vmatpush1.msra.mxu0 %v4083
      %4087 = vmatprep.subr.mxu0 0.0
      %4088 = vmatpush1.msra.mxu0 0.0
      %4089 = vmatprep.subr.mxu0 0.0
      %4090 = vmatpush1.msra.mxu0 0.0
      %4091 = vmatprep.subr.mxu0 0.0
      %4092 = vmatpush1.msra.mxu0 0.0
      %4093 = vmatprep.subr.mxu0 0.0
      %4094 = vmatpush1.msra.mxu0 0.0
      %4095 = vmatprep.subr.mxu0 0.0
      %4096 = vmatpush1.msra.mxu0 0.0
      %4097 = vmatprep.subr.mxu0 0.0
      %4098 = vmatpush1.msra.mxu0 0.0
      %4099 = vmatprep.subr.mxu0 0.0
      %4100 = vmatpush1.msra.mxu0 0.0
      %4101 = vmatprep.subr.mxu0 0.0
      %4102 = vmatpush1.msra.mxu0 0.0
      %4103 = vmatprep.subr.mxu0 0.0
      %4104 = vmatpush1.msra.mxu0 0.0
      %4105 = vmatprep.subr.mxu0 0.0
      %4106 = vmatpush1.msra.mxu0 0.0
      %4107 = vmatprep.subr.mxu0 0.0
      %4108 = vmatpush1.msra.mxu0 0.0
      %4109 = vmatprep.subr.mxu0 0.0
      %4110 = vmatpush1.msra.mxu0 0.0
      %4111 = vmatprep.subr.mxu0 0.0
      %4112 = vmatpush1.msra.mxu0 0.0
      %4113 = vmatprep.subr.mxu0 0.0
      %4114 = vmatpush1.msra.mxu0 0.0
      %4115 = vmatprep.subr.mxu0 0.0
      %4116 = vmatpush1.msra.mxu0 0.0
      %4117 = vmatprep.subr.mxu0 0.0
      %4118 = vmatpush1.msra.mxu0 0.0
      %4119 = vmatprep.subr.mxu0 0.0
      %4120 = vmatpush1.msra.mxu0 0.0
      %4121 = vmatprep.subr.mxu0 0.0
      %4122 = vmatpush1.msra.mxu0 0.0
      %4123 = vmatprep.subr.mxu0 0.0
      %4124 = vmatpush1.msra.mxu0 0.0
      %4125 = vmatprep.subr.mxu0 0.0
      %4126 = vmatpush1.msra.mxu0 0.0
      %4127 = vmatprep.subr.mxu0 0.0
      %4128 = vmatpush1.msra.mxu0 0.0
      %4129 = vmatprep.subr.mxu0 0.0
      %4130 = vmatpush1.msra.mxu0 0.0
      %4131 = vmatprep.subr.mxu0 0.0
      %4132 = vmatpush1.msra.mxu0 0.0
      %4133 = vmatprep.subr.mxu0 0.0
      %4134 = vmatpush1.msra.mxu0 0.0
      %4135 = vmatprep.subr.mxu0 0.0
      %4136 = vmatpush1.msra.mxu0 0.0
      %4137 = vmatprep.subr.mxu0 0.0
      %4138 = vmatpush1.msra.mxu0 0.0
      %4139 = vmatprep.subr.mxu0 0.0
      %4140 = vmatpush1.msra.mxu0 0.0
      %4141 = vmatprep.subr.mxu0 0.0
      %4142 = vmatpush1.msra.mxu0 0.0
      %4143 = vmatprep.subr.mxu0 0.0
      %4144 = vmatpush1.msra.mxu0 0.0
      %4145 = vmatprep.subr.mxu0 0.0
      %4146 = vmatpush1.msra.mxu0 0.0
      %4147 = vmatprep.subr.mxu0 0.0
      %4148 = vmatpush1.msra.mxu0 0.0
      %4149 = vmatprep.mubr.f32.mxu0 0.0
      %4150 = vmatmul.mubr.f32.gmra.mrb[0].mxu0 %v3998
      %v4151 = vpop.f32.mrb[0].mxu0
      %v4152 = vadd.f32 %v4074, %v4151
      %v4153 = vpop.f32.mrb[0].mxu0
      %4154 = vmatprep.mubr.f32.mxu0 0.0
      %4155 = vmatmul.mubr.f32.gmra.mrb[0].mxu0 %v4001
      %v4156 = vpop.f32.mrb[0].mxu0
      %v4157 = vadd.f32 %v4079, %v4156
      %v4158 = vpop.f32.mrb[0].mxu0
      %4159 = vdwg.mxu0
      %v4160 = vxor.u32 %v4152, 2147483648
      %v4161 = vxor.u32 %v4157, 2147483648
      %v4162 = vmul.f32 %v4160, 1.442695
      %v4163 = vpow.pop %v4162
      %v4164 = vmul.f32 %v4161, 1.442695
      %v4165 = vpow.pop %v4164
      %v4166 = vadd.f32 %v4163, 1.0
      %v4167 = vadd.f32 %v4165, 1.0
      %v4168 = vrcp.pop %v4166
      %v4169 = vmul.f32 1.0, %v4168
      %v4170 = vrcp.pop %v4167
      %v4171 = vmul.f32 1.0, %v4170
      %4173 = vset.pattern.permute.xlu0 0
      %4174 = vperm.xlu0 %4173, %v4169
      %v4175 = vpop.permute.xlu0 %4174
      %4178 = vset.pattern.permute.xlu0 0
      %4179 = vperm.xlu0 %4178, %v4171
      %v4180 = vpop.permute.xlu0 %4179
      %v4182 = vmul.f32 %v3791, %v4175
      %v4183 = vmul.f32 %v3792, %v4175
      %v4184 = vmul.f32 %v3793, %v4175
      %v4185 = vmul.f32 %v3794, %v4180
      %v4186 = vmul.f32 %v3795, %v4180
      %v4187 = vmul.f32 %v3796, %v4180
      %vm4188 = vcmask 1041872
      %4189 = vst.msk [vmem:[#allocation4] sm:$0x3] %vm4188, 0.0
      %vm4190 = vcmask 1042176
      %vm4191 = vcmask 306178
      %vm4192 = vmor %vm4191, %vm4190
      %4193 = vst.msk [vmem:[#allocation4 + $0x6] sm:$0xf] %vm4192, 0.0
      %v4194 = vadd.f32 %v4182, %v4185
      %v4195 = vrot.slane %v4194, 4
      %v4196 = vadd.f32 %v4194, %v4195
      %v4197 = vrot.slane %v4196, 2
      %v4198 = vadd.f32 %v4196, %v4197
      %v4199 = vrot.slane %v4198, 1
      %v4200 = vadd.f32 %v4198, %v4199
      %v4201 = vadd.f32 %v4183, %v4186
      %v4202 = vrot.slane %v4201, 4
      %v4203 = vadd.f32 %v4201, %v4202
      %v4204 = vrot.slane %v4203, 2
      %v4205 = vadd.f32 %v4203, %v4204
      %v4206 = vrot.slane %v4205, 1
      %v4207 = vadd.f32 %v4205, %v4206
      %v4208 = vsel %vm1100, %v4184, 0.0
      %v4209 = vsel %vm1100, %v4187, 0.0
      %v4210 = vadd.f32 %v4208, %v4209
      %v4211 = vrot.slane %v4210, 4
      %v4212 = vadd.f32 %v4210, %v4211
      %v4213 = vrot.slane %v4212, 2
      %v4214 = vadd.f32 %v4212, %v4213
      %v4215 = vrot.slane %v4214, 1
      %v4216 = vadd.f32 %v4214, %v4215
      %v4217 = vrcp.pop 16.0
      %v4218 = vmul.f32 %v4200, %v4217
      %v4219 = vmul.f32 %v4207, %v4217
      %v4220 = vmul.f32 %v4216, %v4217
      %v4221 = vmul.f32 %v4218, %v1062
      %v4222 = vmul.f32 %v4219, %v1066
      %v4223 = vmul.f32 %v4220, %v1070
      %v4227 = vcombine.low %v4221, %v4222
      %v4229 = vunpack.c.l.s4 1966171168
      %v4230 = vunpack.c.0.s8 %v4229
      %v4231 = vlaneseq
      %v4232 = vshrl.u32 %v4231, 7
      %v4233 = vsub.s32 %v4230, %v4232
      %v4234 = vrot.slane %v4227, %v4233
      %v4236 = vunpack.c.l.s4 1966171168
      %v4237 = vunpack.c.0.s8 %v4236
      %v4238 = vlaneseq
      %v4239 = vshrl.u32 %v4238, 7
      %v4240 = vsub.s32 %v4237, %v4239
      %v4241 = vrot.slane %v4223, %v4240
      %v4242 = vcombine.low %v4234, %v4241
      %v4244 = vunpack.c.l.s4 1966171168
      %v4245 = vunpack.c.0.s8 %v4244
      %v4246 = vlaneseq
      %v4247 = vshrl.u32 %v4246, 7
      %v4248 = vsub.s32 %v4245, %v4247
      %v4249 = vrot.slane %v4242, %v4248
      %v4251 = vlaneseq
      %vm4252 = vcmp.ge.s32.totalorder %v4251, 0
      %vm4253 = vcmp.lt.s32.totalorder %v4251, 352
      %vm4254 = vmand %vm4252, %vm4253
      %s4255 = scalar_lea.vmem [#allocation4], 2
      %4256 = vst.msk [vmem:[%s4255] ss:$2 sm:$0x7] %vm4254, %v4249
      %v4257 = vmax.f32 %v4182, %v4185
      %v4258 = vrot.slane %v4257, 4
      %v4259 = vmax.f32 %v4257, %v4258
      %v4260 = vrot.slane %v4259, 2
      %v4261 = vmax.f32 %v4259, %v4260
      %v4262 = vrot.slane %v4261, 1
      %v4263 = vmax.f32 %v4261, %v4262
      %v4264 = vmax.f32 %v4183, %v4186
      %v4265 = vrot.slane %v4264, 4
      %v4266 = vmax.f32 %v4264, %v4265
      %v4267 = vrot.slane %v4266, 2
      %v4268 = vmax.f32 %v4266, %v4267
      %v4269 = vrot.slane %v4268, 1
      %v4270 = vmax.f32 %v4268, %v4269
      %v4271 = vsel %vm1100, %v4184, -inf
      %v4272 = vsel %vm1100, %v4187, -inf
      %v4273 = vmax.f32 %v4271, %v4272
      %v4274 = vrot.slane %v4273, 4
      %v4275 = vmax.f32 %v4273, %v4274
      %v4276 = vrot.slane %v4275, 2
      %v4277 = vmax.f32 %v4275, %v4276
      %v4278 = vrot.slane %v4277, 1
      %v4279 = vmax.f32 %v4277, %v4278
      %v4280 = vmul.f32 %v4263, %v1062
      %v4281 = vmul.f32 %v4270, %v1066
      %v4282 = vmul.f32 %v4279, %v1070
      %v4286 = vcombine.low %v4280, %v4281
      %v4288 = vunpack.c.l.s4 1966171168
      %v4289 = vunpack.c.0.s8 %v4288
      %v4290 = vlaneseq
      %v4291 = vshrl.u32 %v4290, 7
      %v4292 = vsub.s32 %v4289, %v4291
      %v4293 = vrot.slane %v4286, %v4292
      %v4295 = vunpack.c.l.s4 1966171168
      %v4296 = vunpack.c.0.s8 %v4295
      %v4297 = vlaneseq
      %v4298 = vshrl.u32 %v4297, 7
      %v4299 = vsub.s32 %v4296, %v4298
      %v4300 = vrot.slane %v4282, %v4299
      %v4301 = vcombine.low %v4293, %v4300
      %v4303 = vunpack.c.l.s4 1966171168
      %v4304 = vunpack.c.0.s8 %v4303
      %v4305 = vlaneseq
      %v4306 = vshrl.u32 %v4305, 7
      %v4307 = vsub.s32 %v4304, %v4306
      %v4308 = vrot.slane %v4301, %v4307
      %s4310 = scalar_lea.vmem [#allocation4], 3
      %4311 = vst.msk [vmem:[%s4310] ss:$2 sm:$0x7] %vm4254, %v4308
      %v4312 = vld [vmem:[%s8] sm:$0x3]
      %v4313 = vld [vmem:[#allocation4] sm:$0xff]
      %4315 = vset.pattern.permute.xlu0 0
      %4316 = vperm.xlu0 %4315, %v4312
      %v4317 = vpop.permute.xlu0 %4316
      %v4319 = vunpack.c.l.s4 269488144
      %v4320 = vunpack.c.0.s8 %v4319
      %v4321 = vlaneseq
      %v4322 = vshrl.u32 %v4321, 7
      %v4323 = vsub.s32 %v4320, %v4322
      %v4324 = vrot.slane %v4317, %v4323
      %v4326 = vmul.f32 %v4313, %v4324
      %v4327 = vadd.f32 %v4326, 0.0
      %4328 = vset.pattern.permute.xlu0 1
      %4329 = vperm.xlu0 %4328, %v4312
      %v4330 = vpop.permute.xlu0 %4329
      %v4332 = vunpack.c.l.s4 269488144
      %v4333 = vunpack.c.0.s8 %v4332
      %v4334 = vlaneseq
      %v4335 = vshrl.u32 %v4334, 7
      %v4336 = vsub.s32 %v4333, %v4335
      %v4337 = vrot.slane %v4330, %v4336
      %v4339 = vmul.f32 %v4313, %v4337
      %4341 = vrot.lane.b32.xlu0 %v4339, 127
      %v4342 = vpop.permute.xlu0 %4341
      %v4343 = vrot.slane %v4342, 2
      %v4344 = vsel %vm404, %v4342, %v4343
      %v4346 = vadd.f32 %v4327, %v4344
      %4347 = vset.pattern.permute.xlu0 2
      %4348 = vperm.xlu0 %4347, %v4312
      %v4349 = vpop.permute.xlu0 %4348
      %v4351 = vunpack.c.l.s4 269488144
      %v4352 = vunpack.c.0.s8 %v4351
      %v4353 = vlaneseq
      %v4354 = vshrl.u32 %v4353, 7
      %v4355 = vsub.s32 %v4352, %v4354
      %v4356 = vrot.slane %v4349, %v4355
      %v4358 = vmul.f32 %v4313, %v4356
      %4360 = vrot.lane.b32.xlu0 %v4358, 126
      %v4361 = vpop.permute.xlu0 %4360
      %v4362 = vrot.slane %v4361, 2
      %v4363 = vsel %vm416, %v4361, %v4362
      %v4365 = vadd.f32 %v4346, %v4363
      %4366 = vset.pattern.permute.xlu0 3
      %4367 = vperm.xlu0 %4366, %v4312
      %v4368 = vpop.permute.xlu0 %4367
      %v4370 = vunpack.c.l.s4 269488144
      %v4371 = vunpack.c.0.s8 %v4370
      %v4372 = vlaneseq
      %v4373 = vshrl.u32 %v4372, 7
      %v4374 = vsub.s32 %v4371, %v4373
      %v4375 = vrot.slane %v4368, %v4374
      %v4377 = vmul.f32 %v4313, %v4375
      %4379 = vrot.lane.b32.xlu0 %v4377, 125
      %v4380 = vpop.permute.xlu0 %4379
      %v4381 = vrot.slane %v4380, 2
      %vm4382 = vcmask 1022976
      %v4383 = vsel %vm4382, %v4380, %v4381
      %v4385 = vadd.f32 %v4365, %v4383
      %4386 = vset.pattern.permute.xlu0 4
      %4387 = vperm.xlu0 %4386, %v4312
      %v4388 = vpop.permute.xlu0 %4387
      %v4390 = vunpack.c.l.s4 269488144
      %v4391 = vunpack.c.0.s8 %v4390
      %v4392 = vlaneseq
      %v4393 = vshrl.u32 %v4392, 7
      %v4394 = vsub.s32 %v4391, %v4393
      %v4395 = vrot.slane %v4388, %v4394
      %v4397 = vmul.f32 %v4313, %v4395
      %4399 = vrot.lane.b32.xlu0 %v4397, 124
      %v4400 = vpop.permute.xlu0 %4399
      %v4401 = vrot.slane %v4400, 2
      %vm4402 = vcmask 1014784
      %v4403 = vsel %vm4402, %v4400, %v4401
      %v4405 = vadd.f32 %v4385, %v4403
      %4406 = vset.pattern.permute.xlu0 5
      %4407 = vperm.xlu0 %4406, %v4312
      %v4408 = vpop.permute.xlu0 %4407
      %v4410 = vunpack.c.l.s4 269488144
      %v4411 = vunpack.c.0.s8 %v4410
      %v4412 = vlaneseq
      %v4413 = vshrl.u32 %v4412, 7
      %v4414 = vsub.s32 %v4411, %v4413
      %v4415 = vrot.slane %v4408, %v4414
      %v4417 = vmul.f32 %v4313, %v4415
      %4419 = vrot.lane.b32.xlu0 %v4417, 123
      %v4420 = vpop.permute.xlu0 %4419
      %v4421 = vrot.slane %v4420, 2
      %vm4422 = vcmask 1006592
      %v4423 = vsel %vm4422, %v4420, %v4421
      %v4425 = vadd.f32 %v4405, %v4423
      %4426 = vset.pattern.permute.xlu0 6
      %4427 = vperm.xlu0 %4426, %v4312
      %v4428 = vpop.permute.xlu0 %4427
      %v4430 = vunpack.c.l.s4 269488144
      %v4431 = vunpack.c.0.s8 %v4430
      %v4432 = vlaneseq
      %v4433 = vshrl.u32 %v4432, 7
      %v4434 = vsub.s32 %v4431, %v4433
      %v4435 = vrot.slane %v4428, %v4434
      %v4437 = vmul.f32 %v4313, %v4435
      %4439 = vrot.lane.b32.xlu0 %v4437, 122
      %v4440 = vpop.permute.xlu0 %4439
      %v4441 = vrot.slane %v4440, 2
      %vm4442 = vcmask 998400
      %v4443 = vsel %vm4442, %v4440, %v4441
      %v4445 = vadd.f32 %v4425, %v4443
      %4446 = vset.pattern.permute.xlu0 7
      %4447 = vperm.xlu0 %4446, %v4312
      %v4448 = vpop.permute.xlu0 %4447
      %v4450 = vunpack.c.l.s4 269488144
      %v4451 = vunpack.c.0.s8 %v4450
      %v4452 = vlaneseq
      %v4453 = vshrl.u32 %v4452, 7
      %v4454 = vsub.s32 %v4451, %v4453
      %v4455 = vrot.slane %v4448, %v4454
      %v4457 = vmul.f32 %v4313, %v4455
      %4459 = vrot.lane.b32.xlu0 %v4457, 106
      %v4460 = vpop.permute.xlu0 %4459
      %v4461 = vrot.slane %v4460, 2
      %v4462 = vsel %vm428, %v4460, %v4461
      %v4464 = vadd.f32 %v4445, %v4462
      %4465 = vset.pattern.permute.xlu0 8
      %4466 = vperm.xlu0 %4465, %v4312
      %v4467 = vpop.permute.xlu0 %4466
      %v4469 = vunpack.c.l.s4 269488144
      %v4470 = vunpack.c.0.s8 %v4469
      %v4471 = vlaneseq
      %v4472 = vshrl.u32 %v4471, 7
      %v4473 = vsub.s32 %v4470, %v4472
      %v4474 = vrot.slane %v4467, %v4473
      %v4476 = vmul.f32 %v4313, %v4474
      %4478 = vrot.lane.b32.xlu0 %v4476, 105
      %v4479 = vpop.permute.xlu0 %4478
      %v4480 = vrot.slane %v4479, 2
      %v4481 = vsel %vm438, %v4479, %v4480
      %v4483 = vadd.f32 %v4464, %v4481
      %4484 = vset.pattern.permute.xlu0 9
      %4485 = vperm.xlu0 %4484, %v4312
      %v4486 = vpop.permute.xlu0 %4485
      %v4488 = vunpack.c.l.s4 269488144
      %v4489 = vunpack.c.0.s8 %v4488
      %v4490 = vlaneseq
      %v4491 = vshrl.u32 %v4490, 7
      %v4492 = vsub.s32 %v4489, %v4491
      %v4493 = vrot.slane %v4486, %v4492
      %v4495 = vmul.f32 %v4313, %v4493
      %4497 = vrot.lane.b32.xlu0 %v4495, 104
      %v4498 = vpop.permute.xlu0 %4497
      %v4499 = vrot.slane %v4498, 2
      %v4500 = vsel %vm447, %v4498, %v4499
      %v4502 = vadd.f32 %v4483, %v4500
      %4503 = vset.pattern.permute.xlu0 10
      %4504 = vperm.xlu0 %4503, %v4312
      %v4505 = vpop.permute.xlu0 %4504
      %v4507 = vunpack.c.l.s4 269488144
      %v4508 = vunpack.c.0.s8 %v4507
      %v4509 = vlaneseq
      %v4510 = vshrl.u32 %v4509, 7
      %v4511 = vsub.s32 %v4508, %v4510
      %v4512 = vrot.slane %v4505, %v4511
      %v4514 = vmul.f32 %v4313, %v4512
      %4516 = vrot.lane.b32.xlu0 %v4514, 103
      %v4517 = vpop.permute.xlu0 %4516
      %v4518 = vrot.slane %v4517, 2
      %vm4519 = vcmask 842752
      %v4520 = vsel %vm4519, %v4517, %v4518
      %v4522 = vadd.f32 %v4502, %v4520
      %4523 = vset.pattern.permute.xlu0 11
      %4524 = vperm.xlu0 %4523, %v4312
      %v4525 = vpop.permute.xlu0 %4524
      %v4527 = vunpack.c.l.s4 269488144
      %v4528 = vunpack.c.0.s8 %v4527
      %v4529 = vlaneseq
      %v4530 = vshrl.u32 %v4529, 7
      %v4531 = vsub.s32 %v4528, %v4530
      %v4532 = vrot.slane %v4525, %v4531
      %v4534 = vmul.f32 %v4313, %v4532
      %4536 = vrot.lane.b32.xlu0 %v4534, 102
      %v4537 = vpop.permute.xlu0 %4536
      %v4538 = vrot.slane %v4537, 2
      %vm4539 = vcmask 834560
      %v4540 = vsel %vm4539, %v4537, %v4538
      %v4542 = vadd.f32 %v4522, %v4540
      %4543 = vset.pattern.permute.xlu0 12
      %4544 = vperm.xlu0 %4543, %v4312
      %v4545 = vpop.permute.xlu0 %4544
      %v4547 = vunpack.c.l.s4 269488144
      %v4548 = vunpack.c.0.s8 %v4547
      %v4549 = vlaneseq
      %v4550 = vshrl.u32 %v4549, 7
      %v4551 = vsub.s32 %v4548, %v4550
      %v4552 = vrot.slane %v4545, %v4551
      %v4554 = vmul.f32 %v4313, %v4552
      %4556 = vrot.lane.b32.xlu0 %v4554, 101
      %v4557 = vpop.permute.xlu0 %4556
      %v4558 = vrot.slane %v4557, 2
      %vm4559 = vcmask 826368
      %v4560 = vsel %vm4559, %v4557, %v4558
      %v4562 = vadd.f32 %v4542, %v4560
      %4563 = vset.pattern.permute.xlu0 13
      %4564 = vperm.xlu0 %4563, %v4312
      %v4565 = vpop.permute.xlu0 %4564
      %v4567 = vunpack.c.l.s4 269488144
      %v4568 = vunpack.c.0.s8 %v4567
      %v4569 = vlaneseq
      %v4570 = vshrl.u32 %v4569, 7
      %v4571 = vsub.s32 %v4568, %v4570
      %v4572 = vrot.slane %v4565, %v4571
      %v4574 = vmul.f32 %v4313, %v4572
      %4576 = vrot.lane.b32.xlu0 %v4574, 100
      %v4577 = vpop.permute.xlu0 %4576
      %v4578 = vrot.slane %v4577, 2
      %vm4579 = vcmask 818176
      %v4580 = vsel %vm4579, %v4577, %v4578
      %v4582 = vadd.f32 %v4562, %v4580
      %4583 = vset.pattern.permute.xlu0 14
      %4584 = vperm.xlu0 %4583, %v4312
      %v4585 = vpop.permute.xlu0 %4584
      %v4587 = vunpack.c.l.s4 269488144
      %v4588 = vunpack.c.0.s8 %v4587
      %v4589 = vlaneseq
      %v4590 = vshrl.u32 %v4589, 7
      %v4591 = vsub.s32 %v4588, %v4590
      %v4592 = vrot.slane %v4585, %v4591
      %v4594 = vmul.f32 %v4313, %v4592
      %4596 = vrot.lane.b32.xlu0 %v4594, 84
      %v4597 = vpop.permute.xlu0 %4596
      %v4598 = vrot.slane %v4597, 2
      %v4599 = vsel %vm456, %v4597, %v4598
      %v4601 = vadd.f32 %v4582, %v4599
      %4602 = vset.pattern.permute.xlu0 15
      %4603 = vperm.xlu0 %4602, %v4312
      %v4604 = vpop.permute.xlu0 %4603
      %v4606 = vunpack.c.l.s4 269488144
      %v4607 = vunpack.c.0.s8 %v4606
      %v4608 = vlaneseq
      %v4609 = vshrl.u32 %v4608, 7
      %v4610 = vsub.s32 %v4607, %v4609
      %v4611 = vrot.slane %v4604, %v4610
      %v4613 = vmul.f32 %v4313, %v4611
      %4615 = vrot.lane.b32.xlu0 %v4613, 83
      %v4616 = vpop.permute.xlu0 %4615
      %v4617 = vrot.slane %v4616, 2
      %v4618 = vsel %vm465, %v4616, %v4617
      %v4620 = vadd.f32 %v4601, %v4618
      %4621 = vset.pattern.permute.xlu0 16
      %4622 = vperm.xlu0 %4621, %v4312
      %v4623 = vpop.permute.xlu0 %4622
      %v4625 = vunpack.c.l.s4 269488144
      %v4626 = vunpack.c.0.s8 %v4625
      %v4627 = vlaneseq
      %v4628 = vshrl.u32 %v4627, 7
      %v4629 = vsub.s32 %v4626, %v4628
      %v4630 = vrot.slane %v4623, %v4629
      %v4632 = vmul.f32 %v4313, %v4630
      %4634 = vrot.lane.b32.xlu0 %v4632, 82
      %v4635 = vpop.permute.xlu0 %4634
      %v4636 = vrot.slane %v4635, 2
      %v4637 = vsel %vm474, %v4635, %v4636
      %v4639 = vadd.f32 %v4620, %v4637
      %4640 = vset.pattern.permute.xlu0 17
      %4641 = vperm.xlu0 %4640, %v4312
      %v4642 = vpop.permute.xlu0 %4641
      %v4644 = vunpack.c.l.s4 269488144
      %v4645 = vunpack.c.0.s8 %v4644
      %v4646 = vlaneseq
      %v4647 = vshrl.u32 %v4646, 7
      %v4648 = vsub.s32 %v4645, %v4647
      %v4649 = vrot.slane %v4642, %v4648
      %v4651 = vmul.f32 %v4313, %v4649
      %4653 = vrot.lane.b32.xlu0 %v4651, 81
      %v4654 = vpop.permute.xlu0 %4653
      %v4655 = vrot.slane %v4654, 2
      %vm4656 = vcmask 662528
      %v4657 = vsel %vm4656, %v4654, %v4655
      %v4659 = vadd.f32 %v4639, %v4657
      %4660 = vset.pattern.permute.xlu0 18
      %4661 = vperm.xlu0 %4660, %v4312
      %v4662 = vpop.permute.xlu0 %4661
      %v4664 = vunpack.c.l.s4 269488144
      %v4665 = vunpack.c.0.s8 %v4664
      %v4666 = vlaneseq
      %v4667 = vshrl.u32 %v4666, 7
      %v4668 = vsub.s32 %v4665, %v4667
      %v4669 = vrot.slane %v4662, %v4668
      %v4671 = vmul.f32 %v4313, %v4669
      %4673 = vrot.lane.b32.xlu0 %v4671, 80
      %v4674 = vpop.permute.xlu0 %4673
      %v4675 = vrot.slane %v4674, 2
      %vm4676 = vcmask 654336
      %v4677 = vsel %vm4676, %v4674, %v4675
      %v4679 = vadd.f32 %v4659, %v4677
      %4680 = vset.pattern.permute.xlu0 19
      %4681 = vperm.xlu0 %4680, %v4312
      %v4682 = vpop.permute.xlu0 %4681
      %v4684 = vunpack.c.l.s4 269488144
      %v4685 = vunpack.c.0.s8 %v4684
      %v4686 = vlaneseq
      %v4687 = vshrl.u32 %v4686, 7
      %v4688 = vsub.s32 %v4685, %v4687
      %v4689 = vrot.slane %v4682, %v4688
      %v4691 = vmul.f32 %v4313, %v4689
      %4693 = vrot.lane.b32.xlu0 %v4691, 79
      %v4694 = vpop.permute.xlu0 %4693
      %v4695 = vrot.slane %v4694, 2
      %vm4696 = vcmask 646144
      %v4697 = vsel %vm4696, %v4694, %v4695
      %v4699 = vadd.f32 %v4679, %v4697
      %4700 = vset.pattern.permute.xlu0 20
      %4701 = vperm.xlu0 %4700, %v4312
      %v4702 = vpop.permute.xlu0 %4701
      %v4704 = vunpack.c.l.s4 269488144
      %v4705 = vunpack.c.0.s8 %v4704
      %v4706 = vlaneseq
      %v4707 = vshrl.u32 %v4706, 7
      %v4708 = vsub.s32 %v4705, %v4707
      %v4709 = vrot.slane %v4702, %v4708
      %v4711 = vmul.f32 %v4313, %v4709
      %4713 = vrot.lane.b32.xlu0 %v4711, 78
      %v4714 = vpop.permute.xlu0 %4713
      %v4715 = vrot.slane %v4714, 2
      %vm4716 = vcmask 637952
      %v4717 = vsel %vm4716, %v4714, %v4715
      %v4719 = vadd.f32 %v4699, %v4717
      %4720 = vset.pattern.permute.xlu0 21
      %4721 = vperm.xlu0 %4720, %v4312
      %v4722 = vpop.permute.xlu0 %4721
      %v4724 = vunpack.c.l.s4 269488144
      %v4725 = vunpack.c.0.s8 %v4724
      %v4726 = vlaneseq
      %v4727 = vshrl.u32 %v4726, 7
      %v4728 = vsub.s32 %v4725, %v4727
      %v4729 = vrot.slane %v4722, %v4728
      %v4731 = vmul.f32 %v4313, %v4729
      %4733 = vrot.lane.b32.xlu0 %v4731, 62
      %v4734 = vpop.permute.xlu0 %4733
      %v4735 = vrot.slane %v4734, 2
      %vm4736 = vcmask 506880
      %v4737 = vsel %vm4736, %v4734, %v4735
      %v4739 = vadd.f32 %v4719, %v4737
      %4740 = vset.pattern.permute.xlu0 22
      %4741 = vperm.xlu0 %4740, %v4312
      %v4742 = vpop.permute.xlu0 %4741
      %v4744 = vunpack.c.l.s4 269488144
      %v4745 = vunpack.c.0.s8 %v4744
      %v4746 = vlaneseq
      %v4747 = vshrl.u32 %v4746, 7
      %v4748 = vsub.s32 %v4745, %v4747
      %v4749 = vrot.slane %v4742, %v4748
      %v4751 = vmul.f32 %v4313, %v4749
      %4753 = vrot.lane.b32.xlu0 %v4751, 61
      %v4754 = vpop.permute.xlu0 %4753
      %v4755 = vrot.slane %v4754, 2
      %vm4756 = vcmask 498688
      %v4757 = vsel %vm4756, %v4754, %v4755
      %v4759 = vadd.f32 %v4739, %v4757
      %4760 = vset.pattern.permute.xlu0 23
      %4761 = vperm.xlu0 %4760, %v4312
      %v4762 = vpop.permute.xlu0 %4761
      %v4764 = vunpack.c.l.s4 269488144
      %v4765 = vunpack.c.0.s8 %v4764
      %v4766 = vlaneseq
      %v4767 = vshrl.u32 %v4766, 7
      %v4768 = vsub.s32 %v4765, %v4767
      %v4769 = vrot.slane %v4762, %v4768
      %v4771 = vmul.f32 %v4313, %v4769
      %4773 = vrot.lane.b32.xlu0 %v4771, 60
      %v4774 = vpop.permute.xlu0 %4773
      %v4775 = vrot.slane %v4774, 2
      %vm4776 = vcmask 490496
      %v4777 = vsel %vm4776, %v4774, %v4775
      %v4779 = vadd.f32 %v4759, %v4777
      %v4780 = vld [vmem:[#allocation4 + $0x2] sm:$0x3f]
      %4781 = vset.pattern.permute.xlu0 24
      %4782 = vperm.xlu0 %4781, %v4312
      %v4783 = vpop.permute.xlu0 %4782
      %v4785 = vunpack.c.l.s4 269488144
      %v4786 = vunpack.c.0.s8 %v4785
      %v4787 = vlaneseq
      %v4788 = vshrl.u32 %v4787, 7
      %v4789 = vsub.s32 %v4786, %v4788
      %v4790 = vrot.slane %v4783, %v4789
      %v4792 = vmul.f32 %v4780, %v4790
      %4794 = vrot.lane.b32.xlu0 %v4792, 59
      %v4795 = vpop.permute.xlu0 %4794
      %v4796 = vrot.slane %v4795, 6
      %vm4797 = vcmask 482304
      %v4798 = vsel %vm4797, %v4796, %v4795
      %v4800 = vadd.f32 %v4779, %v4798
      %4801 = vset.pattern.permute.xlu0 25
      %4802 = vperm.xlu0 %4801, %v4312
      %v4803 = vpop.permute.xlu0 %4802
      %v4805 = vunpack.c.l.s4 269488144
      %v4806 = vunpack.c.0.s8 %v4805
      %v4807 = vlaneseq
      %v4808 = vshrl.u32 %v4807, 7
      %v4809 = vsub.s32 %v4806, %v4808
      %v4810 = vrot.slane %v4803, %v4809
      %v4812 = vmul.f32 %v4780, %v4810
      %4814 = vrot.lane.b32.xlu0 %v4812, 58
      %v4815 = vpop.permute.xlu0 %4814
      %v4816 = vrot.slane %v4815, 6
      %vm4817 = vcmask 474112
      %v4818 = vsel %vm4817, %v4816, %v4815
      %v4820 = vadd.f32 %v4800, %v4818
      %4821 = vset.pattern.permute.xlu0 26
      %4822 = vperm.xlu0 %4821, %v4312
      %v4823 = vpop.permute.xlu0 %4822
      %v4825 = vunpack.c.l.s4 269488144
      %v4826 = vunpack.c.0.s8 %v4825
      %v4827 = vlaneseq
      %v4828 = vshrl.u32 %v4827, 7
      %v4829 = vsub.s32 %v4826, %v4828
      %v4830 = vrot.slane %v4823, %v4829
      %v4832 = vmul.f32 %v4780, %v4830
      %4834 = vrot.lane.b32.xlu0 %v4832, 57
      %v4835 = vpop.permute.xlu0 %4834
      %v4836 = vrot.slane %v4835, 6
      %vm4837 = vcmask 465920
      %v4838 = vsel %vm4837, %v4836, %v4835
      %v4840 = vadd.f32 %v4820, %v4838
      %4841 = vset.pattern.permute.xlu0 27
      %4842 = vperm.xlu0 %4841, %v4312
      %v4843 = vpop.permute.xlu0 %4842
      %v4845 = vunpack.c.l.s4 269488144
      %v4846 = vunpack.c.0.s8 %v4845
      %v4847 = vlaneseq
      %v4848 = vshrl.u32 %v4847, 7
      %v4849 = vsub.s32 %v4846, %v4848
      %v4850 = vrot.slane %v4843, %v4849
      %v4852 = vmul.f32 %v4780, %v4850
      %4854 = vrot.lane.b32.xlu0 %v4852, 56
      %v4855 = vpop.permute.xlu0 %4854
      %v4856 = vrot.slane %v4855, 6
      %vm4857 = vcmask 457728
      %v4858 = vsel %vm4857, %v4856, %v4855
      %v4860 = vadd.f32 %v4840, %v4858
      %4861 = vset.pattern.permute.xlu0 28
      %4862 = vperm.xlu0 %4861, %v4312
      %v4863 = vpop.permute.xlu0 %4862
      %v4865 = vunpack.c.l.s4 269488144
      %v4866 = vunpack.c.0.s8 %v4865
      %v4867 = vlaneseq
      %v4868 = vshrl.u32 %v4867, 7
      %v4869 = vsub.s32 %v4866, %v4868
      %v4870 = vrot.slane %v4863, %v4869
      %v4872 = vmul.f32 %v4780, %v4870
      %4874 = vrot.lane.b32.xlu0 %v4872, 40
      %v4875 = vpop.permute.xlu0 %4874
      %v4876 = vrot.slane %v4875, 6
      %vm4877 = vcmask 326656
      %v4878 = vsel %vm4877, %v4876, %v4875
      %v4880 = vadd.f32 %v4860, %v4878
      %4881 = vset.pattern.permute.xlu0 29
      %4882 = vperm.xlu0 %4881, %v4312
      %v4883 = vpop.permute.xlu0 %4882
      %v4885 = vunpack.c.l.s4 269488144
      %v4886 = vunpack.c.0.s8 %v4885
      %v4887 = vlaneseq
      %v4888 = vshrl.u32 %v4887, 7
      %v4889 = vsub.s32 %v4886, %v4888
      %v4890 = vrot.slane %v4883, %v4889
      %v4892 = vmul.f32 %v4780, %v4890
      %4894 = vrot.lane.b32.xlu0 %v4892, 39
      %v4895 = vpop.permute.xlu0 %4894
      %v4896 = vrot.slane %v4895, 6
      %vm4897 = vcmask 318464
      %v4898 = vsel %vm4897, %v4896, %v4895
      %v4900 = vadd.f32 %v4880, %v4898
      %4901 = vset.pattern.permute.xlu0 30
      %4902 = vperm.xlu0 %4901, %v4312
      %v4903 = vpop.permute.xlu0 %4902
      %v4905 = vunpack.c.l.s4 269488144
      %v4906 = vunpack.c.0.s8 %v4905
      %v4907 = vlaneseq
      %v4908 = vshrl.u32 %v4907, 7
      %v4909 = vsub.s32 %v4906, %v4908
      %v4910 = vrot.slane %v4903, %v4909
      %v4912 = vmul.f32 %v4780, %v4910
      %4914 = vrot.lane.b32.xlu0 %v4912, 38
      %v4915 = vpop.permute.xlu0 %4914
      %v4916 = vrot.slane %v4915, 6
      %vm4917 = vcmask 310272
      %v4918 = vsel %vm4917, %v4916, %v4915
      %v4920 = vadd.f32 %v4900, %v4918
      %4921 = vset.pattern.permute.xlu0 31
      %4922 = vperm.xlu0 %4921, %v4312
      %v4923 = vpop.permute.xlu0 %4922
      %v4925 = vunpack.c.l.s4 269488144
      %v4926 = vunpack.c.0.s8 %v4925
      %v4927 = vlaneseq
      %v4928 = vshrl.u32 %v4927, 7
      %v4929 = vsub.s32 %v4926, %v4928
      %v4930 = vrot.slane %v4923, %v4929
      %v4932 = vmul.f32 %v4780, %v4930
      %4934 = vrot.lane.b32.xlu0 %v4932, 37
      %v4935 = vpop.permute.xlu0 %4934
      %v4936 = vrot.slane %v4935, 6
      %vm4937 = vcmask 302080
      %v4938 = vsel %vm4937, %v4936, %v4935
      %v4940 = vadd.f32 %v4920, %v4938
      %4941 = vset.pattern.permute.xlu0 32
      %4942 = vperm.xlu0 %4941, %v4312
      %v4943 = vpop.permute.xlu0 %4942
      %v4945 = vunpack.c.l.s4 269488144
      %v4946 = vunpack.c.0.s8 %v4945
      %v4947 = vlaneseq
      %v4948 = vshrl.u32 %v4947, 7
      %v4949 = vsub.s32 %v4946, %v4948
      %v4950 = vrot.slane %v4943, %v4949
      %v4952 = vmul.f32 %v4780, %v4950
      %4954 = vrot.lane.b32.xlu0 %v4952, 36
      %v4955 = vpop.permute.xlu0 %4954
      %v4956 = vrot.slane %v4955, 6
      %vm4957 = vcmask 293888
      %v4958 = vsel %vm4957, %v4956, %v4955
      %v4960 = vadd.f32 %v4940, %v4958
      %4961 = vset.pattern.permute.xlu0 33
      %4962 = vperm.xlu0 %4961, %v4312
      %v4963 = vpop.permute.xlu0 %4962
      %v4965 = vunpack.c.l.s4 269488144
      %v4966 = vunpack.c.0.s8 %v4965
      %v4967 = vlaneseq
      %v4968 = vshrl.u32 %v4967, 7
      %v4969 = vsub.s32 %v4966, %v4968
      %v4970 = vrot.slane %v4963, %v4969
      %v4972 = vmul.f32 %v4780, %v4970
      %4974 = vrot.lane.b32.xlu0 %v4972, 35
      %v4975 = vpop.permute.xlu0 %4974
      %v4976 = vrot.slane %v4975, 6
      %vm4977 = vcmask 285696
      %v4978 = vsel %vm4977, %v4976, %v4975
      %v4980 = vadd.f32 %v4960, %v4978
      %4981 = vset.pattern.permute.xlu0 34
      %4982 = vperm.xlu0 %4981, %v4312
      %v4983 = vpop.permute.xlu0 %4982
      %v4985 = vunpack.c.l.s4 269488144
      %v4986 = vunpack.c.0.s8 %v4985
      %v4987 = vlaneseq
      %v4988 = vshrl.u32 %v4987, 7
      %v4989 = vsub.s32 %v4986, %v4988
      %v4990 = vrot.slane %v4983, %v4989
      %v4992 = vmul.f32 %v4780, %v4990
      %4994 = vrot.lane.b32.xlu0 %v4992, 34
      %v4995 = vpop.permute.xlu0 %4994
      %v4996 = vrot.slane %v4995, 6
      %vm4997 = vcmask 277504
      %v4998 = vsel %vm4997, %v4996, %v4995
      %v5000 = vadd.f32 %v4980, %v4998
      %v5001 = vld [vmem:[#allocation4 + $0x2] sm:$0xff]
      %5002 = vset.pattern.permute.xlu0 35
      %5003 = vperm.xlu0 %5002, %v4312
      %v5004 = vpop.permute.xlu0 %5003
      %v5006 = vunpack.c.l.s4 269488144
      %v5007 = vunpack.c.0.s8 %v5006
      %v5008 = vlaneseq
      %v5009 = vshrl.u32 %v5008, 7
      %v5010 = vsub.s32 %v5007, %v5009
      %v5011 = vrot.slane %v5004, %v5010
      %v5013 = vmul.f32 %v5001, %v5011
      %5015 = vrot.lane.b32.xlu0 %v5013, 18
      %v5016 = vpop.permute.xlu0 %5015
      %v5017 = vrot.slane %v5016, 6
      %vm5018 = vcmask 146432
      %v5019 = vsel %vm5018, %v5017, %v5016
      %v5021 = vadd.f32 %v5000, %v5019
      %5022 = vset.pattern.permute.xlu0 36
      %5023 = vperm.xlu0 %5022, %v4312
      %v5024 = vpop.permute.xlu0 %5023
      %v5026 = vunpack.c.l.s4 269488144
      %v5027 = vunpack.c.0.s8 %v5026
      %v5028 = vlaneseq
      %v5029 = vshrl.u32 %v5028, 7
      %v5030 = vsub.s32 %v5027, %v5029
      %v5031 = vrot.slane %v5024, %v5030
      %v5033 = vmul.f32 %v5001, %v5031
      %5035 = vrot.lane.b32.xlu0 %v5033, 17
      %v5036 = vpop.permute.xlu0 %5035
      %v5037 = vrot.slane %v5036, 6
      %vm5038 = vcmask 138240
      %v5039 = vsel %vm5038, %v5037, %v5036
      %v5041 = vadd.f32 %v5021, %v5039
      %5042 = vset.pattern.permute.xlu0 37
      %5043 = vperm.xlu0 %5042, %v4312
      %v5044 = vpop.permute.xlu0 %5043
      %v5046 = vunpack.c.l.s4 269488144
      %v5047 = vunpack.c.0.s8 %v5046
      %v5048 = vlaneseq
      %v5049 = vshrl.u32 %v5048, 7
      %v5050 = vsub.s32 %v5047, %v5049
      %v5051 = vrot.slane %v5044, %v5050
      %v5053 = vmul.f32 %v5001, %v5051
      %5055 = vrot.lane.b32.xlu0 %v5053, 16
      %v5056 = vpop.permute.xlu0 %5055
      %v5057 = vrot.slane %v5056, 6
      %v5058 = vsel %vm773, %v5057, %v5056
      %v5060 = vadd.f32 %v5041, %v5058
      %5061 = vset.pattern.permute.xlu0 38
      %5062 = vperm.xlu0 %5061, %v4312
      %v5063 = vpop.permute.xlu0 %5062
      %v5065 = vunpack.c.l.s4 269488144
      %v5066 = vunpack.c.0.s8 %v5065
      %v5067 = vlaneseq
      %v5068 = vshrl.u32 %v5067, 7
      %v5069 = vsub.s32 %v5066, %v5068
      %v5070 = vrot.slane %v5063, %v5069
      %v5072 = vmul.f32 %v5001, %v5070
      %5074 = vrot.lane.b32.xlu0 %v5072, 15
      %v5075 = vpop.permute.xlu0 %5074
      %v5076 = vrot.slane %v5075, 6
      %vm5077 = vcmask 121856
      %v5078 = vsel %vm5077, %v5076, %v5075
      %v5080 = vadd.f32 %v5060, %v5078
      %5081 = vset.pattern.permute.xlu0 39
      %5082 = vperm.xlu0 %5081, %v4312
      %v5083 = vpop.permute.xlu0 %5082
      %v5085 = vunpack.c.l.s4 269488144
      %v5086 = vunpack.c.0.s8 %v5085
      %v5087 = vlaneseq
      %v5088 = vshrl.u32 %v5087, 7
      %v5089 = vsub.s32 %v5086, %v5088
      %v5090 = vrot.slane %v5083, %v5089
      %v5092 = vmul.f32 %v5001, %v5090
      %5094 = vrot.lane.b32.xlu0 %v5092, 14
      %v5095 = vpop.permute.xlu0 %5094
      %v5096 = vrot.slane %v5095, 6
      %vm5097 = vcmask 113664
      %v5098 = vsel %vm5097, %v5096, %v5095
      %v5100 = vadd.f32 %v5080, %v5098
      %5101 = vset.pattern.permute.xlu0 40
      %5102 = vperm.xlu0 %5101, %v4312
      %v5103 = vpop.permute.xlu0 %5102
      %v5105 = vunpack.c.l.s4 269488144
      %v5106 = vunpack.c.0.s8 %v5105
      %v5107 = vlaneseq
      %v5108 = vshrl.u32 %v5107, 7
      %v5109 = vsub.s32 %v5106, %v5108
      %v5110 = vrot.slane %v5103, %v5109
      %v5112 = vmul.f32 %v5001, %v5110
      %5114 = vrot.lane.b32.xlu0 %v5112, 13
      %v5115 = vpop.permute.xlu0 %5114
      %v5116 = vrot.slane %v5115, 6
      %vm5117 = vcmask 105472
      %v5118 = vsel %vm5117, %v5116, %v5115
      %v5120 = vadd.f32 %v5100, %v5118
      %5121 = vset.pattern.permute.xlu0 41
      %5122 = vperm.xlu0 %5121, %v4312
      %v5123 = vpop.permute.xlu0 %5122
      %v5125 = vunpack.c.l.s4 269488144
      %v5126 = vunpack.c.0.s8 %v5125
      %v5127 = vlaneseq
      %v5128 = vshrl.u32 %v5127, 7
      %v5129 = vsub.s32 %v5126, %v5128
      %v5130 = vrot.slane %v5123, %v5129
      %v5132 = vmul.f32 %v5001, %v5130
      %5134 = vrot.lane.b32.xlu0 %v5132, 12
      %v5135 = vpop.permute.xlu0 %5134
      %v5136 = vrot.slane %v5135, 6
      %vm5137 = vcmask 97280
      %v5138 = vsel %vm5137, %v5136, %v5135
      %v5140 = vadd.f32 %v5120, %v5138
      %5141 = vset.pattern.permute.xlu0 42
      %5142 = vperm.xlu0 %5141, %v4312
      %v5143 = vpop.permute.xlu0 %5142
      %v5145 = vunpack.c.l.s4 269488144
      %v5146 = vunpack.c.0.s8 %v5145
      %v5147 = vlaneseq
      %v5148 = vshrl.u32 %v5147, 7
      %v5149 = vsub.s32 %v5146, %v5148
      %v5150 = vrot.slane %v5143, %v5149
      %v5152 = vmul.f32 %v5001, %v5150
      %5154 = vrot.lane.b32.xlu0 %v5152, 124
      %v5155 = vpop.permute.xlu0 %5154
      %v5156 = vrot.slane %v5155, 2
      %v5157 = vsel %vm4402, %v5155, %v5156
      %v5159 = vadd.f32 %v5140, %v5157
      %5160 = vset.pattern.permute.xlu0 43
      %5161 = vperm.xlu0 %5160, %v4312
      %v5162 = vpop.permute.xlu0 %5161
      %v5164 = vunpack.c.l.s4 269488144
      %v5165 = vunpack.c.0.s8 %v5164
      %v5166 = vlaneseq
      %v5167 = vshrl.u32 %v5166, 7
      %v5168 = vsub.s32 %v5165, %v5167
      %v5169 = vrot.slane %v5162, %v5168
      %v5171 = vmul.f32 %v5001, %v5169
      %5173 = vrot.lane.b32.xlu0 %v5171, 123
      %v5174 = vpop.permute.xlu0 %5173
      %v5175 = vrot.slane %v5174, 2
      %v5176 = vsel %vm4422, %v5174, %v5175
      %v5178 = vadd.f32 %v5159, %v5176
      %5179 = vset.pattern.permute.xlu0 44
      %5180 = vperm.xlu0 %5179, %v4312
      %v5181 = vpop.permute.xlu0 %5180
      %v5183 = vunpack.c.l.s4 269488144
      %v5184 = vunpack.c.0.s8 %v5183
      %v5185 = vlaneseq
      %v5186 = vshrl.u32 %v5185, 7
      %v5187 = vsub.s32 %v5184, %v5186
      %v5188 = vrot.slane %v5181, %v5187
      %v5190 = vmul.f32 %v5001, %v5188
      %5192 = vrot.lane.b32.xlu0 %v5190, 122
      %v5193 = vpop.permute.xlu0 %5192
      %v5194 = vrot.slane %v5193, 2
      %v5195 = vsel %vm4442, %v5193, %v5194
      %v5197 = vadd.f32 %v5178, %v5195
      %5198 = vset.pattern.permute.xlu0 45
      %5199 = vperm.xlu0 %5198, %v4312
      %v5200 = vpop.permute.xlu0 %5199
      %v5202 = vunpack.c.l.s4 269488144
      %v5203 = vunpack.c.0.s8 %v5202
      %v5204 = vlaneseq
      %v5205 = vshrl.u32 %v5204, 7
      %v5206 = vsub.s32 %v5203, %v5205
      %v5207 = vrot.slane %v5200, %v5206
      %v5209 = vmul.f32 %v5001, %v5207
      %5211 = vrot.lane.b32.xlu0 %v5209, 121
      %v5212 = vpop.permute.xlu0 %5211
      %v5213 = vrot.slane %v5212, 2
      %vm5214 = vcmask 990208
      %v5215 = vsel %vm5214, %v5212, %v5213
      %v5217 = vadd.f32 %v5197, %v5215
      %5218 = vset.pattern.permute.xlu0 46
      %5219 = vperm.xlu0 %5218, %v4312
      %v5220 = vpop.permute.xlu0 %5219
      %v5222 = vunpack.c.l.s4 269488144
      %v5223 = vunpack.c.0.s8 %v5222
      %v5224 = vlaneseq
      %v5225 = vshrl.u32 %v5224, 7
      %v5226 = vsub.s32 %v5223, %v5225
      %v5227 = vrot.slane %v5220, %v5226
      %v5229 = vmul.f32 %v5001, %v5227
      %5231 = vrot.lane.b32.xlu0 %v5229, 120
      %v5232 = vpop.permute.xlu0 %5231
      %v5233 = vrot.slane %v5232, 2
      %vm5234 = vcmask 982016
      %v5235 = vsel %vm5234, %v5232, %v5233
      %v5237 = vadd.f32 %v5217, %v5235
      %5238 = vset.pattern.permute.xlu0 47
      %5239 = vperm.xlu0 %5238, %v4312
      %v5240 = vpop.permute.xlu0 %5239
      %v5242 = vunpack.c.l.s4 269488144
      %v5243 = vunpack.c.0.s8 %v5242
      %v5244 = vlaneseq
      %v5245 = vshrl.u32 %v5244, 7
      %v5246 = vsub.s32 %v5243, %v5245
      %v5247 = vrot.slane %v5240, %v5246
      %v5249 = vmul.f32 %v5001, %v5247
      %5251 = vrot.lane.b32.xlu0 %v5249, 119
      %v5252 = vpop.permute.xlu0 %5251
      %v5253 = vrot.slane %v5252, 2
      %vm5254 = vcmask 973824
      %v5255 = vsel %vm5254, %v5252, %v5253
      %v5257 = vadd.f32 %v5237, %v5255
      %5258 = vset.pattern.permute.xlu0 48
      %5259 = vperm.xlu0 %5258, %v4312
      %v5260 = vpop.permute.xlu0 %5259
      %v5262 = vunpack.c.l.s4 269488144
      %v5263 = vunpack.c.0.s8 %v5262
      %v5264 = vlaneseq
      %v5265 = vshrl.u32 %v5264, 7
      %v5266 = vsub.s32 %v5263, %v5265
      %v5267 = vrot.slane %v5260, %v5266
      %v5269 = vmul.f32 %v5001, %v5267
      %5271 = vrot.lane.b32.xlu0 %v5269, 118
      %v5272 = vpop.permute.xlu0 %5271
      %v5273 = vrot.slane %v5272, 2
      %vm5274 = vcmask 965632
      %v5275 = vsel %vm5274, %v5272, %v5273
      %v5277 = vadd.f32 %v5257, %v5275
      %v5279 = vcombine.high %v5277, %v5277
      %v5281 = vunpack.c.l.s4 1983009808
      %v5282 = vunpack.c.0.s8 %v5281
      %v5283 = vlaneseq
      %v5284 = vshrl.u32 %v5283, 7
      %v5285 = vsub.s32 %v5282, %v5284
      %v5286 = vrot.slane %v5277, %v5285
      %v5288 = vunpack.c.l.s4 1983009808
      %v5289 = vunpack.c.0.s8 %v5288
      %v5290 = vlaneseq
      %v5291 = vshrl.u32 %v5290, 7
      %v5292 = vsub.s32 %v5289, %v5291
      %v5293 = vrot.slane %v5279, %v5292
      %v5294 = vcombine.high %v5286, %v5286
      %v5295 = vcombine.high %v5293, %v5293
      %vm5300 = vcmask 1041880
      %v5301 = vsel %vm5300, %v5286, 0.0
      %v5302 = vrot.slane %v5301, 4
      %v5303 = vadd.f32 %v5301, %v5302
      %v5304 = vrot.slane %v5303, 2
      %v5305 = vadd.f32 %v5303, %v5304
      %v5306 = vrot.slane %v5305, 1
      %v5307 = vadd.f32 %v5305, %v5306
      %v5308 = vsel %vm4003, %v5294, 0.0
      %v5309 = vrot.slane %v5308, 4
      %v5310 = vadd.f32 %v5308, %v5309
      %v5311 = vrot.slane %v5310, 2
      %v5312 = vadd.f32 %v5310, %v5311
      %v5313 = vrot.slane %v5312, 1
      %v5314 = vadd.f32 %v5312, %v5313
      %v5315 = vsel %vm4003, %v5293, 0.0
      %v5316 = vrot.slane %v5315, 4
      %v5317 = vadd.f32 %v5315, %v5316
      %v5318 = vrot.slane %v5317, 2
      %v5319 = vadd.f32 %v5317, %v5318
      %v5320 = vrot.slane %v5319, 1
      %v5321 = vadd.f32 %v5319, %v5320
      %vm5322 = vcmask 214016
      %v5323 = vsel %vm5322, %v5295, 0.0
      %v5324 = vrot.slane %v5323, 4
      %v5325 = vadd.f32 %v5323, %v5324
      %v5326 = vrot.slane %v5325, 2
      %v5327 = vadd.f32 %v5325, %v5326
      %v5328 = vrot.slane %v5327, 1
      %v5329 = vadd.f32 %v5327, %v5328
      %v5330 = vxor.u32 %v5307, 2147483648
      %v5331 = vxor.u32 %v5314, 2147483648
      %v5332 = vxor.u32 %v5321, 2147483648
      %v5333 = vxor.u32 %v5329, 2147483648
      %v5334 = vmul.f32 %v5330, 1.442695
      %v5335 = vpow.pop %v5334
      %v5336 = vmul.f32 %v5331, 1.442695
      %v5337 = vpow.pop %v5336
      %v5338 = vmul.f32 %v5332, 1.442695
      %v5339 = vpow.pop %v5338
      %v5340 = vmul.f32 %v5333, 1.442695
      %v5341 = vpow.pop %v5340
      %v5342 = vadd.f32 %v5335, 1.0
      %v5343 = vadd.f32 %v5337, 1.0
      %v5344 = vadd.f32 %v5339, 1.0
      %v5345 = vadd.f32 %v5341, 1.0
      %v5346 = vrcp.pop %v5342
      %v5347 = vmul.f32 1.0, %v5346
      %v5348 = vrcp.pop %v5343
      %v5349 = vmul.f32 1.0, %v5348
      %v5350 = vrcp.pop %v5344
      %v5351 = vmul.f32 1.0, %v5350
      %v5352 = vrcp.pop %v5345
      %v5353 = vmul.f32 1.0, %v5352
      %5358 = vrot.lane.b32.xlu0 %v5347, 69
      %v5359 = vpop.permute.xlu0 %5358
      %5360 = vrot.lane.b32.xlu0 %v5349, 69
      %v5361 = vpop.permute.xlu0 %5360
      %5362 = vrot.lane.b32.xlu0 %v5351, 69
      %v5363 = vpop.permute.xlu0 %5362
      %5364 = vrot.lane.b32.xlu0 %v5353, 69
      %v5365 = vpop.permute.xlu0 %5364
      %vm5366 = vcmask 564224
      %v5367 = vsel %vm5366, %v5359, %v5361
      %v5368 = vsel %vm5366, %v5361, %v5363
      %v5369 = vsel %vm5366, %v5363, %v5365
      %v5373 = vmul.f32 %v4182, %v5367
      %v5374 = vmul.f32 %v4183, %v5368
      %v5375 = vmul.f32 %v4184, %v5369
      %v5376 = vmul.f32 %v4185, %v5367
      %v5377 = vmul.f32 %v4186, %v5368
      %v5378 = vmul.f32 %v4187, %v5369
      %v5379 = vmax.f32 %v5373, 0.0
      %v5380 = vmax.f32 %v5374, 0.0
      %v5381 = vmax.f32 %v5375, 0.0
      %v5382 = vmax.f32 %v5376, 0.0
      %v5383 = vmax.f32 %v5377, 0.0
      %v5384 = vmax.f32 %v5378, 0.0
      %5391 = vrot.lane.b32.xlu0 %v5379, 127
      %v5392 = vpop.permute.xlu0 %5391
      %5393 = vrot.lane.b32.xlu0 %v5380, 127
      %v5394 = vpop.permute.xlu0 %5393
      %5395 = vrot.lane.b32.xlu0 %v5381, 127
      %v5396 = vpop.permute.xlu0 %5395
      %5397 = vrot.lane.b32.xlu0 %v5382, 127
      %v5398 = vpop.permute.xlu0 %5397
      %5399 = vrot.lane.b32.xlu0 %v5383, 127
      %v5400 = vpop.permute.xlu0 %5399
      %5401 = vrot.lane.b32.xlu0 %v5384, 127
      %v5402 = vpop.permute.xlu0 %5401
      %v5403 = vsel %vm404, %v5392, %v5394
      %v5404 = vsel %vm404, %v5394, %v5396
      %v5405 = vsel %vm404, %v5398, %v5400
      %v5406 = vsel %vm404, %v5400, %v5402
      %v5413 = vmax.f32 %v5379, %v5403
      %v5414 = vmax.f32 %v5380, %v5404
      %v5415 = vmax.f32 %v5381, %v5396
      %v5416 = vmax.f32 %v5382, %v5405
      %v5417 = vmax.f32 %v5383, %v5406
      %v5418 = vmax.f32 %v5384, %v5402
      %5425 = vrot.lane.b32.xlu0 %v5413, 106
      %v5426 = vpop.permute.xlu0 %5425
      %5427 = vrot.lane.b32.xlu0 %v5414, 106
      %v5428 = vpop.permute.xlu0 %5427
      %5429 = vrot.lane.b32.xlu0 %v5415, 106
      %v5430 = vpop.permute.xlu0 %5429
      %5431 = vrot.lane.b32.xlu0 %v5416, 106
      %v5432 = vpop.permute.xlu0 %5431
      %5433 = vrot.lane.b32.xlu0 %v5417, 106
      %v5434 = vpop.permute.xlu0 %5433
      %5435 = vrot.lane.b32.xlu0 %v5418, 106
      %v5436 = vpop.permute.xlu0 %5435
      %v5437 = vsel %vm428, %v5426, %v5428
      %v5438 = vsel %vm428, %v5428, %v5430
      %v5439 = vsel %vm428, %v5432, %v5434
      %v5440 = vsel %vm428, %v5434, %v5436
      %v5447 = vmax.f32 %v5413, %v5437
      %v5448 = vmax.f32 %v5414, %v5438
      %v5449 = vmax.f32 %v5415, %v5430
      %v5450 = vmax.f32 %v5416, %v5439
      %v5451 = vmax.f32 %v5417, %v5440
      %v5452 = vmax.f32 %v5418, %v5436
      %v5453 = vld [vmem:[%s10] sm:$0xff]
      %v5454 = vld [vmem:[%s10 + $0x8] sm:$0xff]
      %v5455 = vld [vmem:[%s10 + $0x10] sm:$0xff]
      %v5456 = vld [vmem:[%s10 + $0x18] sm:$0xff]
      %v5457 = vld [vmem:[%s10 + $0x20] sm:$0xff]
      %v5458 = vld [vmem:[%s10 + $0x28] sm:$0xff]
      %v5459 = vld [vmem:[%s10 + $0x30] sm:$0xff]
      %v5460 = vld [vmem:[%s10 + $0x38] sm:$0xff]
      %v5461 = vld [vmem:[%s10 + $0x40] sm:$0xff]
      %v5462 = vld [vmem:[%s10 + $0x48] sm:$0xff]
      %v5463 = vld [vmem:[%s10 + $0x50] sm:$0xff]
      %v5464 = vld [vmem:[%s10 + $0x58] sm:$0xff]
      %v5465 = vld [vmem:[%s10 + $0x60] sm:$0xff]
      %v5466 = vld [vmem:[%s10 + $0x68] sm:$0xff]
      %v5467 = vld [vmem:[%s10 + $0x70] sm:$0xff]
      %v5468 = vld [vmem:[%s10 + $0x78] sm:$0xff]
      %v5469 = vld [vmem:[%s10 + $0x80] sm:$0xff]
      %v5470 = vld [vmem:[%s10 + $0x88] sm:$0xff]
      %v5471 = vld [vmem:[%s10 + $0x90] sm:$0xff]
      %v5472 = vld [vmem:[%s10 + $0x98] sm:$0xff]
      %v5473 = vld [vmem:[%s10 + $0xa0] sm:$0xff]
      %v5474 = vld [vmem:[%s10 + $0xa8] sm:$0xff]
      %v5475 = vld [vmem:[%s10 + $0xb0] sm:$0xff]
      %v5476 = vld [vmem:[%s10 + $0xb8] sm:$0xff]
      %v5477 = vld [vmem:[%s10 + $0xc0] sm:$0xff]
      %v5478 = vld [vmem:[%s10 + $0xc8] sm:$0xff]
      %v5479 = vld [vmem:[%s10 + $0xd0] sm:$0xff]
      %v5480 = vld [vmem:[%s10 + $0xd8] sm:$0xff]
      %v5481 = vld [vmem:[%s10 + $0xe0] sm:$0xff]
      %v5482 = vld [vmem:[%s10 + $0xe8] sm:$0xff]
      %v5483 = vld [vmem:[%s10 + $0xf0] sm:$0xff]
      %v5484 = vld [vmem:[%s10 + $0xf8] sm:$0xff]
      %v5485 = vld [vmem:[%s10 + $0x100] sm:$0xff]
      %v5486 = vld [vmem:[%s10 + $0x108] sm:$0xff]
      %v5487 = vld [vmem:[%s10 + $0x110] sm:$0xff]
      %v5488 = vld [vmem:[%s10 + $0x118] sm:$0xff]
      %v5489 = vld [vmem:[%s10 + $0x120] sm:$0xff]
      %v5490 = vld [vmem:[%s10 + $0x128] sm:$0xff]
      %v5491 = vld [vmem:[%s10 + $0x130] sm:$0xff]
      %v5492 = vld [vmem:[%s10 + $0x138] sm:$0xff]
      %v5493 = vld [vmem:[%s10 + $0x140] sm:$0xff]
      %v5494 = vld [vmem:[%s10 + $0x148] sm:$0x1]
      %vm5495 = vcmask 596992
      %v5497 = vsel %vm5495, %v5449, 0
      %v5500 = vsel %vm5495, %v5452, 0
      %vm5502 = vcmask 1040384
      %v5504 = vsel %vm5502, %v5494, 0
      %5506 = vmatprep.subr.mxu0 0.0
      %5507 = vmatpush1.msra.mxu0 %v5453
      %5508 = vmatprep.subr.mxu0 0.0
      %5509 = vmatpush1.msra.mxu0 %v5454
      %5510 = vmatprep.subr.mxu0 0.0
      %5511 = vmatpush1.msra.mxu0 %v5455
      %5512 = vmatprep.subr.mxu0 0.0
      %5513 = vmatpush1.msra.mxu0 %v5456
      %5514 = vmatprep.subr.mxu0 0.0
      %5515 = vmatpush1.msra.mxu0 %v5457
      %5516 = vmatprep.subr.mxu0 0.0
      %5517 = vmatpush1.msra.mxu0 %v5458
      %5518 = vmatprep.subr.mxu0 0.0
      %5519 = vmatpush1.msra.mxu0 %v5459
      %5520 = vmatprep.subr.mxu0 0.0
      %5521 = vmatpush1.msra.mxu0 %v5460
      %5522 = vmatprep.subr.mxu0 0.0
      %5523 = vmatpush1.msra.mxu0 %v5461
      %5524 = vmatprep.subr.mxu0 0.0
      %5525 = vmatpush1.msra.mxu0 %v5462
      %5526 = vmatprep.subr.mxu0 0.0
      %5527 = vmatpush1.msra.mxu0 %v5463
      %5528 = vmatprep.subr.mxu0 0.0
      %5529 = vmatpush1.msra.mxu0 %v5464
      %5530 = vmatprep.subr.mxu0 0.0
      %5531 = vmatpush1.msra.mxu0 %v5465
      %5532 = vmatprep.subr.mxu0 0.0
      %5533 = vmatpush1.msra.mxu0 %v5466
      %5534 = vmatprep.subr.mxu0 0.0
      %5535 = vmatpush1.msra.mxu0 %v5467
      %5536 = vmatprep.subr.mxu0 0.0
      %5537 = vmatpush1.msra.mxu0 %v5468
      %5538 = vmatprep.subr.mxu0 0.0
      %5539 = vmatpush1.msra.mxu0 %v5469
      %5540 = vmatprep.subr.mxu0 0.0
      %5541 = vmatpush1.msra.mxu0 %v5470
      %5542 = vmatprep.subr.mxu0 0.0
      %5543 = vmatpush1.msra.mxu0 %v5471
      %5544 = vmatprep.subr.mxu0 0.0
      %5545 = vmatpush1.msra.mxu0 %v5472
      %5546 = vmatprep.subr.mxu0 0.0
      %5547 = vmatpush1.msra.mxu0 %v5473
      %5548 = vmatprep.subr.mxu0 0.0
      %5549 = vmatpush1.msra.mxu0 %v5474
      %5550 = vmatprep.subr.mxu0 0.0
      %5551 = vmatpush1.msra.mxu0 %v5475
      %5552 = vmatprep.subr.mxu0 0.0
      %5553 = vmatpush1.msra.mxu0 %v5476
      %5554 = vmatprep.subr.mxu0 0.0
      %5555 = vmatpush1.msra.mxu0 %v5477
      %5556 = vmatprep.subr.mxu0 0.0
      %5557 = vmatpush1.msra.mxu0 %v5478
      %5558 = vmatprep.subr.mxu0 0.0
      %5559 = vmatpush1.msra.mxu0 %v5479
      %5560 = vmatprep.subr.mxu0 0.0
      %5561 = vmatpush1.msra.mxu0 %v5480
      %5562 = vmatprep.subr.mxu0 0.0
      %5563 = vmatpush1.msra.mxu0 %v5481
      %5564 = vmatprep.subr.mxu0 0.0
      %5565 = vmatpush1.msra.mxu0 %v5482
      %5566 = vmatprep.subr.mxu0 0.0
      %5567 = vmatpush1.msra.mxu0 %v5483
      %5568 = vmatprep.subr.mxu0 0.0
      %5569 = vmatpush1.msra.mxu0 %v5484
      %5570 = vmatprep.mubr.f32.mxu0 %v5448
      %5571 = vmatmul.mubr.f32.gmra.mrb[0].mxu0 %v5447
      %v5572 = vpop.f32.mrb[0].mxu0
      %v5573 = vadd.f32 0.0, %v5572
      %v5574 = vpop.f32.mrb[0].mxu0
      %5575 = vmatprep.mubr.f32.mxu0 %v5451
      %5576 = vmatmul.mubr.f32.gmra.mrb[0].mxu0 %v5450
      %v5577 = vpop.f32.mrb[0].mxu0
      %v5578 = vadd.f32 0.0, %v5577
      %v5579 = vpop.f32.mrb[0].mxu0
      %5580 = vdwg.mxu0
      %5581 = vmatprep.subr.mxu0 0.0
      %5582 = vmatpush1.msra.mxu0 %v5485
      %5583 = vmatprep.subr.mxu0 0.0
      %5584 = vmatpush1.msra.mxu0 %v5486
      %5585 = vmatprep.subr.mxu0 0.0
      %5586 = vmatpush1.msra.mxu0 %v5487
      %5587 = vmatprep.subr.mxu0 0.0
      %5588 = vmatpush1.msra.mxu0 %v5488
      %5589 = vmatprep.subr.mxu0 0.0
      %5590 = vmatpush1.msra.mxu0 %v5489
      %5591 = vmatprep.subr.mxu0 0.0
      %5592 = vmatpush1.msra.mxu0 %v5490
      %5593 = vmatprep.subr.mxu0 0.0
      %5594 = vmatpush1.msra.mxu0 %v5491
      %5595 = vmatprep.subr.mxu0 0.0
      %5596 = vmatpush1.msra.mxu0 %v5492
      %5597 = vmatprep.subr.mxu0 0.0
      %5598 = vmatpush1.msra.mxu0 %v5493
      %5599 = vmatprep.subr.mxu0 0.0
      %5600 = vmatpush1.msra.mxu0 %v5504
      %5601 = vmatprep.subr.mxu0 0.0
      %5602 = vmatpush1.msra.mxu0 0.0
      %5603 = vmatprep.subr.mxu0 0.0
      %5604 = vmatpush1.msra.mxu0 0.0
      %5605 = vmatprep.subr.mxu0 0.0
      %5606 = vmatpush1.msra.mxu0 0.0
      %5607 = vmatprep.subr.mxu0 0.0
      %5608 = vmatpush1.msra.mxu0 0.0
      %5609 = vmatprep.subr.mxu0 0.0
      %5610 = vmatpush1.msra.mxu0 0.0
      %5611 = vmatprep.subr.mxu0 0.0
      %5612 = vmatpush1.msra.mxu0 0.0
      %5613 = vmatprep.subr.mxu0 0.0
      %5614 = vmatpush1.msra.mxu0 0.0
      %5615 = vmatprep.subr.mxu0 0.0
      %5616 = vmatpush1.msra.mxu0 0.0
      %5617 = vmatprep.subr.mxu0 0.0
      %5618 = vmatpush1.msra.mxu0 0.0
      %5619 = vmatprep.subr.mxu0 0.0
      %5620 = vmatpush1.msra.mxu0 0.0
      %5621 = vmatprep.subr.mxu0 0.0
      %5622 = vmatpush1.msra.mxu0 0.0
      %5623 = vmatprep.subr.mxu0 0.0
      %5624 = vmatpush1.msra.mxu0 0.0
      %5625 = vmatprep.subr.mxu0 0.0
      %5626 = vmatpush1.msra.mxu0 0.0
      %5627 = vmatprep.subr.mxu0 0.0
      %5628 = vmatpush1.msra.mxu0 0.0
      %5629 = vmatprep.subr.mxu0 0.0
      %5630 = vmatpush1.msra.mxu0 0.0
      %5631 = vmatprep.subr.mxu0 0.0
      %5632 = vmatpush1.msra.mxu0 0.0
      %5633 = vmatprep.subr.mxu0 0.0
      %5634 = vmatpush1.msra.mxu0 0.0
      %5635 = vmatprep.subr.mxu0 0.0
      %5636 = vmatpush1.msra.mxu0 0.0
      %5637 = vmatprep.subr.mxu0 0.0
      %5638 = vmatpush1.msra.mxu0 0.0
      %5639 = vmatprep.subr.mxu0 0.0
      %5640 = vmatpush1.msra.mxu0 0.0
      %5641 = vmatprep.subr.mxu0 0.0
      %5642 = vmatpush1.msra.mxu0 0.0
      %5643 = vmatprep.subr.mxu0 0.0
      %5644 = vmatpush1.msra.mxu0 0.0
      %5645 = vmatprep.mubr.f32.mxu0 0.0
      %5646 = vmatmul.mubr.f32.gmra.mrb[0].mxu0 %v5497
      %v5647 = vpop.f32.mrb[0].mxu0
      %v5648 = vadd.f32 %v5573, %v5647
      %v5649 = vpop.f32.mrb[0].mxu0
      %5650 = vmatprep.mubr.f32.mxu0 0.0
      %5651 = vmatmul.mubr.f32.gmra.mrb[0].mxu0 %v5500
      %v5652 = vpop.f32.mrb[0].mxu0
      %v5653 = vadd.f32 %v5578, %v5652
      %v5654 = vpop.f32.mrb[0].mxu0
      %5655 = vdwg.mxu0
      %5656 = vst.msk [vmem:[%s386] sm:$0xff] %vm3231, %v5648
      %5657 = vst.msk [vmem:[%s386 + $0x8] sm:$0xff] %vm3231, %v5653
      %p5658 = scmp.lt.s32.totalorder %s22, 1
      %s5659 = scalar_select %p5658, %s22, 1
      %s5660 = smul.addr %s5659, 2
      %s5661 = smul.addr %s5660, 8
      %s5662 = scalar_lea.vmem %s11, %s5661
      // Predicated region
      $region65: #{conv_block_forward.1} parent=63 // pred_check
        %p5663 = pneg %p276
      $region66: #{conv_block_forward.1} parent=63 // pred_check_branch
        %5665 = sbr.rel (%p5663) target = $region68
      $region67: #{conv_block_forward.1} parent=63 // pred_region
        _
      $region68: #{conv_block_forward.1} parent=63 // pred_fallthru
        _
    $region64: #{conv_block_forward.1} parent=5 // pred_fallthru
      _
    %p5666 = scmp.le.s32.totalorder 2, %s17
    // Predicated region
    $region69: #{conv_block_forward.1} parent=5 // pred_check
      %p5667 = pneg %p5666
    $region70: #{conv_block_forward.1} parent=5 // pred_check_branch
      %5669 = sbr.rel (%p5667) target = $region72
    $region71: #{conv_block_forward.1} parent=5 // pred_region
      %s5670 = ssub.s32 %s17, 2
      // Predicated region
      $region73: #{conv_block_forward.1} parent=71 // pred_check
        %p5671 = pneg %p282
      $region74: #{conv_block_forward.1} parent=71 // pred_check_branch
        %5673 = sbr.rel (%p5671) target = $region76
      $region75: #{conv_block_forward.1} parent=71 // pred_region
        %p5674 = scmp.lt.s32.totalorder %s23, 1
        %s5675 = scalar_select %p5674, %s23, 1
        %s5676 = smul.addr %s5675, 2
        %s5677 = smul.addr %s5676, 8
        %s5678 = scalar_lea.vmem %s11, %s5677
      $region76: #{conv_block_forward.1} parent=71 // pred_fallthru
        _
    $region72: #{conv_block_forward.1} parent=5 // pred_fallthru
      _
  $region6: #{conv_block_forward.1} parent=0 // loop_footer
    %s21 = sadd.s32 1, %s17
  $region7: #{conv_block_forward.1} parent=0 // loop_footer_branch
    %16 = sbr.rel target = $region3
  $region8: #{conv_block_forward.1} parent=0 // loop_exit
    _

</llo_original>
